<compile_context>
chip_gen: v6e
topology: v6e:2x2x1
jax: 0.10.0
libtpu: 0.0.40
codegen_flags: <defaults>
</compile_context>

<pallas_src>
import functools
import math

import jax
import jax.numpy as jnp
from jax.experimental import pallas as pl
from jax.experimental.pallas import tpu as pltpu


HIDDEN = 256
BOTTLENECK = 16
HEAD_PAD = 128   # lane-dense width of layer-3 output and the packed (mu|sigma) head


def actor_kernel(x_ref, w1_ref, b1_ref, w2_ref, b2_ref, w3_ref, b3_ref,
                 wh_ref, bh_ref, o_ref, *, action_space):
    # fc1..fc3: bf16 MXU matmuls with f32 accumulation; bias + tanh in f32.
    # x arrives as f32 and is cast in-kernel (no separate wrapper cast pass).
    x = x_ref[...].astype(jnp.bfloat16)
    h = jnp.tanh(
        jnp.dot(x, w1_ref[...], preferred_element_type=jnp.float32) + b1_ref[...])
    h = jnp.tanh(
        jnp.dot(h.astype(jnp.bfloat16), w2_ref[...],
                preferred_element_type=jnp.float32) + b2_ref[...])
    # Layer 3 is zero-padded 16 -> 128 output lanes; padded columns are tanh(0)=0.
    h = jnp.tanh(
        jnp.dot(h.astype(jnp.bfloat16), w3_ref[...],
                preferred_element_type=jnp.float32) + b3_ref[...])

    # Packed head: columns [0, A) = mu, [A, 2A) = sigma pre-activation, rest 0.
    head = (jnp.dot(h.astype(jnp.bfloat16), wh_ref[...],
                    preferred_element_type=jnp.float32) + bh_ref[...])

    # Numerically stable softplus, applied only to the sigma columns.
    sp = jnp.maximum(head, 0.0) + jnp.log1p(jnp.exp(-jnp.abs(head)))
    col = jax.lax.broadcasted_iota(jnp.int32, head.shape, 1)
    is_sigma = (col >= action_space) & (col < 2 * action_space)
    o_ref[...] = jnp.where(is_sigma, sp, head).astype(o_ref.dtype)


def prepare_actor_params(params, action_space):
    """One-time packing / lane-padding of the weights for the kernel.

    Call this once after init (NOT per forward step): it launches a handful of
    small device ops that must not sit on the RL hot path.
    """
    A = action_space
    assert 2 * A <= HEAD_PAD, "action_space too large for packed head"

    w3p = jnp.zeros((HIDDEN, HEAD_PAD), jnp.bfloat16)
    w3p = w3p.at[:, :BOTTLENECK].set(params["w3"])
    b3p = jnp.zeros((1, HEAD_PAD), jnp.float32)
    b3p = b3p.at[:, :BOTTLENECK].set(params["b3"])

    whp = jnp.zeros((HEAD_PAD, HEAD_PAD), jnp.bfloat16)
    whp = whp.at[:BOTTLENECK, :A].set(params["w_mu"])
    whp = whp.at[:BOTTLENECK, A:2 * A].set(params["w_sigma"])
    bhp = jnp.zeros((1, HEAD_PAD), jnp.float32)
    bhp = bhp.at[:, :A].set(params["b_mu"]).at[:, A:2 * A].set(params["b_sigma"])

    return {"w1": params["w1"], "b1": params["b1"],
            "w2": params["w2"], "b2": params["b2"],
            "w3p": w3p, "b3p": b3p, "whp": whp, "bhp": bhp}


def actor_forward(x, packed, action_space, *, tile_b=None, num_cores=1):
    """x: [B, state_space] f32. Returns (mu, sigma), each [B, action_space] f32."""
    B, S = x.shape
    A = action_space

    if tile_b is None:
        # Fewest grid steps possible: the kernel is per-step-overhead bound at
        # these sizes. Single tile for small rollout batches (grid=(1,)); on a
        # 2-TC chip (v7x) split the batch across cores; cap tiles at 1024 rows
        # so very large batches still amortize step overhead with tiny VMEM use.
        per_core = pl.cdiv(B, max(1, num_cores))
        tile_b = int(min(1024, max(8, pl.cdiv(per_core, 8) * 8)))

    n_tiles = pl.cdiv(B, tile_b)
    b_pad = n_tiles * tile_b
    # Pad only when the last tile is ragged (padded rows are sliced off below).
    x_in = x if b_pad == B else jnp.pad(x, ((0, b_pad - B), (0, 0)))

    # x / out are tiled over the batch grid; every weight & bias uses a
    # constant block index so it stays VMEM-resident across grid steps.
    in_specs = [
        pl.BlockSpec((tile_b, S), lambda i: (i, 0)),
        pl.BlockSpec((S, HIDDEN), lambda i: (0, 0)),
        pl.BlockSpec((1, HIDDEN), lambda i: (0, 0)),
        pl.BlockSpec((HIDDEN, HIDDEN), lambda i: (0, 0)),
        pl.BlockSpec((1, HIDDEN), lambda i: (0, 0)),
        pl.BlockSpec((HIDDEN, HEAD_PAD), lambda i: (0, 0)),
        pl.BlockSpec((1, HEAD_PAD), lambda i: (0, 0)),
        pl.BlockSpec((HEAD_PAD, HEAD_PAD), lambda i: (0, 0)),
        pl.BlockSpec((1, HEAD_PAD), lambda i: (0, 0)),
    ]
    out_specs = pl.BlockSpec((tile_b, HEAD_PAD), lambda i: (i, 0))

    flops = 2 * b_pad * (S * HIDDEN + HIDDEN * HIDDEN
                         + HIDDEN * HEAD_PAD + HEAD_PAD * HEAD_PAD)
    transcendentals = b_pad * (HIDDEN + HIDDEN + HEAD_PAD + 2 * HEAD_PAD)
    bytes_accessed = int(
        x_in.size * 4
        + (packed["w1"].size + packed["w2"].size
           + packed["w3p"].size + packed["whp"].size) * 2
        + (packed["b1"].size + packed["b2"].size
           + packed["b3p"].size + packed["bhp"].size) * 4
        + b_pad * HEAD_PAD * 2)

    out = pl.pallas_call(
        functools.partial(actor_kernel, action_space=A),
        out_shape=jax.ShapeDtypeStruct((b_pad, HEAD_PAD), jnp.bfloat16),
        grid=(n_tiles,),
        in_specs=in_specs,
        out_specs=out_specs,
        compiler_params=pltpu.CompilerParams(
            dimension_semantics=("parallel",)),
        cost_estimate=pl.CostEstimate(
            flops=flops, transcendentals=transcendentals,
            bytes_accessed=bytes_accessed),
    )(x_in, packed["w1"], packed["b1"], packed["w2"], packed["b2"],
      packed["w3p"], packed["b3p"], packed["whp"], packed["bhp"])

    mu = out[:B, :A].astype(jnp.float32)
    sigma = out[:B, A:2 * A].astype(jnp.float32)
    return mu, sigma


def orthogonal_init(key, shape, gain):
    """torch.nn.init.orthogonal_(W, gain) for a (out, in) matrix, returned (in, out)."""
    out_f, in_f = shape
    rows, cols = (out_f, in_f) if out_f >= in_f else (in_f, out_f)
    a = jax.random.normal(key, (rows, cols), dtype=jnp.float32)
    q, r = jnp.linalg.qr(a)
    q = q * jnp.sign(jnp.diag(r))          # make the decomposition unique
    if out_f < in_f:
        q = q.T                            # q is now (out_f, in_f)
    return (gain * q).T.astype(jnp.float32)  # (in_f, out_f)


def init_actor_params(key, state_space, action_space):
    gain = math.sqrt(2.0)
    layer_shapes = {
        "1": (256, state_space),
        "2": (256, 256),
        "3": (16, 256),
        "_mu": (action_space, 16),
        "_sigma": (action_space, 16),
    }
    keys = jax.random.split(key, len(layer_shapes))
    params = {}
    for (name, (d_out, d_in)), k in zip(layer_shapes.items(), keys):
        w = orthogonal_init(k, (d_out, d_in), gain)        # (in, out) f32
        params[f"w{name}"] = w.astype(jnp.bfloat16)        # bf16 weights for MXU/DMA
        params[f"b{name}"] = jnp.zeros((1, d_out), jnp.float32)  # bias_const = 0.0
    return params


def reference_forward(x, params):
    """Pure-JAX reference mirroring the kernel's bf16-weight / f32-accum /
    bf16-writeback math."""
    def dot32(a, w):
        return jnp.dot(a.astype(jnp.bfloat16), w,
                       preferred_element_type=jnp.float32)
    h = jnp.tanh(dot32(x, params["w1"]) + params["b1"])
    h = jnp.tanh(dot32(h, params["w2"]) + params["b2"])
    h = jnp.tanh(dot32(h, params["w3"]) + params["b3"])
    mu = dot32(h, params["w_mu"]) + params["b_mu"]
    pre = dot32(h, params["w_sigma"]) + params["b_sigma"]
    sigma = jnp.maximum(pre, 0.0) + jnp.log1p(jnp.exp(-jnp.abs(pre)))
    # Mirror the kernel's bf16 output writeback + wrapper upcast.
    return (mu.astype(jnp.bfloat16).astype(jnp.float32),
            sigma.astype(jnp.bfloat16).astype(jnp.float32))


if __name__ == "__main__":
    key = jax.random.PRNGKey(0)
    k_param, k_x = jax.random.split(key)

    batch = 512          # small rollout batch
    state_space = 32
    action_space = 4

    raw_params = init_actor_params(k_param, state_space, action_space)
    packed_params = prepare_actor_params(raw_params, action_space)  # one-time
    x = jax.random.normal(k_x, (batch, state_space), dtype=jnp.float32)

    # >1 only on chips with multiple TensorCores (v7x); harmless elsewhere.
    num_cores = int(getattr(jax.devices()[0], "num_cores", 1) or 1)

    mu, sigma = actor_forward(x, packed_params, action_space, num_cores=num_cores)
    mu, sigma = jax.block_until_ready((mu, sigma))

    mu_ref, sigma_ref = reference_forward(x, raw_params)
    assert mu.shape == (batch, action_space)
    assert sigma.shape == (batch, action_space)
    # bf16 output writeback: allow ~one bf16 ULP of slack on top of accum-order noise.
    assert jnp.allclose(mu, mu_ref, atol=1e-2, rtol=1e-2), "mu mismatch vs. reference"
    assert jnp.allclose(sigma, sigma_ref, atol=1e-2, rtol=1e-2), "sigma mismatch vs. reference"
    assert bool(jnp.all(sigma > 0)), "softplus output must be positive"
    assert bool(jnp.all(jnp.isfinite(mu))) and bool(jnp.all(jnp.isfinite(sigma)))

    # TODO(synk): get_action / evaluate_get_action (Normal rsample, log_prob,
    # entropy) stay in plain JAX outside the kernel; only forward() is fused.

    print("KERNEL_OK")
</pallas_src>

<mosaic_0001>
module attributes {stable_mosaic.version = 11 : i64} {
  func.func @actor_kernel(%arg0: i32, %arg1: memref<512x32xf32, #tpu.memory_space<vmem>>, %arg2: memref<32x256xbf16, #tpu.memory_space<vmem>>, %arg3: memref<1x256xf32, #tpu.memory_space<vmem>>, %arg4: memref<256x256xbf16, #tpu.memory_space<vmem>>, %arg5: memref<1x256xf32, #tpu.memory_space<vmem>>, %arg6: memref<256x128xbf16, #tpu.memory_space<vmem>>, %arg7: memref<1x128xf32, #tpu.memory_space<vmem>>, %arg8: memref<128x128xbf16, #tpu.memory_space<vmem>>, %arg9: memref<1x128xf32, #tpu.memory_space<vmem>>, %arg10: memref<512x128xbf16, #tpu.memory_space<vmem>>) attributes {dimension_semantics = [#tpu.dimension_semantics<parallel>], iteration_bounds = array<i64: 1>, scalar_prefetch = 0 : i64, scratch_operands = 0 : i64, tpu.core_type = #tpu.core_type<tc>, window_params = [{transform_indices = @transform_0, window_bounds = array<i64: 512, 32>}, {pipeline_mode = #tpu.pipeline_mode<synchronous>, transform_indices = @transform_1, window_bounds = array<i64: 32, 256>}, {pipeline_mode = #tpu.pipeline_mode<synchronous>, transform_indices = @transform_2, window_bounds = array<i64: 1, 256>}, {pipeline_mode = #tpu.pipeline_mode<synchronous>, transform_indices = @transform_3, window_bounds = array<i64: 256, 256>}, {pipeline_mode = #tpu.pipeline_mode<synchronous>, transform_indices = @transform_4, window_bounds = array<i64: 1, 256>}, {pipeline_mode = #tpu.pipeline_mode<synchronous>, transform_indices = @transform_5, window_bounds = array<i64: 256, 128>}, {pipeline_mode = #tpu.pipeline_mode<synchronous>, transform_indices = @transform_6, window_bounds = array<i64: 1, 128>}, {pipeline_mode = #tpu.pipeline_mode<synchronous>, transform_indices = @transform_7, window_bounds = array<i64: 128, 128>}, {pipeline_mode = #tpu.pipeline_mode<synchronous>, transform_indices = @transform_8, window_bounds = array<i64: 1, 128>}, {transform_indices = @transform_9, window_bounds = array<i64: 512, 128>}]} {
    %c0 = arith.constant 0 : index
    %c0_0 = arith.constant 0 : index
    %0 = vector.load %arg1[%c0, %c0_0] : memref<512x32xf32, #tpu.memory_space<vmem>>, vector<512x32xf32>
    %1 = arith.truncf %0 : vector<512x32xf32> to vector<512x32xbf16>
    %c0_1 = arith.constant 0 : index
    %c0_2 = arith.constant 0 : index
    %2 = vector.load %arg2[%c0_1, %c0_2] : memref<32x256xbf16, #tpu.memory_space<vmem>>, vector<32x256xbf16>
    %cst = arith.constant dense<0.000000e+00> : vector<512x256xf32>
    %3 = tpu.matmul %1, %2, %cst {dimension_numbers = #tpu.dot_dimension_numbers<[1], [0], [0], [1], [0, 0, 1, 1], [], []>} : vector<512x32xbf16>, vector<32x256xbf16>, vector<512x256xf32> -> vector<512x256xf32>
    %c0_3 = arith.constant 0 : index
    %c0_4 = arith.constant 0 : index
    %4 = vector.load %arg3[%c0_3, %c0_4] : memref<1x256xf32, #tpu.memory_space<vmem>>, vector<1x256xf32>
    %5 = vector.broadcast %4 : vector<1x256xf32> to vector<512x256xf32>
    %6 = arith.addf %3, %5 : vector<512x256xf32>
    %7 = math.tanh %6 : vector<512x256xf32>
    %8 = arith.truncf %7 : vector<512x256xf32> to vector<512x256xbf16>
    %c0_5 = arith.constant 0 : index
    %c0_6 = arith.constant 0 : index
    %9 = vector.load %arg4[%c0_5, %c0_6] : memref<256x256xbf16, #tpu.memory_space<vmem>>, vector<256x256xbf16>
    %cst_7 = arith.constant dense<0.000000e+00> : vector<512x256xf32>
    %10 = tpu.matmul %8, %9, %cst_7 {dimension_numbers = #tpu.dot_dimension_numbers<[1], [0], [0], [1], [0, 0, 1, 1], [], []>} : vector<512x256xbf16>, vector<256x256xbf16>, vector<512x256xf32> -> vector<512x256xf32>
    %c0_8 = arith.constant 0 : index
    %c0_9 = arith.constant 0 : index
    %11 = vector.load %arg5[%c0_8, %c0_9] : memref<1x256xf32, #tpu.memory_space<vmem>>, vector<1x256xf32>
    %12 = vector.broadcast %11 : vector<1x256xf32> to vector<512x256xf32>
    %13 = arith.addf %10, %12 : vector<512x256xf32>
    %14 = math.tanh %13 : vector<512x256xf32>
    %15 = arith.truncf %14 : vector<512x256xf32> to vector<512x256xbf16>
    %c0_10 = arith.constant 0 : index
    %c0_11 = arith.constant 0 : index
    %16 = vector.load %arg6[%c0_10, %c0_11] : memref<256x128xbf16, #tpu.memory_space<vmem>>, vector<256x128xbf16>
    %cst_12 = arith.constant dense<0.000000e+00> : vector<512x128xf32>
    %17 = tpu.matmul %15, %16, %cst_12 {dimension_numbers = #tpu.dot_dimension_numbers<[1], [0], [0], [1], [0, 0, 1, 1], [], []>} : vector<512x256xbf16>, vector<256x128xbf16>, vector<512x128xf32> -> vector<512x128xf32>
    %c0_13 = arith.constant 0 : index
    %c0_14 = arith.constant 0 : index
    %18 = vector.load %arg7[%c0_13, %c0_14] : memref<1x128xf32, #tpu.memory_space<vmem>>, vector<1x128xf32>
    %19 = vector.broadcast %18 : vector<1x128xf32> to vector<512x128xf32>
    %20 = arith.addf %17, %19 : vector<512x128xf32>
    %21 = math.tanh %20 : vector<512x128xf32>
    %22 = arith.truncf %21 : vector<512x128xf32> to vector<512x128xbf16>
    %c0_15 = arith.constant 0 : index
    %c0_16 = arith.constant 0 : index
    %23 = vector.load %arg8[%c0_15, %c0_16] : memref<128x128xbf16, #tpu.memory_space<vmem>>, vector<128x128xbf16>
    %cst_17 = arith.constant dense<0.000000e+00> : vector<512x128xf32>
    %24 = tpu.matmul %22, %23, %cst_17 {dimension_numbers = #tpu.dot_dimension_numbers<[1], [0], [0], [1], [0, 0, 1, 1], [], []>} : vector<512x128xbf16>, vector<128x128xbf16>, vector<512x128xf32> -> vector<512x128xf32>
    %c0_18 = arith.constant 0 : index
    %c0_19 = arith.constant 0 : index
    %25 = vector.load %arg9[%c0_18, %c0_19] : memref<1x128xf32, #tpu.memory_space<vmem>>, vector<1x128xf32>
    %26 = vector.broadcast %25 : vector<1x128xf32> to vector<512x128xf32>
    %27 = arith.addf %24, %26 : vector<512x128xf32>
    %cst_20 = arith.constant 0.000000e+00 : f32
    %28 = vector.broadcast %cst_20 : f32 to vector<512x128xf32>
    %29 = arith.maximumf %27, %28 : vector<512x128xf32>
    %30 = math.absf %27 : vector<512x128xf32>
    %cst_21 = arith.constant 0.000000e+00 : f32
    %31 = vector.broadcast %cst_21 : f32 to vector<512x128xf32>
    %32 = arith.subf %31, %30 : vector<512x128xf32>
    %33 = math.exp %32 : vector<512x128xf32>
    %34 = math.log1p %33 : vector<512x128xf32>
    %35 = arith.addf %29, %34 : vector<512x128xf32>
    %36 = tpu.iota {dimensions = array<i32: 1>} : vector<512x128xi32>
    %c4_i32 = arith.constant 4 : i32
    %37 = vector.broadcast %c4_i32 : i32 to vector<512x128xi32>
    %38 = arith.cmpi sge, %36, %37 : vector<512x128xi32>
    %c8_i32 = arith.constant 8 : i32
    %39 = vector.broadcast %c8_i32 : i32 to vector<512x128xi32>
    %40 = arith.cmpi slt, %36, %39 : vector<512x128xi32>
    %41 = arith.andi %38, %40 : vector<512x128xi1>
    %42 = arith.select %41, %35, %27 : vector<512x128xi1>, vector<512x128xf32>
    %43 = arith.truncf %42 : vector<512x128xf32> to vector<512x128xbf16>
    %c0_22 = arith.constant 0 : index
    %c0_23 = arith.constant 0 : index
    %44 = vector.load %arg10[%c0_22, %c0_23] : memref<512x128xbf16, #tpu.memory_space<vmem>>, vector<512x128xbf16>
    tpu.vector_store %arg10[%c0_22, %c0_23], %43 {strides = array<i32>} : memref<512x128xbf16, #tpu.memory_space<vmem>>, vector<512x128xbf16>,
    return
  }
  func.func @transform_0(%arg0: i32) -> (i32, i32) {
    %c0_i32 = arith.constant 0 : i32
    %c0_i32_0 = arith.constant 0 : i32
    return %arg0, %c0_i32 : i32, i32
  }
  func.func @transform_1(%arg0: i32) -> (i32, i32) {
    %c0_i32 = arith.constant 0 : i32
    %c0_i32_0 = arith.constant 0 : i32
    %c0_i32_1 = arith.constant 0 : i32
    return %c0_i32, %c0_i32_0 : i32, i32
  }
  func.func @transform_2(%arg0: i32) -> (i32, i32) {
    %c0_i32 = arith.constant 0 : i32
    %c0_i32_0 = arith.constant 0 : i32
    %c0_i32_1 = arith.constant 0 : i32
    return %c0_i32, %c0_i32_0 : i32, i32
  }
  func.func @transform_3(%arg0: i32) -> (i32, i32) {
    %c0_i32 = arith.constant 0 : i32
    %c0_i32_0 = arith.constant 0 : i32
    %c0_i32_1 = arith.constant 0 : i32
    return %c0_i32, %c0_i32_0 : i32, i32
  }
  func.func @transform_4(%arg0: i32) -> (i32, i32) {
    %c0_i32 = arith.constant 0 : i32
    %c0_i32_0 = arith.constant 0 : i32
    %c0_i32_1 = arith.constant 0 : i32
    return %c0_i32, %c0_i32_0 : i32, i32
  }
  func.func @transform_5(%arg0: i32) -> (i32, i32) {
    %c0_i32 = arith.constant 0 : i32
    %c0_i32_0 = arith.constant 0 : i32
    %c0_i32_1 = arith.constant 0 : i32
    return %c0_i32, %c0_i32_0 : i32, i32
  }
  func.func @transform_6(%arg0: i32) -> (i32, i32) {
    %c0_i32 = arith.constant 0 : i32
    %c0_i32_0 = arith.constant 0 : i32
    %c0_i32_1 = arith.constant 0 : i32
    return %c0_i32, %c0_i32_0 : i32, i32
  }
  func.func @transform_7(%arg0: i32) -> (i32, i32) {
    %c0_i32 = arith.constant 0 : i32
    %c0_i32_0 = arith.constant 0 : i32
    %c0_i32_1 = arith.constant 0 : i32
    return %c0_i32, %c0_i32_0 : i32, i32
  }
  func.func @transform_8(%arg0: i32) -> (i32, i32) {
    %c0_i32 = arith.constant 0 : i32
    %c0_i32_0 = arith.constant 0 : i32
    %c0_i32_1 = arith.constant 0 : i32
    return %c0_i32, %c0_i32_0 : i32, i32
  }
  func.func @transform_9(%arg0: i32) -> (i32, i32) {
    %c0_i32 = arith.constant 0 : i32
    %c0_i32_0 = arith.constant 0 : i32
    return %arg0, %c0_i32 : i32, i32
  }
}

</mosaic_0001>

<llo_original>
// kernel: tpu_custom_call.1
$region0: #{tpu_custom_call.1}
  #allocation0 [shape = 'u32[]', space=smem, size = 0x4, offset = 0x4, fixed_abs, tag = 'smem constant byte address 0x4 - core index']
  #allocation1 [shape = 'u32[144,128]{1,0:T(1,128)}', space=vmem, size = 0x12000, scoped, tag = 'internal scratch']
  %s0 = inlined_call_operand.vmem [shape: f32[512,32], index: 0, kind: input, shape index: {}]
  %s1 = inlined_call_operand.vmem [shape: bf16[32,256], index: 1, kind: input, shape index: {}]
  %s2 = inlined_call_operand.vmem [shape: f32[1,256], index: 2, kind: input, shape index: {}]
  %s3 = inlined_call_operand.vmem [shape: bf16[256,256], index: 3, kind: input, shape index: {}]
  %s4 = inlined_call_operand.vmem [shape: f32[1,256], index: 4, kind: input, shape index: {}]
  %s5 = inlined_call_operand.vmem [shape: bf16[256,128], index: 5, kind: input, shape index: {}]
  %s6 = inlined_call_operand.vmem [shape: f32[1,128], index: 6, kind: input, shape index: {}]
  %s7 = inlined_call_operand.vmem [shape: bf16[128,128], index: 7, kind: input, shape index: {}]
  %s8 = inlined_call_operand.vmem [shape: f32[1,128], index: 8, kind: input, shape index: {}]
  %s9 = inlined_call_operand.hbm [shape: bf16[512,128], index: 9, kind: output, shape index: {}]
  %s10 = sld [smem:[#allocation0]]
  $region46: #{tpu_custom_call.1} parent=0
    _
  %s12 = ssub.s32 1, %s10
  %s13 = scalar_select 0, %s12, %s10
  $region1: #{tpu_custom_call.1} parent=0
    #allocation2 [shape = 'u8[131072]{0}', space=vmem, size = 0x20000, scoped, tag = 'output window, operand 0, single buffered']
    #allocation3 [shape = 's32[1]{0}', space=sflag, size = 0x4, scoped, tag = 'scoped memory for tpu_custom_call.1']
    %14 = vsyncpa [#allocation3], 0
    // Predicated region
    $region2: #{tpu_custom_call.1} parent=1 // pred_check
      _
    $region3: #{tpu_custom_call.1} parent=1 // pred_check_branch
      %16 = sbr.rel (0) target = $region5
    $region4: #{tpu_custom_call.1} parent=1 // pred_region
      _
    $region5: #{tpu_custom_call.1} parent=1 // pred_fallthru
      _
    // Predicated region
    $region6: #{tpu_custom_call.1} parent=1 // pred_check
      _
    $region7: #{tpu_custom_call.1} parent=1 // pred_check_branch
      %18 = sbr.rel (0) target = $region9
    $region8: #{tpu_custom_call.1} parent=1 // pred_region
      _
    $region9: #{tpu_custom_call.1} parent=1 // pred_fallthru
      _
    // Predicated region
    $region10: #{tpu_custom_call.1} parent=1 // pred_check
      _
    $region11: #{tpu_custom_call.1} parent=1 // pred_check_branch
      %20 = sbr.rel (0) target = $region13
    $region12: #{tpu_custom_call.1} parent=1 // pred_region
      _
    $region13: #{tpu_custom_call.1} parent=1 // pred_fallthru
      _
    // Predicated region
    $region14: #{tpu_custom_call.1} parent=1 // pred_check
      _
    $region15: #{tpu_custom_call.1} parent=1 // pred_check_branch
      %22 = sbr.rel (0) target = $region17
    $region16: #{tpu_custom_call.1} parent=1 // pred_region
      _
    $region17: #{tpu_custom_call.1} parent=1 // pred_fallthru
      _
    // Predicated region
    $region18: #{tpu_custom_call.1} parent=1 // pred_check
      _
    $region19: #{tpu_custom_call.1} parent=1 // pred_check_branch
      %24 = sbr.rel (0) target = $region21
    $region20: #{tpu_custom_call.1} parent=1 // pred_region
      _
    $region21: #{tpu_custom_call.1} parent=1 // pred_fallthru
      _
    // Predicated region
    $region22: #{tpu_custom_call.1} parent=1 // pred_check
      _
    $region23: #{tpu_custom_call.1} parent=1 // pred_check_branch
      %26 = sbr.rel (0) target = $region25
    $region24: #{tpu_custom_call.1} parent=1 // pred_region
      _
    $region25: #{tpu_custom_call.1} parent=1 // pred_fallthru
      _
    // Predicated region
    $region26: #{tpu_custom_call.1} parent=1 // pred_check
      _
    $region27: #{tpu_custom_call.1} parent=1 // pred_check_branch
      %28 = sbr.rel (0) target = $region29
    $region28: #{tpu_custom_call.1} parent=1 // pred_region
      _
    $region29: #{tpu_custom_call.1} parent=1 // pred_fallthru
      _
    // Predicated region
    $region30: #{tpu_custom_call.1} parent=1 // pred_check
      _
    $region31: #{tpu_custom_call.1} parent=1 // pred_check_branch
      %30 = sbr.rel (0) target = $region33
    $region32: #{tpu_custom_call.1} parent=1 // pred_region
      _
    $region33: #{tpu_custom_call.1} parent=1 // pred_fallthru
      _
    // Predicated region
    $region34: #{tpu_custom_call.1} parent=1 // pred_check
      _
    $region35: #{tpu_custom_call.1} parent=1 // pred_check_branch
      %32 = sbr.rel (0) target = $region37
    $region36: #{tpu_custom_call.1} parent=1 // pred_region
      _
    $region37: #{tpu_custom_call.1} parent=1 // pred_fallthru
      _
    %v34 = vld [vmem:[%s0] sm:$0xff]
    %v35 = vld [vmem:[%s0 + $0x8] sm:$0xff]
    %v36 = vld [vmem:[%s0 + $0x10] sm:$0xff]
    %v37 = vld [vmem:[%s0 + $0x18] sm:$0xff]
    %v38 = vld [vmem:[%s0 + $0x20] sm:$0xff]
    %v39 = vld [vmem:[%s0 + $0x28] sm:$0xff]
    %v40 = vld [vmem:[%s0 + $0x30] sm:$0xff]
    %v41 = vld [vmem:[%s0 + $0x38] sm:$0xff]
    %v42 = vld [vmem:[%s0 + $0x40] sm:$0xff]
    %v43 = vld [vmem:[%s0 + $0x48] sm:$0xff]
    %v44 = vld [vmem:[%s0 + $0x50] sm:$0xff]
    %v45 = vld [vmem:[%s0 + $0x58] sm:$0xff]
    %v46 = vld [vmem:[%s0 + $0x60] sm:$0xff]
    %v47 = vld [vmem:[%s0 + $0x68] sm:$0xff]
    %v48 = vld [vmem:[%s0 + $0x70] sm:$0xff]
    %v49 = vld [vmem:[%s0 + $0x78] sm:$0xff]
    %v50 = vld [vmem:[%s0 + $0x80] sm:$0xff]
    %v51 = vld [vmem:[%s0 + $0x88] sm:$0xff]
    %v52 = vld [vmem:[%s0 + $0x90] sm:$0xff]
    %v53 = vld [vmem:[%s0 + $0x98] sm:$0xff]
    %v54 = vld [vmem:[%s0 + $0xa0] sm:$0xff]
    %v55 = vld [vmem:[%s0 + $0xa8] sm:$0xff]
    %v56 = vld [vmem:[%s0 + $0xb0] sm:$0xff]
    %v57 = vld [vmem:[%s0 + $0xb8] sm:$0xff]
    %v58 = vld [vmem:[%s0 + $0xc0] sm:$0xff]
    %v59 = vld [vmem:[%s0 + $0xc8] sm:$0xff]
    %v60 = vld [vmem:[%s0 + $0xd0] sm:$0xff]
    %v61 = vld [vmem:[%s0 + $0xd8] sm:$0xff]
    %v62 = vld [vmem:[%s0 + $0xe0] sm:$0xff]
    %v63 = vld [vmem:[%s0 + $0xe8] sm:$0xff]
    %v64 = vld [vmem:[%s0 + $0xf0] sm:$0xff]
    %v65 = vld [vmem:[%s0 + $0xf8] sm:$0xff]
    %v66 = vld [vmem:[%s0 + $0x100] sm:$0xff]
    %v67 = vld [vmem:[%s0 + $0x108] sm:$0xff]
    %v68 = vld [vmem:[%s0 + $0x110] sm:$0xff]
    %v69 = vld [vmem:[%s0 + $0x118] sm:$0xff]
    %v70 = vld [vmem:[%s0 + $0x120] sm:$0xff]
    %v71 = vld [vmem:[%s0 + $0x128] sm:$0xff]
    %v72 = vld [vmem:[%s0 + $0x130] sm:$0xff]
    %v73 = vld [vmem:[%s0 + $0x138] sm:$0xff]
    %v74 = vld [vmem:[%s0 + $0x140] sm:$0xff]
    %v75 = vld [vmem:[%s0 + $0x148] sm:$0xff]
    %v76 = vld [vmem:[%s0 + $0x150] sm:$0xff]
    %v77 = vld [vmem:[%s0 + $0x158] sm:$0xff]
    %v78 = vld [vmem:[%s0 + $0x160] sm:$0xff]
    %v79 = vld [vmem:[%s0 + $0x168] sm:$0xff]
    %v80 = vld [vmem:[%s0 + $0x170] sm:$0xff]
    %v81 = vld [vmem:[%s0 + $0x178] sm:$0xff]
    %v82 = vld [vmem:[%s0 + $0x180] sm:$0xff]
    %v83 = vld [vmem:[%s0 + $0x188] sm:$0xff]
    %v84 = vld [vmem:[%s0 + $0x190] sm:$0xff]
    %v85 = vld [vmem:[%s0 + $0x198] sm:$0xff]
    %v86 = vld [vmem:[%s0 + $0x1a0] sm:$0xff]
    %v87 = vld [vmem:[%s0 + $0x1a8] sm:$0xff]
    %v88 = vld [vmem:[%s0 + $0x1b0] sm:$0xff]
    %v89 = vld [vmem:[%s0 + $0x1b8] sm:$0xff]
    %v90 = vld [vmem:[%s0 + $0x1c0] sm:$0xff]
    %v91 = vld [vmem:[%s0 + $0x1c8] sm:$0xff]
    %v92 = vld [vmem:[%s0 + $0x1d0] sm:$0xff]
    %v93 = vld [vmem:[%s0 + $0x1d8] sm:$0xff]
    %v94 = vld [vmem:[%s0 + $0x1e0] sm:$0xff]
    %v95 = vld [vmem:[%s0 + $0x1e8] sm:$0xff]
    %v96 = vld [vmem:[%s0 + $0x1f0] sm:$0xff]
    %v97 = vld [vmem:[%s0 + $0x1f8] sm:$0xff]
    %v98 = vpack.c.bf16 %v35, %v34
    %v99 = vpack.c.bf16 %v37, %v36
    %v100 = vpack.c.bf16 %v39, %v38
    %v101 = vpack.c.bf16 %v41, %v40
    %v102 = vpack.c.bf16 %v43, %v42
    %v103 = vpack.c.bf16 %v45, %v44
    %v104 = vpack.c.bf16 %v47, %v46
    %v105 = vpack.c.bf16 %v49, %v48
    %v106 = vpack.c.bf16 %v51, %v50
    %v107 = vpack.c.bf16 %v53, %v52
    %v108 = vpack.c.bf16 %v55, %v54
    %v109 = vpack.c.bf16 %v57, %v56
    %v110 = vpack.c.bf16 %v59, %v58
    %v111 = vpack.c.bf16 %v61, %v60
    %v112 = vpack.c.bf16 %v63, %v62
    %v113 = vpack.c.bf16 %v65, %v64
    %v114 = vpack.c.bf16 %v67, %v66
    %v115 = vpack.c.bf16 %v69, %v68
    %v116 = vpack.c.bf16 %v71, %v70
    %v117 = vpack.c.bf16 %v73, %v72
    %v118 = vpack.c.bf16 %v75, %v74
    %v119 = vpack.c.bf16 %v77, %v76
    %v120 = vpack.c.bf16 %v79, %v78
    %v121 = vpack.c.bf16 %v81, %v80
    %v122 = vpack.c.bf16 %v83, %v82
    %v123 = vpack.c.bf16 %v85, %v84
    %v124 = vpack.c.bf16 %v87, %v86
    %v125 = vpack.c.bf16 %v89, %v88
    %v126 = vpack.c.bf16 %v91, %v90
    %v127 = vpack.c.bf16 %v93, %v92
    %v128 = vpack.c.bf16 %v95, %v94
    %v129 = vpack.c.bf16 %v97, %v96
    %v130 = vld [vmem:[%s1] sm:$0xff]
    %v131 = vld [vmem:[%s1 + $0x8] sm:$0xff]
    %v132 = vld [vmem:[%s1 + $0x10] sm:$0xff]
    %v133 = vld [vmem:[%s1 + $0x18] sm:$0xff]
    %v134 = vld [vmem:[%s2] sm:$0x3]
    %v136 = vlaneseq
    %v137 = vshrl.u32 %v136, 7
    %v138 = vsub.s32 0, %v137
    %v139 = vrot.slane %v134, %v138
    %v140 = vlaneseq
    %v141 = vshrl.u32 %v140, 7
    %v142 = vsub.s32 1, %v141
    %v143 = vrot.slane %v134, %v142
    %v150 = vunpack.c.l.b16 %v130
    %v151 = vunpack.c.h.b16 %v130
    %v152 = vunpack.c.l.b16 %v131
    %v153 = vunpack.c.h.b16 %v131
    %v154 = vunpack.c.l.b16 %v132
    %v155 = vunpack.c.h.b16 %v132
    %v156 = vunpack.c.l.b16 %v133
    %v157 = vunpack.c.h.b16 %v133
    %v158 = vpack.c.b16 %v152, %v150
    %v159 = vpack.c.b16 %v153, %v151
    %v160 = vpack.c.b16 %v156, %v154
    %v161 = vpack.c.b16 %v157, %v155
    %vm166 = vcmask 261120
    %v168 = vsel %vm166, %v98, 0
    %v171 = vsel %vm166, %v99, 0
    %v174 = vsel %vm166, %v100, 0
    %v177 = vsel %vm166, %v101, 0
    %v180 = vsel %vm166, %v102, 0
    %v183 = vsel %vm166, %v103, 0
    %v186 = vsel %vm166, %v104, 0
    %v189 = vsel %vm166, %v105, 0
    %v192 = vsel %vm166, %v106, 0
    %v195 = vsel %vm166, %v107, 0
    %v198 = vsel %vm166, %v108, 0
    %v201 = vsel %vm166, %v109, 0
    %v204 = vsel %vm166, %v110, 0
    %v207 = vsel %vm166, %v111, 0
    %v210 = vsel %vm166, %v112, 0
    %v213 = vsel %vm166, %v113, 0
    %v216 = vsel %vm166, %v114, 0
    %v219 = vsel %vm166, %v115, 0
    %v222 = vsel %vm166, %v116, 0
    %v225 = vsel %vm166, %v117, 0
    %v228 = vsel %vm166, %v118, 0
    %v231 = vsel %vm166, %v119, 0
    %v234 = vsel %vm166, %v120, 0
    %v237 = vsel %vm166, %v121, 0
    %v240 = vsel %vm166, %v122, 0
    %v243 = vsel %vm166, %v123, 0
    %v246 = vsel %vm166, %v124, 0
    %v249 = vsel %vm166, %v125, 0
    %v252 = vsel %vm166, %v126, 0
    %v255 = vsel %vm166, %v127, 0
    %v258 = vsel %vm166, %v128, 0
    %v261 = vsel %vm166, %v129, 0
    %263 = vmatprep.subr.bf16.mxu0 0
    %264 = vmatpush1.bf16.msra.mxu0 0
    %265 = vmatprep.subr.bf16.mxu0 0
    %266 = vmatpush1.bf16.msra.mxu0 0
    %267 = vmatprep.subr.bf16.mxu0 0
    %268 = vmatpush1.bf16.msra.mxu0 0
    %269 = vmatprep.subr.bf16.mxu0 0
    %270 = vmatpush1.bf16.msra.mxu0 0
    %271 = vmatprep.subr.bf16.mxu0 0
    %272 = vmatpush1.bf16.msra.mxu0 0
    %273 = vmatprep.subr.bf16.mxu0 0
    %274 = vmatpush1.bf16.msra.mxu0 0
    %275 = vmatprep.subr.bf16.mxu0 %v161
    %276 = vmatpush1.bf16.msra.mxu0 %v160
    %277 = vmatprep.subr.bf16.mxu0 %v159
    %278 = vmatpush1.bf16.msra.mxu0 %v158
    %279 = vmatprep.subr.bf16.mxu0 0
    %280 = vmatpush2.bf16.msra.mxu0 0
    %281 = vmatprep.subr.bf16.mxu0 0
    %282 = vmatpush2.bf16.msra.mxu0 0
    %283 = vmatprep.subr.bf16.mxu0 0
    %284 = vmatpush2.bf16.msra.mxu0 0
    %285 = vmatprep.subr.bf16.mxu0 0
    %286 = vmatpush2.bf16.msra.mxu0 0
    %287 = vmatprep.subr.bf16.mxu0 0
    %288 = vmatpush2.bf16.msra.mxu0 0
    %289 = vmatprep.subr.bf16.mxu0 0
    %290 = vmatpush2.bf16.msra.mxu0 0
    %291 = vmatprep.subr.bf16.mxu0 0
    %292 = vmatpush2.bf16.msra.mxu0 0
    %293 = vmatprep.subr.bf16.mxu0 0
    %294 = vmatpush2.bf16.msra.mxu0 0
    %295 = vmatprep.mubr.bf16.mxu0 0
    %296 = vmatmul.mubr.bf16.gmra.mxu0 %v168
    %v297 = vpop.f32.mrf.mxu0
    %v298 = vadd.f32 %v139, %v297
    %v299 = vpop.f32.mrf.mxu0
    %v300 = vadd.f32 %v143, %v299
    %v301 = vpop.f32.mrf.mxu0
    %v302 = vadd.f32 %v139, %v301
    %v303 = vpop.f32.mrf.mxu0
    %v304 = vadd.f32 %v143, %v303
    %305 = vmatprep.mubr.bf16.mxu0 0
    %306 = vmatmul.mubr.bf16.gmra.mxu0 %v171
    %v307 = vpop.f32.mrf.mxu0
    %v308 = vadd.f32 %v139, %v307
    %v309 = vpop.f32.mrf.mxu0
    %v310 = vadd.f32 %v143, %v309
    %v311 = vpop.f32.mrf.mxu0
    %v312 = vadd.f32 %v139, %v311
    %v313 = vpop.f32.mrf.mxu0
    %v314 = vadd.f32 %v143, %v313
    %315 = vmatprep.mubr.bf16.mxu0 0
    %316 = vmatmul.mubr.bf16.gmra.mxu0 %v174
    %v317 = vpop.f32.mrf.mxu0
    %v318 = vadd.f32 %v139, %v317
    %v319 = vpop.f32.mrf.mxu0
    %v320 = vadd.f32 %v143, %v319
    %v321 = vpop.f32.mrf.mxu0
    %v322 = vadd.f32 %v139, %v321
    %v323 = vpop.f32.mrf.mxu0
    %v324 = vadd.f32 %v143, %v323
    %325 = vmatprep.mubr.bf16.mxu0 0
    %326 = vmatmul.mubr.bf16.gmra.mxu0 %v177
    %v327 = vpop.f32.mrf.mxu0
    %v328 = vadd.f32 %v139, %v327
    %v329 = vpop.f32.mrf.mxu0
    %v330 = vadd.f32 %v143, %v329
    %v331 = vpop.f32.mrf.mxu0
    %v332 = vadd.f32 %v139, %v331
    %v333 = vpop.f32.mrf.mxu0
    %v334 = vadd.f32 %v143, %v333
    %335 = vmatprep.mubr.bf16.mxu0 0
    %336 = vmatmul.mubr.bf16.gmra.mxu0 %v180
    %v337 = vpop.f32.mrf.mxu0
    %v338 = vadd.f32 %v139, %v337
    %v339 = vpop.f32.mrf.mxu0
    %v340 = vadd.f32 %v143, %v339
    %v341 = vpop.f32.mrf.mxu0
    %v342 = vadd.f32 %v139, %v341
    %v343 = vpop.f32.mrf.mxu0
    %v344 = vadd.f32 %v143, %v343
    %345 = vmatprep.mubr.bf16.mxu0 0
    %346 = vmatmul.mubr.bf16.gmra.mxu0 %v183
    %v347 = vpop.f32.mrf.mxu0
    %v348 = vadd.f32 %v139, %v347
    %v349 = vpop.f32.mrf.mxu0
    %v350 = vadd.f32 %v143, %v349
    %v351 = vpop.f32.mrf.mxu0
    %v352 = vadd.f32 %v139, %v351
    %v353 = vpop.f32.mrf.mxu0
    %v354 = vadd.f32 %v143, %v353
    %355 = vmatprep.mubr.bf16.mxu0 0
    %356 = vmatmul.mubr.bf16.gmra.mxu0 %v186
    %v357 = vpop.f32.mrf.mxu0
    %v358 = vadd.f32 %v139, %v357
    %v359 = vpop.f32.mrf.mxu0
    %v360 = vadd.f32 %v143, %v359
    %v361 = vpop.f32.mrf.mxu0
    %v362 = vadd.f32 %v139, %v361
    %v363 = vpop.f32.mrf.mxu0
    %v364 = vadd.f32 %v143, %v363
    %365 = vmatprep.mubr.bf16.mxu0 0
    %366 = vmatmul.mubr.bf16.gmra.mxu0 %v189
    %v367 = vpop.f32.mrf.mxu0
    %v368 = vadd.f32 %v139, %v367
    %v369 = vpop.f32.mrf.mxu0
    %v370 = vadd.f32 %v143, %v369
    %v371 = vpop.f32.mrf.mxu0
    %v372 = vadd.f32 %v139, %v371
    %v373 = vpop.f32.mrf.mxu0
    %v374 = vadd.f32 %v143, %v373
    %375 = vmatprep.mubr.bf16.mxu0 0
    %376 = vmatmul.mubr.bf16.gmra.mxu0 %v192
    %v377 = vpop.f32.mrf.mxu0
    %v378 = vadd.f32 %v139, %v377
    %v379 = vpop.f32.mrf.mxu0
    %v380 = vadd.f32 %v143, %v379
    %v381 = vpop.f32.mrf.mxu0
    %v382 = vadd.f32 %v139, %v381
    %v383 = vpop.f32.mrf.mxu0
    %v384 = vadd.f32 %v143, %v383
    %385 = vmatprep.mubr.bf16.mxu0 0
    %386 = vmatmul.mubr.bf16.gmra.mxu0 %v195
    %v387 = vpop.f32.mrf.mxu0
    %v388 = vadd.f32 %v139, %v387
    %v389 = vpop.f32.mrf.mxu0
    %v390 = vadd.f32 %v143, %v389
    %v391 = vpop.f32.mrf.mxu0
    %v392 = vadd.f32 %v139, %v391
    %v393 = vpop.f32.mrf.mxu0
    %v394 = vadd.f32 %v143, %v393
    %395 = vmatprep.mubr.bf16.mxu0 0
    %396 = vmatmul.mubr.bf16.gmra.mxu0 %v198
    %v397 = vpop.f32.mrf.mxu0
    %v398 = vadd.f32 %v139, %v397
    %v399 = vpop.f32.mrf.mxu0
    %v400 = vadd.f32 %v143, %v399
    %v401 = vpop.f32.mrf.mxu0
    %v402 = vadd.f32 %v139, %v401
    %v403 = vpop.f32.mrf.mxu0
    %v404 = vadd.f32 %v143, %v403
    %405 = vmatprep.mubr.bf16.mxu0 0
    %406 = vmatmul.mubr.bf16.gmra.mxu0 %v201
    %v407 = vpop.f32.mrf.mxu0
    %v408 = vadd.f32 %v139, %v407
    %v409 = vpop.f32.mrf.mxu0
    %v410 = vadd.f32 %v143, %v409
    %v411 = vpop.f32.mrf.mxu0
    %v412 = vadd.f32 %v139, %v411
    %v413 = vpop.f32.mrf.mxu0
    %v414 = vadd.f32 %v143, %v413
    %415 = vmatprep.mubr.bf16.mxu0 0
    %416 = vmatmul.mubr.bf16.gmra.mxu0 %v204
    %v417 = vpop.f32.mrf.mxu0
    %v418 = vadd.f32 %v139, %v417
    %v419 = vpop.f32.mrf.mxu0
    %v420 = vadd.f32 %v143, %v419
    %v421 = vpop.f32.mrf.mxu0
    %v422 = vadd.f32 %v139, %v421
    %v423 = vpop.f32.mrf.mxu0
    %v424 = vadd.f32 %v143, %v423
    %425 = vmatprep.mubr.bf16.mxu0 0
    %426 = vmatmul.mubr.bf16.gmra.mxu0 %v207
    %v427 = vpop.f32.mrf.mxu0
    %v428 = vadd.f32 %v139, %v427
    %v429 = vpop.f32.mrf.mxu0
    %v430 = vadd.f32 %v143, %v429
    %v431 = vpop.f32.mrf.mxu0
    %v432 = vadd.f32 %v139, %v431
    %v433 = vpop.f32.mrf.mxu0
    %v434 = vadd.f32 %v143, %v433
    %435 = vmatprep.mubr.bf16.mxu0 0
    %436 = vmatmul.mubr.bf16.gmra.mxu0 %v210
    %v437 = vpop.f32.mrf.mxu0
    %v438 = vadd.f32 %v139, %v437
    %v439 = vpop.f32.mrf.mxu0
    %v440 = vadd.f32 %v143, %v439
    %v441 = vpop.f32.mrf.mxu0
    %v442 = vadd.f32 %v139, %v441
    %v443 = vpop.f32.mrf.mxu0
    %v444 = vadd.f32 %v143, %v443
    %445 = vmatprep.mubr.bf16.mxu0 0
    %446 = vmatmul.mubr.bf16.gmra.mxu0 %v213
    %v447 = vpop.f32.mrf.mxu0
    %v448 = vadd.f32 %v139, %v447
    %v449 = vpop.f32.mrf.mxu0
    %v450 = vadd.f32 %v143, %v449
    %v451 = vpop.f32.mrf.mxu0
    %v452 = vadd.f32 %v139, %v451
    %v453 = vpop.f32.mrf.mxu0
    %v454 = vadd.f32 %v143, %v453
    %455 = vmatprep.mubr.bf16.mxu0 0
    %456 = vmatmul.mubr.bf16.gmra.mxu0 %v216
    %v457 = vpop.f32.mrf.mxu0
    %v458 = vadd.f32 %v139, %v457
    %v459 = vpop.f32.mrf.mxu0
    %v460 = vadd.f32 %v143, %v459
    %v461 = vpop.f32.mrf.mxu0
    %v462 = vadd.f32 %v139, %v461
    %v463 = vpop.f32.mrf.mxu0
    %v464 = vadd.f32 %v143, %v463
    %465 = vmatprep.mubr.bf16.mxu0 0
    %466 = vmatmul.mubr.bf16.gmra.mxu0 %v219
    %v467 = vpop.f32.mrf.mxu0
    %v468 = vadd.f32 %v139, %v467
    %v469 = vpop.f32.mrf.mxu0
    %v470 = vadd.f32 %v143, %v469
    %v471 = vpop.f32.mrf.mxu0
    %v472 = vadd.f32 %v139, %v471
    %v473 = vpop.f32.mrf.mxu0
    %v474 = vadd.f32 %v143, %v473
    %475 = vmatprep.mubr.bf16.mxu0 0
    %476 = vmatmul.mubr.bf16.gmra.mxu0 %v222
    %v477 = vpop.f32.mrf.mxu0
    %v478 = vadd.f32 %v139, %v477
    %v479 = vpop.f32.mrf.mxu0
    %v480 = vadd.f32 %v143, %v479
    %v481 = vpop.f32.mrf.mxu0
    %v482 = vadd.f32 %v139, %v481
    %v483 = vpop.f32.mrf.mxu0
    %v484 = vadd.f32 %v143, %v483
    %485 = vmatprep.mubr.bf16.mxu0 0
    %486 = vmatmul.mubr.bf16.gmra.mxu0 %v225
    %v487 = vpop.f32.mrf.mxu0
    %v488 = vadd.f32 %v139, %v487
    %v489 = vpop.f32.mrf.mxu0
    %v490 = vadd.f32 %v143, %v489
    %v491 = vpop.f32.mrf.mxu0
    %v492 = vadd.f32 %v139, %v491
    %v493 = vpop.f32.mrf.mxu0
    %v494 = vadd.f32 %v143, %v493
    %495 = vmatprep.mubr.bf16.mxu0 0
    %496 = vmatmul.mubr.bf16.gmra.mxu0 %v228
    %v497 = vpop.f32.mrf.mxu0
    %v498 = vadd.f32 %v139, %v497
    %v499 = vpop.f32.mrf.mxu0
    %v500 = vadd.f32 %v143, %v499
    %v501 = vpop.f32.mrf.mxu0
    %v502 = vadd.f32 %v139, %v501
    %v503 = vpop.f32.mrf.mxu0
    %v504 = vadd.f32 %v143, %v503
    %505 = vmatprep.mubr.bf16.mxu0 0
    %506 = vmatmul.mubr.bf16.gmra.mxu0 %v231
    %v507 = vpop.f32.mrf.mxu0
    %v508 = vadd.f32 %v139, %v507
    %v509 = vpop.f32.mrf.mxu0
    %v510 = vadd.f32 %v143, %v509
    %v511 = vpop.f32.mrf.mxu0
    %v512 = vadd.f32 %v139, %v511
    %v513 = vpop.f32.mrf.mxu0
    %v514 = vadd.f32 %v143, %v513
    %515 = vmatprep.mubr.bf16.mxu0 0
    %516 = vmatmul.mubr.bf16.gmra.mxu0 %v234
    %v517 = vpop.f32.mrf.mxu0
    %v518 = vadd.f32 %v139, %v517
    %v519 = vpop.f32.mrf.mxu0
    %v520 = vadd.f32 %v143, %v519
    %v521 = vpop.f32.mrf.mxu0
    %v522 = vadd.f32 %v139, %v521
    %v523 = vpop.f32.mrf.mxu0
    %v524 = vadd.f32 %v143, %v523
    %525 = vmatprep.mubr.bf16.mxu0 0
    %526 = vmatmul.mubr.bf16.gmra.mxu0 %v237
    %v527 = vpop.f32.mrf.mxu0
    %v528 = vadd.f32 %v139, %v527
    %v529 = vpop.f32.mrf.mxu0
    %v530 = vadd.f32 %v143, %v529
    %v531 = vpop.f32.mrf.mxu0
    %v532 = vadd.f32 %v139, %v531
    %v533 = vpop.f32.mrf.mxu0
    %v534 = vadd.f32 %v143, %v533
    %535 = vmatprep.mubr.bf16.mxu0 0
    %536 = vmatmul.mubr.bf16.gmra.mxu0 %v240
    %v537 = vpop.f32.mrf.mxu0
    %v538 = vadd.f32 %v139, %v537
    %v539 = vpop.f32.mrf.mxu0
    %v540 = vadd.f32 %v143, %v539
    %v541 = vpop.f32.mrf.mxu0
    %v542 = vadd.f32 %v139, %v541
    %v543 = vpop.f32.mrf.mxu0
    %v544 = vadd.f32 %v143, %v543
    %545 = vmatprep.mubr.bf16.mxu0 0
    %546 = vmatmul.mubr.bf16.gmra.mxu0 %v243
    %v547 = vpop.f32.mrf.mxu0
    %v548 = vadd.f32 %v139, %v547
    %v549 = vpop.f32.mrf.mxu0
    %v550 = vadd.f32 %v143, %v549
    %v551 = vpop.f32.mrf.mxu0
    %v552 = vadd.f32 %v139, %v551
    %v553 = vpop.f32.mrf.mxu0
    %v554 = vadd.f32 %v143, %v553
    %555 = vmatprep.mubr.bf16.mxu0 0
    %556 = vmatmul.mubr.bf16.gmra.mxu0 %v246
    %v557 = vpop.f32.mrf.mxu0
    %v558 = vadd.f32 %v139, %v557
    %v559 = vpop.f32.mrf.mxu0
    %v560 = vadd.f32 %v143, %v559
    %v561 = vpop.f32.mrf.mxu0
    %v562 = vadd.f32 %v139, %v561
    %v563 = vpop.f32.mrf.mxu0
    %v564 = vadd.f32 %v143, %v563
    %565 = vmatprep.mubr.bf16.mxu0 0
    %566 = vmatmul.mubr.bf16.gmra.mxu0 %v249
    %v567 = vpop.f32.mrf.mxu0
    %v568 = vadd.f32 %v139, %v567
    %v569 = vpop.f32.mrf.mxu0
    %v570 = vadd.f32 %v143, %v569
    %v571 = vpop.f32.mrf.mxu0
    %v572 = vadd.f32 %v139, %v571
    %v573 = vpop.f32.mrf.mxu0
    %v574 = vadd.f32 %v143, %v573
    %575 = vmatprep.mubr.bf16.mxu0 0
    %576 = vmatmul.mubr.bf16.gmra.mxu0 %v252
    %v577 = vpop.f32.mrf.mxu0
    %v578 = vadd.f32 %v139, %v577
    %v579 = vpop.f32.mrf.mxu0
    %v580 = vadd.f32 %v143, %v579
    %v581 = vpop.f32.mrf.mxu0
    %v582 = vadd.f32 %v139, %v581
    %v583 = vpop.f32.mrf.mxu0
    %v584 = vadd.f32 %v143, %v583
    %585 = vmatprep.mubr.bf16.mxu0 0
    %586 = vmatmul.mubr.bf16.gmra.mxu0 %v255
    %v587 = vpop.f32.mrf.mxu0
    %v588 = vadd.f32 %v139, %v587
    %v589 = vpop.f32.mrf.mxu0
    %v590 = vadd.f32 %v143, %v589
    %v591 = vpop.f32.mrf.mxu0
    %v592 = vadd.f32 %v139, %v591
    %v593 = vpop.f32.mrf.mxu0
    %v594 = vadd.f32 %v143, %v593
    %595 = vmatprep.mubr.bf16.mxu0 0
    %596 = vmatmul.mubr.bf16.gmra.mxu0 %v258
    %v597 = vpop.f32.mrf.mxu0
    %v598 = vadd.f32 %v139, %v597
    %v599 = vpop.f32.mrf.mxu0
    %v600 = vadd.f32 %v143, %v599
    %v601 = vpop.f32.mrf.mxu0
    %v602 = vadd.f32 %v139, %v601
    %v603 = vpop.f32.mrf.mxu0
    %v604 = vadd.f32 %v143, %v603
    %605 = vmatprep.mubr.bf16.mxu0 0
    %606 = vmatmul.mubr.bf16.gmra.mxu0 %v261
    %v607 = vpop.f32.mrf.mxu0
    %v608 = vadd.f32 %v139, %v607
    %v609 = vpop.f32.mrf.mxu0
    %v610 = vadd.f32 %v143, %v609
    %v611 = vpop.f32.mrf.mxu0
    %v612 = vadd.f32 %v139, %v611
    %v613 = vpop.f32.mrf.mxu0
    %v614 = vadd.f32 %v143, %v613
    %615 = vdwg.mxu0
    %v616 = vtanh.pop %v298
    %v617 = vtanh.pop %v300
    %v618 = vtanh.pop %v302
    %v619 = vtanh.pop %v304
    %v620 = vtanh.pop %v308
    %v621 = vtanh.pop %v310
    %v622 = vtanh.pop %v312
    %v623 = vtanh.pop %v314
    %v624 = vtanh.pop %v318
    %v625 = vtanh.pop %v320
    %v626 = vtanh.pop %v322
    %v627 = vtanh.pop %v324
    %v628 = vtanh.pop %v328
    %v629 = vtanh.pop %v330
    %v630 = vtanh.pop %v332
    %v631 = vtanh.pop %v334
    %v632 = vtanh.pop %v338
    %v633 = vtanh.pop %v340
    %v634 = vtanh.pop %v342
    %v635 = vtanh.pop %v344
    %v636 = vtanh.pop %v348
    %v637 = vtanh.pop %v350
    %v638 = vtanh.pop %v352
    %v639 = vtanh.pop %v354
    %v640 = vtanh.pop %v358
    %v641 = vtanh.pop %v360
    %v642 = vtanh.pop %v362
    %v643 = vtanh.pop %v364
    %v644 = vtanh.pop %v368
    %v645 = vtanh.pop %v370
    %v646 = vtanh.pop %v372
    %v647 = vtanh.pop %v374
    %v648 = vtanh.pop %v378
    %v649 = vtanh.pop %v380
    %v650 = vtanh.pop %v382
    %v651 = vtanh.pop %v384
    %v652 = vtanh.pop %v388
    %v653 = vtanh.pop %v390
    %v654 = vtanh.pop %v392
    %v655 = vtanh.pop %v394
    %v656 = vtanh.pop %v398
    %v657 = vtanh.pop %v400
    %v658 = vtanh.pop %v402
    %v659 = vtanh.pop %v404
    %v660 = vtanh.pop %v408
    %v661 = vtanh.pop %v410
    %v662 = vtanh.pop %v412
    %v663 = vtanh.pop %v414
    %v664 = vtanh.pop %v418
    %v665 = vtanh.pop %v420
    %v666 = vtanh.pop %v422
    %v667 = vtanh.pop %v424
    %v668 = vtanh.pop %v428
    %v669 = vtanh.pop %v430
    %v670 = vtanh.pop %v432
    %v671 = vtanh.pop %v434
    %v672 = vtanh.pop %v438
    %v673 = vtanh.pop %v440
    %v674 = vtanh.pop %v442
    %v675 = vtanh.pop %v444
    %v676 = vtanh.pop %v448
    %v677 = vtanh.pop %v450
    %v678 = vtanh.pop %v452
    %v679 = vtanh.pop %v454
    %v680 = vtanh.pop %v458
    %v681 = vtanh.pop %v460
    %v682 = vtanh.pop %v462
    %v683 = vtanh.pop %v464
    %v684 = vtanh.pop %v468
    %v685 = vtanh.pop %v470
    %v686 = vtanh.pop %v472
    %v687 = vtanh.pop %v474
    %v688 = vtanh.pop %v478
    %v689 = vtanh.pop %v480
    %v690 = vtanh.pop %v482
    %v691 = vtanh.pop %v484
    %v692 = vtanh.pop %v488
    %v693 = vtanh.pop %v490
    %v694 = vtanh.pop %v492
    %v695 = vtanh.pop %v494
    %v696 = vtanh.pop %v498
    %v697 = vtanh.pop %v500
    %v698 = vtanh.pop %v502
    %v699 = vtanh.pop %v504
    %v700 = vtanh.pop %v508
    %v701 = vtanh.pop %v510
    %v702 = vtanh.pop %v512
    %v703 = vtanh.pop %v514
    %v704 = vtanh.pop %v518
    %v705 = vtanh.pop %v520
    %v706 = vtanh.pop %v522
    %v707 = vtanh.pop %v524
    %v708 = vtanh.pop %v528
    %v709 = vtanh.pop %v530
    %v710 = vtanh.pop %v532
    %v711 = vtanh.pop %v534
    %v712 = vtanh.pop %v538
    %v713 = vtanh.pop %v540
    %v714 = vtanh.pop %v542
    %v715 = vtanh.pop %v544
    %v716 = vtanh.pop %v548
    %v717 = vtanh.pop %v550
    %v718 = vtanh.pop %v552
    %v719 = vtanh.pop %v554
    %v720 = vtanh.pop %v558
    %v721 = vtanh.pop %v560
    %v722 = vtanh.pop %v562
    %v723 = vtanh.pop %v564
    %v724 = vtanh.pop %v568
    %v725 = vtanh.pop %v570
    %v726 = vtanh.pop %v572
    %v727 = vtanh.pop %v574
    %v728 = vtanh.pop %v578
    %v729 = vtanh.pop %v580
    %v730 = vtanh.pop %v582
    %v731 = vtanh.pop %v584
    %v732 = vtanh.pop %v588
    %v733 = vtanh.pop %v590
    %v734 = vtanh.pop %v592
    %v735 = vtanh.pop %v594
    %v736 = vtanh.pop %v598
    %v737 = vtanh.pop %v600
    %v738 = vtanh.pop %v602
    %v739 = vtanh.pop %v604
    %v740 = vtanh.pop %v608
    %v741 = vtanh.pop %v610
    %v742 = vtanh.pop %v612
    %v743 = vtanh.pop %v614
    %v744 = vpack.c.bf16 %v618, %v616
    %v745 = vpack.c.bf16 %v619, %v617
    %v746 = vpack.c.bf16 %v622, %v620
    %v747 = vpack.c.bf16 %v623, %v621
    %v748 = vpack.c.bf16 %v626, %v624
    %v749 = vpack.c.bf16 %v627, %v625
    %v750 = vpack.c.bf16 %v630, %v628
    %v751 = vpack.c.bf16 %v631, %v629
    %v752 = vpack.c.bf16 %v634, %v632
    %v753 = vpack.c.bf16 %v635, %v633
    %v754 = vpack.c.bf16 %v638, %v636
    %v755 = vpack.c.bf16 %v639, %v637
    %v756 = vpack.c.bf16 %v642, %v640
    %v757 = vpack.c.bf16 %v643, %v641
    %v758 = vpack.c.bf16 %v646, %v644
    %v759 = vpack.c.bf16 %v647, %v645
    %v760 = vpack.c.bf16 %v650, %v648
    %v761 = vpack.c.bf16 %v651, %v649
    %v762 = vpack.c.bf16 %v654, %v652
    %v763 = vpack.c.bf16 %v655, %v653
    %v764 = vpack.c.bf16 %v658, %v656
    %v765 = vpack.c.bf16 %v659, %v657
    %v766 = vpack.c.bf16 %v662, %v660
    %v767 = vpack.c.bf16 %v663, %v661
    %v768 = vpack.c.bf16 %v666, %v664
    %v769 = vpack.c.bf16 %v667, %v665
    %v770 = vpack.c.bf16 %v670, %v668
    %v771 = vpack.c.bf16 %v671, %v669
    %v772 = vpack.c.bf16 %v674, %v672
    %v773 = vpack.c.bf16 %v675, %v673
    %v774 = vpack.c.bf16 %v678, %v676
    %v775 = vpack.c.bf16 %v679, %v677
    %v776 = vpack.c.bf16 %v682, %v680
    %v777 = vpack.c.bf16 %v683, %v681
    %v778 = vpack.c.bf16 %v686, %v684
    %v779 = vpack.c.bf16 %v687, %v685
    %v780 = vpack.c.bf16 %v690, %v688
    %v781 = vpack.c.bf16 %v691, %v689
    %v782 = vpack.c.bf16 %v694, %v692
    %v783 = vpack.c.bf16 %v695, %v693
    %v784 = vpack.c.bf16 %v698, %v696
    %v785 = vpack.c.bf16 %v699, %v697
    %v786 = vpack.c.bf16 %v702, %v700
    %v787 = vpack.c.bf16 %v703, %v701
    %v788 = vpack.c.bf16 %v706, %v704
    %v789 = vpack.c.bf16 %v707, %v705
    %v790 = vpack.c.bf16 %v710, %v708
    %v791 = vpack.c.bf16 %v711, %v709
    %v792 = vpack.c.bf16 %v714, %v712
    %v793 = vpack.c.bf16 %v715, %v713
    %v794 = vpack.c.bf16 %v718, %v716
    %v795 = vpack.c.bf16 %v719, %v717
    %v796 = vpack.c.bf16 %v722, %v720
    %v797 = vpack.c.bf16 %v723, %v721
    %v798 = vpack.c.bf16 %v726, %v724
    %v799 = vpack.c.bf16 %v727, %v725
    %v800 = vpack.c.bf16 %v730, %v728
    %v801 = vpack.c.bf16 %v731, %v729
    %v802 = vpack.c.bf16 %v734, %v732
    %v803 = vpack.c.bf16 %v735, %v733
    %v804 = vpack.c.bf16 %v738, %v736
    %v805 = vpack.c.bf16 %v739, %v737
    %v806 = vpack.c.bf16 %v742, %v740
    %v807 = vpack.c.bf16 %v743, %v741
    %v808 = vld [vmem:[%s3] sm:$0xff]
    %v809 = vld [vmem:[%s3 + $0x8] sm:$0xff]
    %v810 = vld [vmem:[%s3 + $0x10] sm:$0xff]
    %v811 = vld [vmem:[%s3 + $0x18] sm:$0xff]
    %v812 = vld [vmem:[%s3 + $0x20] sm:$0xff]
    %v813 = vld [vmem:[%s3 + $0x28] sm:$0xff]
    %v814 = vld [vmem:[%s3 + $0x30] sm:$0xff]
    %v815 = vld [vmem:[%s3 + $0x38] sm:$0xff]
    %v816 = vld [vmem:[%s3 + $0x40] sm:$0xff]
    %v817 = vld [vmem:[%s3 + $0x48] sm:$0xff]
    %v818 = vld [vmem:[%s3 + $0x50] sm:$0xff]
    %v819 = vld [vmem:[%s3 + $0x58] sm:$0xff]
    %v820 = vld [vmem:[%s3 + $0x60] sm:$0xff]
    %v821 = vld [vmem:[%s3 + $0x68] sm:$0xff]
    %v822 = vld [vmem:[%s3 + $0x70] sm:$0xff]
    %v823 = vld [vmem:[%s3 + $0x78] sm:$0xff]
    %v824 = vld [vmem:[%s3 + $0x80] sm:$0xff]
    %v825 = vld [vmem:[%s3 + $0x88] sm:$0xff]
    %v826 = vld [vmem:[%s3 + $0x90] sm:$0xff]
    %v827 = vld [vmem:[%s3 + $0x98] sm:$0xff]
    %v828 = vld [vmem:[%s3 + $0xa0] sm:$0xff]
    %v829 = vld [vmem:[%s3 + $0xa8] sm:$0xff]
    %v830 = vld [vmem:[%s3 + $0xb0] sm:$0xff]
    %v831 = vld [vmem:[%s3 + $0xb8] sm:$0xff]
    %v832 = vld [vmem:[%s3 + $0xc0] sm:$0xff]
    %v833 = vld [vmem:[%s3 + $0xc8] sm:$0xff]
    %v834 = vld [vmem:[%s3 + $0xd0] sm:$0xff]
    %v835 = vld [vmem:[%s3 + $0xd8] sm:$0xff]
    %v836 = vld [vmem:[%s3 + $0xe0] sm:$0xff]
    %v837 = vld [vmem:[%s3 + $0xe8] sm:$0xff]
    %v838 = vld [vmem:[%s3 + $0xf0] sm:$0xff]
    %v839 = vld [vmem:[%s3 + $0xf8] sm:$0xff]
    %v840 = vld [vmem:[%s4] sm:$0x3]
    %v842 = vlaneseq
    %v843 = vshrl.u32 %v842, 7
    %v844 = vsub.s32 0, %v843
    %v845 = vrot.slane %v840, %v844
    %v846 = vlaneseq
    %v847 = vshrl.u32 %v846, 7
    %v848 = vsub.s32 1, %v847
    %v849 = vrot.slane %v840, %v848
    %v884 = vunpack.c.l.b16 %v808
    %v885 = vunpack.c.h.b16 %v808
    %v886 = vunpack.c.l.b16 %v809
    %v887 = vunpack.c.h.b16 %v809
    %v888 = vunpack.c.l.b16 %v810
    %v889 = vunpack.c.h.b16 %v810
    %v890 = vunpack.c.l.b16 %v811
    %v891 = vunpack.c.h.b16 %v811
    %v892 = vunpack.c.l.b16 %v812
    %v893 = vunpack.c.h.b16 %v812
    %v894 = vunpack.c.l.b16 %v813
    %v895 = vunpack.c.h.b16 %v813
    %v896 = vunpack.c.l.b16 %v814
    %v897 = vunpack.c.h.b16 %v814
    %v898 = vunpack.c.l.b16 %v815
    %v899 = vunpack.c.h.b16 %v815
    %v900 = vunpack.c.l.b16 %v816
    %v901 = vunpack.c.h.b16 %v816
    %v902 = vunpack.c.l.b16 %v817
    %v903 = vunpack.c.h.b16 %v817
    %v904 = vunpack.c.l.b16 %v818
    %v905 = vunpack.c.h.b16 %v818
    %v906 = vunpack.c.l.b16 %v819
    %v907 = vunpack.c.h.b16 %v819
    %v908 = vunpack.c.l.b16 %v820
    %v909 = vunpack.c.h.b16 %v820
    %v910 = vunpack.c.l.b16 %v821
    %v911 = vunpack.c.h.b16 %v821
    %v912 = vunpack.c.l.b16 %v822
    %v913 = vunpack.c.h.b16 %v822
    %v914 = vunpack.c.l.b16 %v823
    %v915 = vunpack.c.h.b16 %v823
    %v916 = vunpack.c.l.b16 %v824
    %v917 = vunpack.c.h.b16 %v824
    %v918 = vunpack.c.l.b16 %v825
    %v919 = vunpack.c.h.b16 %v825
    %v920 = vunpack.c.l.b16 %v826
    %v921 = vunpack.c.h.b16 %v826
    %v922 = vunpack.c.l.b16 %v827
    %v923 = vunpack.c.h.b16 %v827
    %v924 = vunpack.c.l.b16 %v828
    %v925 = vunpack.c.h.b16 %v828
    %v926 = vunpack.c.l.b16 %v829
    %v927 = vunpack.c.h.b16 %v829
    %v928 = vunpack.c.l.b16 %v830
    %v929 = vunpack.c.h.b16 %v830
    %v930 = vunpack.c.l.b16 %v831
    %v931 = vunpack.c.h.b16 %v831
    %v932 = vunpack.c.l.b16 %v832
    %v933 = vunpack.c.h.b16 %v832
    %v934 = vunpack.c.l.b16 %v833
    %v935 = vunpack.c.h.b16 %v833
    %v936 = vunpack.c.l.b16 %v834
    %v937 = vunpack.c.h.b16 %v834
    %v938 = vunpack.c.l.b16 %v835
    %v939 = vunpack.c.h.b16 %v835
    %v940 = vunpack.c.l.b16 %v836
    %v941 = vunpack.c.h.b16 %v836
    %v942 = vunpack.c.l.b16 %v837
    %v943 = vunpack.c.h.b16 %v837
    %v944 = vunpack.c.l.b16 %v838
    %v945 = vunpack.c.h.b16 %v838
    %v946 = vunpack.c.l.b16 %v839
    %v947 = vunpack.c.h.b16 %v839
    %v948 = vpack.c.b16 %v886, %v884
    %v949 = vpack.c.b16 %v887, %v885
    %v950 = vpack.c.b16 %v890, %v888
    %v951 = vpack.c.b16 %v891, %v889
    %v952 = vpack.c.b16 %v894, %v892
    %v953 = vpack.c.b16 %v895, %v893
    %v954 = vpack.c.b16 %v898, %v896
    %v955 = vpack.c.b16 %v899, %v897
    %v956 = vpack.c.b16 %v902, %v900
    %v957 = vpack.c.b16 %v903, %v901
    %v958 = vpack.c.b16 %v906, %v904
    %v959 = vpack.c.b16 %v907, %v905
    %v960 = vpack.c.b16 %v910, %v908
    %v961 = vpack.c.b16 %v911, %v909
    %v962 = vpack.c.b16 %v914, %v912
    %v963 = vpack.c.b16 %v915, %v913
    %v964 = vpack.c.b16 %v918, %v916
    %v965 = vpack.c.b16 %v919, %v917
    %v966 = vpack.c.b16 %v922, %v920
    %v967 = vpack.c.b16 %v923, %v921
    %v968 = vpack.c.b16 %v926, %v924
    %v969 = vpack.c.b16 %v927, %v925
    %v970 = vpack.c.b16 %v930, %v928
    %v971 = vpack.c.b16 %v931, %v929
    %v972 = vpack.c.b16 %v934, %v932
    %v973 = vpack.c.b16 %v935, %v933
    %v974 = vpack.c.b16 %v938, %v936
    %v975 = vpack.c.b16 %v939, %v937
    %v976 = vpack.c.b16 %v942, %v940
    %v977 = vpack.c.b16 %v943, %v941
    %v978 = vpack.c.b16 %v946, %v944
    %v979 = vpack.c.b16 %v947, %v945
    %1012 = vmatprep.subr.bf16.mxu0 %v963
    %1013 = vmatpush1.bf16.msra.mxu0 %v962
    %1014 = vmatprep.subr.bf16.mxu0 %v961
    %1015 = vmatpush1.bf16.msra.mxu0 %v960
    %1016 = vmatprep.subr.bf16.mxu0 %v959
    %1017 = vmatpush1.bf16.msra.mxu0 %v958
    %1018 = vmatprep.subr.bf16.mxu0 %v957
    %1019 = vmatpush1.bf16.msra.mxu0 %v956
    %1020 = vmatprep.subr.bf16.mxu0 %v955
    %1021 = vmatpush1.bf16.msra.mxu0 %v954
    %1022 = vmatprep.subr.bf16.mxu0 %v953
    %1023 = vmatpush1.bf16.msra.mxu0 %v952
    %1024 = vmatprep.subr.bf16.mxu0 %v951
    %1025 = vmatpush1.bf16.msra.mxu0 %v950
    %1026 = vmatprep.subr.bf16.mxu0 %v949
    %1027 = vmatpush1.bf16.msra.mxu0 %v948
    %1028 = vmatprep.subr.bf16.mxu0 %v979
    %1029 = vmatpush2.bf16.msra.mxu0 %v978
    %1030 = vmatprep.subr.bf16.mxu0 %v977
    %1031 = vmatpush2.bf16.msra.mxu0 %v976
    %1032 = vmatprep.subr.bf16.mxu0 %v975
    %1033 = vmatpush2.bf16.msra.mxu0 %v974
    %1034 = vmatprep.subr.bf16.mxu0 %v973
    %1035 = vmatpush2.bf16.msra.mxu0 %v972
    %1036 = vmatprep.subr.bf16.mxu0 %v971
    %1037 = vmatpush2.bf16.msra.mxu0 %v970
    %1038 = vmatprep.subr.bf16.mxu0 %v969
    %1039 = vmatpush2.bf16.msra.mxu0 %v968
    %1040 = vmatprep.subr.bf16.mxu0 %v967
    %1041 = vmatpush2.bf16.msra.mxu0 %v966
    %1042 = vmatprep.subr.bf16.mxu0 %v965
    %1043 = vmatpush2.bf16.msra.mxu0 %v964
    %1044 = vmatprep.mubr.bf16.mxu0 %v745
    %1045 = vmatmul.mubr.bf16.gmra.mxu0 %v744
    %v1046 = vpop.f32.mrf.mxu0
    %v1047 = vadd.f32 %v845, %v1046
    %v1048 = vpop.f32.mrf.mxu0
    %v1049 = vadd.f32 %v849, %v1048
    %v1050 = vpop.f32.mrf.mxu0
    %v1051 = vadd.f32 %v845, %v1050
    %v1052 = vpop.f32.mrf.mxu0
    %v1053 = vadd.f32 %v849, %v1052
    %1054 = vmatprep.mubr.bf16.mxu0 %v747
    %1055 = vmatmul.mubr.bf16.gmra.mxu0 %v746
    %v1056 = vpop.f32.mrf.mxu0
    %v1057 = vadd.f32 %v845, %v1056
    %v1058 = vpop.f32.mrf.mxu0
    %v1059 = vadd.f32 %v849, %v1058
    %v1060 = vpop.f32.mrf.mxu0
    %v1061 = vadd.f32 %v845, %v1060
    %v1062 = vpop.f32.mrf.mxu0
    %v1063 = vadd.f32 %v849, %v1062
    %1064 = vmatprep.mubr.bf16.mxu0 %v749
    %1065 = vmatmul.mubr.bf16.gmra.mxu0 %v748
    %v1066 = vpop.f32.mrf.mxu0
    %v1067 = vadd.f32 %v845, %v1066
    %v1068 = vpop.f32.mrf.mxu0
    %v1069 = vadd.f32 %v849, %v1068
    %v1070 = vpop.f32.mrf.mxu0
    %v1071 = vadd.f32 %v845, %v1070
    %v1072 = vpop.f32.mrf.mxu0
    %v1073 = vadd.f32 %v849, %v1072
    %1074 = vmatprep.mubr.bf16.mxu0 %v751
    %1075 = vmatmul.mubr.bf16.gmra.mxu0 %v750
    %v1076 = vpop.f32.mrf.mxu0
    %v1077 = vadd.f32 %v845, %v1076
    %v1078 = vpop.f32.mrf.mxu0
    %v1079 = vadd.f32 %v849, %v1078
    %v1080 = vpop.f32.mrf.mxu0
    %v1081 = vadd.f32 %v845, %v1080
    %v1082 = vpop.f32.mrf.mxu0
    %v1083 = vadd.f32 %v849, %v1082
    %1084 = vmatprep.mubr.bf16.mxu0 %v753
    %1085 = vmatmul.mubr.bf16.gmra.mxu0 %v752
    %v1086 = vpop.f32.mrf.mxu0
    %v1087 = vadd.f32 %v845, %v1086
    %v1088 = vpop.f32.mrf.mxu0
    %v1089 = vadd.f32 %v849, %v1088
    %v1090 = vpop.f32.mrf.mxu0
    %v1091 = vadd.f32 %v845, %v1090
    %v1092 = vpop.f32.mrf.mxu0
    %v1093 = vadd.f32 %v849, %v1092
    %1094 = vmatprep.mubr.bf16.mxu0 %v755
    %1095 = vmatmul.mubr.bf16.gmra.mxu0 %v754
    %v1096 = vpop.f32.mrf.mxu0
    %v1097 = vadd.f32 %v845, %v1096
    %v1098 = vpop.f32.mrf.mxu0
    %v1099 = vadd.f32 %v849, %v1098
    %v1100 = vpop.f32.mrf.mxu0
    %v1101 = vadd.f32 %v845, %v1100
    %v1102 = vpop.f32.mrf.mxu0
    %v1103 = vadd.f32 %v849, %v1102
    %1104 = vmatprep.mubr.bf16.mxu0 %v757
    %1105 = vmatmul.mubr.bf16.gmra.mxu0 %v756
    %v1106 = vpop.f32.mrf.mxu0
    %v1107 = vadd.f32 %v845, %v1106
    %v1108 = vpop.f32.mrf.mxu0
    %v1109 = vadd.f32 %v849, %v1108
    %v1110 = vpop.f32.mrf.mxu0
    %v1111 = vadd.f32 %v845, %v1110
    %v1112 = vpop.f32.mrf.mxu0
    %v1113 = vadd.f32 %v849, %v1112
    %1114 = vmatprep.mubr.bf16.mxu0 %v759
    %1115 = vmatmul.mubr.bf16.gmra.mxu0 %v758
    %v1116 = vpop.f32.mrf.mxu0
    %v1117 = vadd.f32 %v845, %v1116
    %v1118 = vpop.f32.mrf.mxu0
    %v1119 = vadd.f32 %v849, %v1118
    %v1120 = vpop.f32.mrf.mxu0
    %v1121 = vadd.f32 %v845, %v1120
    %v1122 = vpop.f32.mrf.mxu0
    %v1123 = vadd.f32 %v849, %v1122
    %1124 = vmatprep.mubr.bf16.mxu0 %v761
    %1125 = vmatmul.mubr.bf16.gmra.mxu0 %v760
    %v1126 = vpop.f32.mrf.mxu0
    %v1127 = vadd.f32 %v845, %v1126
    %v1128 = vpop.f32.mrf.mxu0
    %v1129 = vadd.f32 %v849, %v1128
    %v1130 = vpop.f32.mrf.mxu0
    %v1131 = vadd.f32 %v845, %v1130
    %v1132 = vpop.f32.mrf.mxu0
    %v1133 = vadd.f32 %v849, %v1132
    %1134 = vmatprep.mubr.bf16.mxu0 %v763
    %1135 = vmatmul.mubr.bf16.gmra.mxu0 %v762
    %v1136 = vpop.f32.mrf.mxu0
    %v1137 = vadd.f32 %v845, %v1136
    %v1138 = vpop.f32.mrf.mxu0
    %v1139 = vadd.f32 %v849, %v1138
    %v1140 = vpop.f32.mrf.mxu0
    %v1141 = vadd.f32 %v845, %v1140
    %v1142 = vpop.f32.mrf.mxu0
    %v1143 = vadd.f32 %v849, %v1142
    %1144 = vmatprep.mubr.bf16.mxu0 %v765
    %1145 = vmatmul.mubr.bf16.gmra.mxu0 %v764
    %v1146 = vpop.f32.mrf.mxu0
    %v1147 = vadd.f32 %v845, %v1146
    %v1148 = vpop.f32.mrf.mxu0
    %v1149 = vadd.f32 %v849, %v1148
    %v1150 = vpop.f32.mrf.mxu0
    %v1151 = vadd.f32 %v845, %v1150
    %v1152 = vpop.f32.mrf.mxu0
    %v1153 = vadd.f32 %v849, %v1152
    %1154 = vmatprep.mubr.bf16.mxu0 %v767
    %1155 = vmatmul.mubr.bf16.gmra.mxu0 %v766
    %v1156 = vpop.f32.mrf.mxu0
    %v1157 = vadd.f32 %v845, %v1156
    %v1158 = vpop.f32.mrf.mxu0
    %v1159 = vadd.f32 %v849, %v1158
    %v1160 = vpop.f32.mrf.mxu0
    %v1161 = vadd.f32 %v845, %v1160
    %v1162 = vpop.f32.mrf.mxu0
    %v1163 = vadd.f32 %v849, %v1162
    %1164 = vmatprep.mubr.bf16.mxu0 %v769
    %1165 = vmatmul.mubr.bf16.gmra.mxu0 %v768
    %v1166 = vpop.f32.mrf.mxu0
    %v1167 = vadd.f32 %v845, %v1166
    %v1168 = vpop.f32.mrf.mxu0
    %v1169 = vadd.f32 %v849, %v1168
    %v1170 = vpop.f32.mrf.mxu0
    %v1171 = vadd.f32 %v845, %v1170
    %v1172 = vpop.f32.mrf.mxu0
    %v1173 = vadd.f32 %v849, %v1172
    %1174 = vmatprep.mubr.bf16.mxu0 %v771
    %1175 = vmatmul.mubr.bf16.gmra.mxu0 %v770
    %v1176 = vpop.f32.mrf.mxu0
    %v1177 = vadd.f32 %v845, %v1176
    %v1178 = vpop.f32.mrf.mxu0
    %v1179 = vadd.f32 %v849, %v1178
    %v1180 = vpop.f32.mrf.mxu0
    %v1181 = vadd.f32 %v845, %v1180
    %v1182 = vpop.f32.mrf.mxu0
    %v1183 = vadd.f32 %v849, %v1182
    %1184 = vmatprep.mubr.bf16.mxu0 %v773
    %1185 = vmatmul.mubr.bf16.gmra.mxu0 %v772
    %v1186 = vpop.f32.mrf.mxu0
    %v1187 = vadd.f32 %v845, %v1186
    %v1188 = vpop.f32.mrf.mxu0
    %v1189 = vadd.f32 %v849, %v1188
    %v1190 = vpop.f32.mrf.mxu0
    %v1191 = vadd.f32 %v845, %v1190
    %v1192 = vpop.f32.mrf.mxu0
    %v1193 = vadd.f32 %v849, %v1192
    %1194 = vmatprep.mubr.bf16.mxu0 %v775
    %1195 = vmatmul.mubr.bf16.gmra.mxu0 %v774
    %v1196 = vpop.f32.mrf.mxu0
    %v1197 = vadd.f32 %v845, %v1196
    %v1198 = vpop.f32.mrf.mxu0
    %v1199 = vadd.f32 %v849, %v1198
    %v1200 = vpop.f32.mrf.mxu0
    %v1201 = vadd.f32 %v845, %v1200
    %v1202 = vpop.f32.mrf.mxu0
    %v1203 = vadd.f32 %v849, %v1202
    %1204 = vmatprep.mubr.bf16.mxu0 %v777
    %1205 = vmatmul.mubr.bf16.gmra.mxu0 %v776
    %v1206 = vpop.f32.mrf.mxu0
    %v1207 = vadd.f32 %v845, %v1206
    %v1208 = vpop.f32.mrf.mxu0
    %v1209 = vadd.f32 %v849, %v1208
    %v1210 = vpop.f32.mrf.mxu0
    %v1211 = vadd.f32 %v845, %v1210
    %v1212 = vpop.f32.mrf.mxu0
    %v1213 = vadd.f32 %v849, %v1212
    %1214 = vmatprep.mubr.bf16.mxu0 %v779
    %1215 = vmatmul.mubr.bf16.gmra.mxu0 %v778
    %v1216 = vpop.f32.mrf.mxu0
    %v1217 = vadd.f32 %v845, %v1216
    %v1218 = vpop.f32.mrf.mxu0
    %v1219 = vadd.f32 %v849, %v1218
    %v1220 = vpop.f32.mrf.mxu0
    %v1221 = vadd.f32 %v845, %v1220
    %v1222 = vpop.f32.mrf.mxu0
    %v1223 = vadd.f32 %v849, %v1222
    %1224 = vmatprep.mubr.bf16.mxu0 %v781
    %1225 = vmatmul.mubr.bf16.gmra.mxu0 %v780
    %v1226 = vpop.f32.mrf.mxu0
    %v1227 = vadd.f32 %v845, %v1226
    %v1228 = vpop.f32.mrf.mxu0
    %v1229 = vadd.f32 %v849, %v1228
    %v1230 = vpop.f32.mrf.mxu0
    %v1231 = vadd.f32 %v845, %v1230
    %v1232 = vpop.f32.mrf.mxu0
    %v1233 = vadd.f32 %v849, %v1232
    %1234 = vmatprep.mubr.bf16.mxu0 %v783
    %1235 = vmatmul.mubr.bf16.gmra.mxu0 %v782
    %v1236 = vpop.f32.mrf.mxu0
    %v1237 = vadd.f32 %v845, %v1236
    %v1238 = vpop.f32.mrf.mxu0
    %v1239 = vadd.f32 %v849, %v1238
    %v1240 = vpop.f32.mrf.mxu0
    %v1241 = vadd.f32 %v845, %v1240
    %v1242 = vpop.f32.mrf.mxu0
    %v1243 = vadd.f32 %v849, %v1242
    %1244 = vmatprep.mubr.bf16.mxu0 %v785
    %1245 = vmatmul.mubr.bf16.gmra.mxu0 %v784
    %v1246 = vpop.f32.mrf.mxu0
    %v1247 = vadd.f32 %v845, %v1246
    %v1248 = vpop.f32.mrf.mxu0
    %v1249 = vadd.f32 %v849, %v1248
    %v1250 = vpop.f32.mrf.mxu0
    %v1251 = vadd.f32 %v845, %v1250
    %v1252 = vpop.f32.mrf.mxu0
    %v1253 = vadd.f32 %v849, %v1252
    %1254 = vmatprep.mubr.bf16.mxu0 %v787
    %1255 = vmatmul.mubr.bf16.gmra.mxu0 %v786
    %v1256 = vpop.f32.mrf.mxu0
    %v1257 = vadd.f32 %v845, %v1256
    %v1258 = vpop.f32.mrf.mxu0
    %v1259 = vadd.f32 %v849, %v1258
    %v1260 = vpop.f32.mrf.mxu0
    %v1261 = vadd.f32 %v845, %v1260
    %v1262 = vpop.f32.mrf.mxu0
    %v1263 = vadd.f32 %v849, %v1262
    %1264 = vmatprep.mubr.bf16.mxu0 %v789
    %1265 = vmatmul.mubr.bf16.gmra.mxu0 %v788
    %v1266 = vpop.f32.mrf.mxu0
    %v1267 = vadd.f32 %v845, %v1266
    %v1268 = vpop.f32.mrf.mxu0
    %v1269 = vadd.f32 %v849, %v1268
    %v1270 = vpop.f32.mrf.mxu0
    %v1271 = vadd.f32 %v845, %v1270
    %v1272 = vpop.f32.mrf.mxu0
    %v1273 = vadd.f32 %v849, %v1272
    %1274 = vmatprep.mubr.bf16.mxu0 %v791
    %1275 = vmatmul.mubr.bf16.gmra.mxu0 %v790
    %v1276 = vpop.f32.mrf.mxu0
    %v1277 = vadd.f32 %v845, %v1276
    %v1278 = vpop.f32.mrf.mxu0
    %v1279 = vadd.f32 %v849, %v1278
    %v1280 = vpop.f32.mrf.mxu0
    %v1281 = vadd.f32 %v845, %v1280
    %v1282 = vpop.f32.mrf.mxu0
    %v1283 = vadd.f32 %v849, %v1282
    %1284 = vmatprep.mubr.bf16.mxu0 %v793
    %1285 = vmatmul.mubr.bf16.gmra.mxu0 %v792
    %v1286 = vpop.f32.mrf.mxu0
    %v1287 = vadd.f32 %v845, %v1286
    %v1288 = vpop.f32.mrf.mxu0
    %v1289 = vadd.f32 %v849, %v1288
    %v1290 = vpop.f32.mrf.mxu0
    %v1291 = vadd.f32 %v845, %v1290
    %v1292 = vpop.f32.mrf.mxu0
    %v1293 = vadd.f32 %v849, %v1292
    %1294 = vmatprep.mubr.bf16.mxu0 %v795
    %1295 = vmatmul.mubr.bf16.gmra.mxu0 %v794
    %v1296 = vpop.f32.mrf.mxu0
    %v1297 = vadd.f32 %v845, %v1296
    %v1298 = vpop.f32.mrf.mxu0
    %v1299 = vadd.f32 %v849, %v1298
    %v1300 = vpop.f32.mrf.mxu0
    %v1301 = vadd.f32 %v845, %v1300
    %v1302 = vpop.f32.mrf.mxu0
    %v1303 = vadd.f32 %v849, %v1302
    %1304 = vmatprep.mubr.bf16.mxu0 %v797
    %1305 = vmatmul.mubr.bf16.gmra.mxu0 %v796
    %v1306 = vpop.f32.mrf.mxu0
    %v1307 = vadd.f32 %v845, %v1306
    %v1308 = vpop.f32.mrf.mxu0
    %v1309 = vadd.f32 %v849, %v1308
    %v1310 = vpop.f32.mrf.mxu0
    %v1311 = vadd.f32 %v845, %v1310
    %v1312 = vpop.f32.mrf.mxu0
    %v1313 = vadd.f32 %v849, %v1312
    %1314 = vmatprep.mubr.bf16.mxu0 %v799
    %1315 = vmatmul.mubr.bf16.gmra.mxu0 %v798
    %v1316 = vpop.f32.mrf.mxu0
    %v1317 = vadd.f32 %v845, %v1316
    %v1318 = vpop.f32.mrf.mxu0
    %v1319 = vadd.f32 %v849, %v1318
    %v1320 = vpop.f32.mrf.mxu0
    %v1321 = vadd.f32 %v845, %v1320
    %v1322 = vpop.f32.mrf.mxu0
    %v1323 = vadd.f32 %v849, %v1322
    %1324 = vmatprep.mubr.bf16.mxu0 %v801
    %1325 = vmatmul.mubr.bf16.gmra.mxu0 %v800
    %v1326 = vpop.f32.mrf.mxu0
    %v1327 = vadd.f32 %v845, %v1326
    %v1328 = vpop.f32.mrf.mxu0
    %v1329 = vadd.f32 %v849, %v1328
    %v1330 = vpop.f32.mrf.mxu0
    %v1331 = vadd.f32 %v845, %v1330
    %v1332 = vpop.f32.mrf.mxu0
    %v1333 = vadd.f32 %v849, %v1332
    %1334 = vmatprep.mubr.bf16.mxu0 %v803
    %1335 = vmatmul.mubr.bf16.gmra.mxu0 %v802
    %v1336 = vpop.f32.mrf.mxu0
    %v1337 = vadd.f32 %v845, %v1336
    %v1338 = vpop.f32.mrf.mxu0
    %v1339 = vadd.f32 %v849, %v1338
    %v1340 = vpop.f32.mrf.mxu0
    %v1341 = vadd.f32 %v845, %v1340
    %v1342 = vpop.f32.mrf.mxu0
    %v1343 = vadd.f32 %v849, %v1342
    %1344 = vmatprep.mubr.bf16.mxu0 %v805
    %1345 = vmatmul.mubr.bf16.gmra.mxu0 %v804
    %v1346 = vpop.f32.mrf.mxu0
    %v1347 = vadd.f32 %v845, %v1346
    %v1348 = vpop.f32.mrf.mxu0
    %v1349 = vadd.f32 %v849, %v1348
    %v1350 = vpop.f32.mrf.mxu0
    %v1351 = vadd.f32 %v845, %v1350
    %v1352 = vpop.f32.mrf.mxu0
    %v1353 = vadd.f32 %v849, %v1352
    %1354 = vmatprep.mubr.bf16.mxu0 %v807
    %1355 = vmatmul.mubr.bf16.gmra.mxu0 %v806
    %v1356 = vpop.f32.mrf.mxu0
    %v1357 = vadd.f32 %v845, %v1356
    %v1358 = vpop.f32.mrf.mxu0
    %v1359 = vadd.f32 %v849, %v1358
    %v1360 = vpop.f32.mrf.mxu0
    %v1361 = vadd.f32 %v845, %v1360
    %v1362 = vpop.f32.mrf.mxu0
    %v1363 = vadd.f32 %v849, %v1362
    %1364 = vdwg.mxu0
    %v1365 = vtanh.pop %v1047
    %v1366 = vtanh.pop %v1049
    %v1367 = vtanh.pop %v1051
    %v1368 = vtanh.pop %v1053
    %v1369 = vtanh.pop %v1057
    %v1370 = vtanh.pop %v1059
    %v1371 = vtanh.pop %v1061
    %v1372 = vtanh.pop %v1063
    %v1373 = vtanh.pop %v1067
    %v1374 = vtanh.pop %v1069
    %v1375 = vtanh.pop %v1071
    %v1376 = vtanh.pop %v1073
    %v1377 = vtanh.pop %v1077
    %v1378 = vtanh.pop %v1079
    %v1379 = vtanh.pop %v1081
    %v1380 = vtanh.pop %v1083
    %v1381 = vtanh.pop %v1087
    %v1382 = vtanh.pop %v1089
    %v1383 = vtanh.pop %v1091
    %v1384 = vtanh.pop %v1093
    %v1385 = vtanh.pop %v1097
    %v1386 = vtanh.pop %v1099
    %v1387 = vtanh.pop %v1101
    %v1388 = vtanh.pop %v1103
    %v1389 = vtanh.pop %v1107
    %v1390 = vtanh.pop %v1109
    %v1391 = vtanh.pop %v1111
    %v1392 = vtanh.pop %v1113
    %v1393 = vtanh.pop %v1117
    %v1394 = vtanh.pop %v1119
    %v1395 = vtanh.pop %v1121
    %v1396 = vtanh.pop %v1123
    %v1397 = vtanh.pop %v1127
    %v1398 = vtanh.pop %v1129
    %v1399 = vtanh.pop %v1131
    %v1400 = vtanh.pop %v1133
    %v1401 = vtanh.pop %v1137
    %v1402 = vtanh.pop %v1139
    %v1403 = vtanh.pop %v1141
    %v1404 = vtanh.pop %v1143
    %v1405 = vtanh.pop %v1147
    %v1406 = vtanh.pop %v1149
    %v1407 = vtanh.pop %v1151
    %v1408 = vtanh.pop %v1153
    %v1409 = vtanh.pop %v1157
    %v1410 = vtanh.pop %v1159
    %v1411 = vtanh.pop %v1161
    %v1412 = vtanh.pop %v1163
    %v1413 = vtanh.pop %v1167
    %v1414 = vtanh.pop %v1169
    %v1415 = vtanh.pop %v1171
    %v1416 = vtanh.pop %v1173
    %v1417 = vtanh.pop %v1177
    %v1418 = vtanh.pop %v1179
    %v1419 = vtanh.pop %v1181
    %v1420 = vtanh.pop %v1183
    %v1421 = vtanh.pop %v1187
    %v1422 = vtanh.pop %v1189
    %v1423 = vtanh.pop %v1191
    %v1424 = vtanh.pop %v1193
    %v1425 = vtanh.pop %v1197
    %v1426 = vtanh.pop %v1199
    %v1427 = vtanh.pop %v1201
    %v1428 = vtanh.pop %v1203
    %v1429 = vtanh.pop %v1207
    %v1430 = vtanh.pop %v1209
    %v1431 = vtanh.pop %v1211
    %v1432 = vtanh.pop %v1213
    %v1433 = vtanh.pop %v1217
    %v1434 = vtanh.pop %v1219
    %v1435 = vtanh.pop %v1221
    %v1436 = vtanh.pop %v1223
    %v1437 = vtanh.pop %v1227
    %v1438 = vtanh.pop %v1229
    %v1439 = vtanh.pop %v1231
    %v1440 = vtanh.pop %v1233
    %v1441 = vtanh.pop %v1237
    %v1442 = vtanh.pop %v1239
    %v1443 = vtanh.pop %v1241
    %v1444 = vtanh.pop %v1243
    %v1445 = vtanh.pop %v1247
    %v1446 = vtanh.pop %v1249
    %v1447 = vtanh.pop %v1251
    %v1448 = vtanh.pop %v1253
    %v1449 = vtanh.pop %v1257
    %v1450 = vtanh.pop %v1259
    %v1451 = vtanh.pop %v1261
    %v1452 = vtanh.pop %v1263
    %v1453 = vtanh.pop %v1267
    %v1454 = vtanh.pop %v1269
    %v1455 = vtanh.pop %v1271
    %v1456 = vtanh.pop %v1273
    %v1457 = vtanh.pop %v1277
    %v1458 = vtanh.pop %v1279
    %v1459 = vtanh.pop %v1281
    %v1460 = vtanh.pop %v1283
    %v1461 = vtanh.pop %v1287
    %v1462 = vtanh.pop %v1289
    %v1463 = vtanh.pop %v1291
    %v1464 = vtanh.pop %v1293
    %v1465 = vtanh.pop %v1297
    %v1466 = vtanh.pop %v1299
    %v1467 = vtanh.pop %v1301
    %v1468 = vtanh.pop %v1303
    %v1469 = vtanh.pop %v1307
    %v1470 = vtanh.pop %v1309
    %v1471 = vtanh.pop %v1311
    %v1472 = vtanh.pop %v1313
    %v1473 = vtanh.pop %v1317
    %v1474 = vtanh.pop %v1319
    %v1475 = vtanh.pop %v1321
    %v1476 = vtanh.pop %v1323
    %v1477 = vtanh.pop %v1327
    %v1478 = vtanh.pop %v1329
    %v1479 = vtanh.pop %v1331
    %v1480 = vtanh.pop %v1333
    %v1481 = vtanh.pop %v1337
    %v1482 = vtanh.pop %v1339
    %v1483 = vtanh.pop %v1341
    %v1484 = vtanh.pop %v1343
    %v1485 = vtanh.pop %v1347
    %v1486 = vtanh.pop %v1349
    %v1487 = vtanh.pop %v1351
    %v1488 = vtanh.pop %v1353
    %v1489 = vtanh.pop %v1357
    %v1490 = vtanh.pop %v1359
    %v1491 = vtanh.pop %v1361
    %v1492 = vtanh.pop %v1363
    %v1493 = vpack.c.bf16 %v1367, %v1365
    %v1494 = vpack.c.bf16 %v1368, %v1366
    %v1495 = vpack.c.bf16 %v1371, %v1369
    %v1496 = vpack.c.bf16 %v1372, %v1370
    %v1497 = vpack.c.bf16 %v1375, %v1373
    %v1498 = vpack.c.bf16 %v1376, %v1374
    %v1499 = vpack.c.bf16 %v1379, %v1377
    %v1500 = vpack.c.bf16 %v1380, %v1378
    %v1501 = vpack.c.bf16 %v1383, %v1381
    %v1502 = vpack.c.bf16 %v1384, %v1382
    %v1503 = vpack.c.bf16 %v1387, %v1385
    %v1504 = vpack.c.bf16 %v1388, %v1386
    %v1505 = vpack.c.bf16 %v1391, %v1389
    %v1506 = vpack.c.bf16 %v1392, %v1390
    %v1507 = vpack.c.bf16 %v1395, %v1393
    %v1508 = vpack.c.bf16 %v1396, %v1394
    %v1509 = vpack.c.bf16 %v1399, %v1397
    %v1510 = vpack.c.bf16 %v1400, %v1398
    %v1511 = vpack.c.bf16 %v1403, %v1401
    %v1512 = vpack.c.bf16 %v1404, %v1402
    %v1513 = vpack.c.bf16 %v1407, %v1405
    %v1514 = vpack.c.bf16 %v1408, %v1406
    %v1515 = vpack.c.bf16 %v1411, %v1409
    %v1516 = vpack.c.bf16 %v1412, %v1410
    %v1517 = vpack.c.bf16 %v1415, %v1413
    %v1518 = vpack.c.bf16 %v1416, %v1414
    %v1519 = vpack.c.bf16 %v1419, %v1417
    %v1520 = vpack.c.bf16 %v1420, %v1418
    %v1521 = vpack.c.bf16 %v1423, %v1421
    %v1522 = vpack.c.bf16 %v1424, %v1422
    %v1523 = vpack.c.bf16 %v1427, %v1425
    %v1524 = vpack.c.bf16 %v1428, %v1426
    %v1525 = vpack.c.bf16 %v1431, %v1429
    %v1526 = vpack.c.bf16 %v1432, %v1430
    %v1527 = vpack.c.bf16 %v1435, %v1433
    %v1528 = vpack.c.bf16 %v1436, %v1434
    %v1529 = vpack.c.bf16 %v1439, %v1437
    %v1530 = vpack.c.bf16 %v1440, %v1438
    %v1531 = vpack.c.bf16 %v1443, %v1441
    %v1532 = vpack.c.bf16 %v1444, %v1442
    %v1533 = vpack.c.bf16 %v1447, %v1445
    %v1534 = vpack.c.bf16 %v1448, %v1446
    %v1535 = vpack.c.bf16 %v1451, %v1449
    %v1536 = vpack.c.bf16 %v1452, %v1450
    %v1537 = vpack.c.bf16 %v1455, %v1453
    %v1538 = vpack.c.bf16 %v1456, %v1454
    %v1539 = vpack.c.bf16 %v1459, %v1457
    %v1540 = vpack.c.bf16 %v1460, %v1458
    %v1541 = vpack.c.bf16 %v1463, %v1461
    %v1542 = vpack.c.bf16 %v1464, %v1462
    %v1543 = vpack.c.bf16 %v1467, %v1465
    %v1544 = vpack.c.bf16 %v1468, %v1466
    %v1545 = vpack.c.bf16 %v1471, %v1469
    %v1546 = vpack.c.bf16 %v1472, %v1470
    %v1547 = vpack.c.bf16 %v1475, %v1473
    %v1548 = vpack.c.bf16 %v1476, %v1474
    %v1549 = vpack.c.bf16 %v1479, %v1477
    %v1550 = vpack.c.bf16 %v1480, %v1478
    %v1551 = vpack.c.bf16 %v1483, %v1481
    %v1552 = vpack.c.bf16 %v1484, %v1482
    %v1553 = vpack.c.bf16 %v1487, %v1485
    %v1554 = vpack.c.bf16 %v1488, %v1486
    %v1555 = vpack.c.bf16 %v1491, %v1489
    %v1556 = vpack.c.bf16 %v1492, %v1490
    %v1557 = vld [vmem:[%s5] sm:$0xf]
    %v1558 = vld [vmem:[%s5 + $0x4] sm:$0xf]
    %v1559 = vld [vmem:[%s5 + $0x8] sm:$0xf]
    %v1560 = vld [vmem:[%s5 + $0xc] sm:$0xf]
    %v1561 = vld [vmem:[%s5 + $0x10] sm:$0xf]
    %v1562 = vld [vmem:[%s5 + $0x14] sm:$0xf]
    %v1563 = vld [vmem:[%s5 + $0x18] sm:$0xf]
    %v1564 = vld [vmem:[%s5 + $0x1c] sm:$0xf]
    %v1565 = vld [vmem:[%s5 + $0x20] sm:$0xf]
    %v1566 = vld [vmem:[%s5 + $0x24] sm:$0xf]
    %v1567 = vld [vmem:[%s5 + $0x28] sm:$0xf]
    %v1568 = vld [vmem:[%s5 + $0x2c] sm:$0xf]
    %v1569 = vld [vmem:[%s5 + $0x30] sm:$0xf]
    %v1570 = vld [vmem:[%s5 + $0x34] sm:$0xf]
    %v1571 = vld [vmem:[%s5 + $0x38] sm:$0xf]
    %v1572 = vld [vmem:[%s5 + $0x3c] sm:$0xf]
    %v1573 = vld [vmem:[%s5 + $0x40] sm:$0xf]
    %v1574 = vld [vmem:[%s5 + $0x44] sm:$0xf]
    %v1575 = vld [vmem:[%s5 + $0x48] sm:$0xf]
    %v1576 = vld [vmem:[%s5 + $0x4c] sm:$0xf]
    %v1577 = vld [vmem:[%s5 + $0x50] sm:$0xf]
    %v1578 = vld [vmem:[%s5 + $0x54] sm:$0xf]
    %v1579 = vld [vmem:[%s5 + $0x58] sm:$0xf]
    %v1580 = vld [vmem:[%s5 + $0x5c] sm:$0xf]
    %v1581 = vld [vmem:[%s5 + $0x60] sm:$0xf]
    %v1582 = vld [vmem:[%s5 + $0x64] sm:$0xf]
    %v1583 = vld [vmem:[%s5 + $0x68] sm:$0xf]
    %v1584 = vld [vmem:[%s5 + $0x6c] sm:$0xf]
    %v1585 = vld [vmem:[%s5 + $0x70] sm:$0xf]
    %v1586 = vld [vmem:[%s5 + $0x74] sm:$0xf]
    %v1587 = vld [vmem:[%s5 + $0x78] sm:$0xf]
    %v1588 = vld [vmem:[%s5 + $0x7c] sm:$0xf]
    %v1589 = vld [vmem:[%s6] sm:$0x1]
    %v1591 = vlaneseq
    %v1592 = vshrl.u32 %v1591, 7
    %v1593 = vsub.s32 0, %v1592
    %v1594 = vrot.slane %v1589, %v1593
    %v1628 = vunpack.c.l.b16 %v1557
    %v1629 = vunpack.c.l.b16 %v1558
    %v1630 = vunpack.c.l.b16 %v1559
    %v1631 = vunpack.c.l.b16 %v1560
    %v1632 = vunpack.c.l.b16 %v1561
    %v1633 = vunpack.c.l.b16 %v1562
    %v1634 = vunpack.c.l.b16 %v1563
    %v1635 = vunpack.c.l.b16 %v1564
    %v1636 = vunpack.c.l.b16 %v1565
    %v1637 = vunpack.c.l.b16 %v1566
    %v1638 = vunpack.c.l.b16 %v1567
    %v1639 = vunpack.c.l.b16 %v1568
    %v1640 = vunpack.c.l.b16 %v1569
    %v1641 = vunpack.c.l.b16 %v1570
    %v1642 = vunpack.c.l.b16 %v1571
    %v1643 = vunpack.c.l.b16 %v1572
    %v1644 = vunpack.c.l.b16 %v1573
    %v1645 = vunpack.c.l.b16 %v1574
    %v1646 = vunpack.c.l.b16 %v1575
    %v1647 = vunpack.c.l.b16 %v1576
    %v1648 = vunpack.c.l.b16 %v1577
    %v1649 = vunpack.c.l.b16 %v1578
    %v1650 = vunpack.c.l.b16 %v1579
    %v1651 = vunpack.c.l.b16 %v1580
    %v1652 = vunpack.c.l.b16 %v1581
    %v1653 = vunpack.c.l.b16 %v1582
    %v1654 = vunpack.c.l.b16 %v1583
    %v1655 = vunpack.c.l.b16 %v1584
    %v1656 = vunpack.c.l.b16 %v1585
    %v1657 = vunpack.c.l.b16 %v1586
    %v1658 = vunpack.c.l.b16 %v1587
    %v1659 = vunpack.c.l.b16 %v1588
    %v1660 = vpack.c.b16 %v1629, %v1628
    %v1661 = vpack.c.b16 %v1631, %v1630
    %v1662 = vpack.c.b16 %v1633, %v1632
    %v1663 = vpack.c.b16 %v1635, %v1634
    %v1664 = vpack.c.b16 %v1637, %v1636
    %v1665 = vpack.c.b16 %v1639, %v1638
    %v1666 = vpack.c.b16 %v1641, %v1640
    %v1667 = vpack.c.b16 %v1643, %v1642
    %v1668 = vpack.c.b16 %v1645, %v1644
    %v1669 = vpack.c.b16 %v1647, %v1646
    %v1670 = vpack.c.b16 %v1649, %v1648
    %v1671 = vpack.c.b16 %v1651, %v1650
    %v1672 = vpack.c.b16 %v1653, %v1652
    %v1673 = vpack.c.b16 %v1655, %v1654
    %v1674 = vpack.c.b16 %v1657, %v1656
    %v1675 = vpack.c.b16 %v1659, %v1658
    %1692 = vmatprep.subr.bf16.mxu0 0
    %1693 = vmatpush1.bf16.msra.mxu0 %v1667
    %1694 = vmatprep.subr.bf16.mxu0 0
    %1695 = vmatpush1.bf16.msra.mxu0 %v1666
    %1696 = vmatprep.subr.bf16.mxu0 0
    %1697 = vmatpush1.bf16.msra.mxu0 %v1665
    %1698 = vmatprep.subr.bf16.mxu0 0
    %1699 = vmatpush1.bf16.msra.mxu0 %v1664
    %1700 = vmatprep.subr.bf16.mxu0 0
    %1701 = vmatpush1.bf16.msra.mxu0 %v1663
    %1702 = vmatprep.subr.bf16.mxu0 0
    %1703 = vmatpush1.bf16.msra.mxu0 %v1662
    %1704 = vmatprep.subr.bf16.mxu0 0
    %1705 = vmatpush1.bf16.msra.mxu0 %v1661
    %1706 = vmatprep.subr.bf16.mxu0 0
    %1707 = vmatpush1.bf16.msra.mxu0 %v1660
    %1708 = vmatprep.subr.bf16.mxu0 0
    %1709 = vmatpush2.bf16.msra.mxu0 %v1675
    %1710 = vmatprep.subr.bf16.mxu0 0
    %1711 = vmatpush2.bf16.msra.mxu0 %v1674
    %1712 = vmatprep.subr.bf16.mxu0 0
    %1713 = vmatpush2.bf16.msra.mxu0 %v1673
    %1714 = vmatprep.subr.bf16.mxu0 0
    %1715 = vmatpush2.bf16.msra.mxu0 %v1672
    %1716 = vmatprep.subr.bf16.mxu0 0
    %1717 = vmatpush2.bf16.msra.mxu0 %v1671
    %1718 = vmatprep.subr.bf16.mxu0 0
    %1719 = vmatpush2.bf16.msra.mxu0 %v1670
    %1720 = vmatprep.subr.bf16.mxu0 0
    %1721 = vmatpush2.bf16.msra.mxu0 %v1669
    %1722 = vmatprep.subr.bf16.mxu0 0
    %1723 = vmatpush2.bf16.msra.mxu0 %v1668
    %1724 = vmatprep.mubr.bf16.mxu0 %v1494
    %1725 = vmatmul.mubr.bf16.gmra.mxu0 %v1493
    %v1726 = vpop.f32.mrf.mxu0
    %v1727 = vadd.f32 %v1594, %v1726
    %v1728 = vpop.f32.mrf.mxu0
    %v1729 = vpop.f32.mrf.mxu0
    %v1730 = vadd.f32 %v1594, %v1729
    %v1731 = vpop.f32.mrf.mxu0
    %1732 = vmatprep.mubr.bf16.mxu0 %v1496
    %1733 = vmatmul.mubr.bf16.gmra.mxu0 %v1495
    %v1734 = vpop.f32.mrf.mxu0
    %v1735 = vadd.f32 %v1594, %v1734
    %v1736 = vpop.f32.mrf.mxu0
    %v1737 = vpop.f32.mrf.mxu0
    %v1738 = vadd.f32 %v1594, %v1737
    %v1739 = vpop.f32.mrf.mxu0
    %1740 = vmatprep.mubr.bf16.mxu0 %v1498
    %1741 = vmatmul.mubr.bf16.gmra.mxu0 %v1497
    %v1742 = vpop.f32.mrf.mxu0
    %v1743 = vadd.f32 %v1594, %v1742
    %v1744 = vpop.f32.mrf.mxu0
    %v1745 = vpop.f32.mrf.mxu0
    %v1746 = vadd.f32 %v1594, %v1745
    %v1747 = vpop.f32.mrf.mxu0
    %1748 = vmatprep.mubr.bf16.mxu0 %v1500
    %1749 = vmatmul.mubr.bf16.gmra.mxu0 %v1499
    %v1750 = vpop.f32.mrf.mxu0
    %v1751 = vadd.f32 %v1594, %v1750
    %v1752 = vpop.f32.mrf.mxu0
    %v1753 = vpop.f32.mrf.mxu0
    %v1754 = vadd.f32 %v1594, %v1753
    %v1755 = vpop.f32.mrf.mxu0
    %1756 = vmatprep.mubr.bf16.mxu0 %v1502
    %1757 = vmatmul.mubr.bf16.gmra.mxu0 %v1501
    %v1758 = vpop.f32.mrf.mxu0
    %v1759 = vadd.f32 %v1594, %v1758
    %v1760 = vpop.f32.mrf.mxu0
    %v1761 = vpop.f32.mrf.mxu0
    %v1762 = vadd.f32 %v1594, %v1761
    %v1763 = vpop.f32.mrf.mxu0
    %1764 = vmatprep.mubr.bf16.mxu0 %v1504
    %1765 = vmatmul.mubr.bf16.gmra.mxu0 %v1503
    %v1766 = vpop.f32.mrf.mxu0
    %v1767 = vadd.f32 %v1594, %v1766
    %v1768 = vpop.f32.mrf.mxu0
    %v1769 = vpop.f32.mrf.mxu0
    %v1770 = vadd.f32 %v1594, %v1769
    %v1771 = vpop.f32.mrf.mxu0
    %1772 = vmatprep.mubr.bf16.mxu0 %v1506
    %1773 = vmatmul.mubr.bf16.gmra.mxu0 %v1505
    %v1774 = vpop.f32.mrf.mxu0
    %v1775 = vadd.f32 %v1594, %v1774
    %v1776 = vpop.f32.mrf.mxu0
    %v1777 = vpop.f32.mrf.mxu0
    %v1778 = vadd.f32 %v1594, %v1777
    %v1779 = vpop.f32.mrf.mxu0
    %1780 = vmatprep.mubr.bf16.mxu0 %v1508
    %1781 = vmatmul.mubr.bf16.gmra.mxu0 %v1507
    %v1782 = vpop.f32.mrf.mxu0
    %v1783 = vadd.f32 %v1594, %v1782
    %v1784 = vpop.f32.mrf.mxu0
    %v1785 = vpop.f32.mrf.mxu0
    %v1786 = vadd.f32 %v1594, %v1785
    %v1787 = vpop.f32.mrf.mxu0
    %1788 = vmatprep.mubr.bf16.mxu0 %v1510
    %1789 = vmatmul.mubr.bf16.gmra.mxu0 %v1509
    %v1790 = vpop.f32.mrf.mxu0
    %v1791 = vadd.f32 %v1594, %v1790
    %v1792 = vpop.f32.mrf.mxu0
    %v1793 = vpop.f32.mrf.mxu0
    %v1794 = vadd.f32 %v1594, %v1793
    %v1795 = vpop.f32.mrf.mxu0
    %1796 = vmatprep.mubr.bf16.mxu0 %v1512
    %1797 = vmatmul.mubr.bf16.gmra.mxu0 %v1511
    %v1798 = vpop.f32.mrf.mxu0
    %v1799 = vadd.f32 %v1594, %v1798
    %v1800 = vpop.f32.mrf.mxu0
    %v1801 = vpop.f32.mrf.mxu0
    %v1802 = vadd.f32 %v1594, %v1801
    %v1803 = vpop.f32.mrf.mxu0
    %1804 = vmatprep.mubr.bf16.mxu0 %v1514
    %1805 = vmatmul.mubr.bf16.gmra.mxu0 %v1513
    %v1806 = vpop.f32.mrf.mxu0
    %v1807 = vadd.f32 %v1594, %v1806
    %v1808 = vpop.f32.mrf.mxu0
    %v1809 = vpop.f32.mrf.mxu0
    %v1810 = vadd.f32 %v1594, %v1809
    %v1811 = vpop.f32.mrf.mxu0
    %1812 = vmatprep.mubr.bf16.mxu0 %v1516
    %1813 = vmatmul.mubr.bf16.gmra.mxu0 %v1515
    %v1814 = vpop.f32.mrf.mxu0
    %v1815 = vadd.f32 %v1594, %v1814
    %v1816 = vpop.f32.mrf.mxu0
    %v1817 = vpop.f32.mrf.mxu0
    %v1818 = vadd.f32 %v1594, %v1817
    %v1819 = vpop.f32.mrf.mxu0
    %1820 = vmatprep.mubr.bf16.mxu0 %v1518
    %1821 = vmatmul.mubr.bf16.gmra.mxu0 %v1517
    %v1822 = vpop.f32.mrf.mxu0
    %v1823 = vadd.f32 %v1594, %v1822
    %v1824 = vpop.f32.mrf.mxu0
    %v1825 = vpop.f32.mrf.mxu0
    %v1826 = vadd.f32 %v1594, %v1825
    %v1827 = vpop.f32.mrf.mxu0
    %1828 = vmatprep.mubr.bf16.mxu0 %v1520
    %1829 = vmatmul.mubr.bf16.gmra.mxu0 %v1519
    %v1830 = vpop.f32.mrf.mxu0
    %v1831 = vadd.f32 %v1594, %v1830
    %v1832 = vpop.f32.mrf.mxu0
    %v1833 = vpop.f32.mrf.mxu0
    %v1834 = vadd.f32 %v1594, %v1833
    %v1835 = vpop.f32.mrf.mxu0
    %1836 = vmatprep.mubr.bf16.mxu0 %v1522
    %1837 = vmatmul.mubr.bf16.gmra.mxu0 %v1521
    %v1838 = vpop.f32.mrf.mxu0
    %v1839 = vadd.f32 %v1594, %v1838
    %v1840 = vpop.f32.mrf.mxu0
    %v1841 = vpop.f32.mrf.mxu0
    %v1842 = vadd.f32 %v1594, %v1841
    %v1843 = vpop.f32.mrf.mxu0
    %1844 = vmatprep.mubr.bf16.mxu0 %v1524
    %1845 = vmatmul.mubr.bf16.gmra.mxu0 %v1523
    %v1846 = vpop.f32.mrf.mxu0
    %v1847 = vadd.f32 %v1594, %v1846
    %v1848 = vpop.f32.mrf.mxu0
    %v1849 = vpop.f32.mrf.mxu0
    %v1850 = vadd.f32 %v1594, %v1849
    %v1851 = vpop.f32.mrf.mxu0
    %1852 = vmatprep.mubr.bf16.mxu0 %v1526
    %1853 = vmatmul.mubr.bf16.gmra.mxu0 %v1525
    %v1854 = vpop.f32.mrf.mxu0
    %v1855 = vadd.f32 %v1594, %v1854
    %v1856 = vpop.f32.mrf.mxu0
    %v1857 = vpop.f32.mrf.mxu0
    %v1858 = vadd.f32 %v1594, %v1857
    %v1859 = vpop.f32.mrf.mxu0
    %1860 = vmatprep.mubr.bf16.mxu0 %v1528
    %1861 = vmatmul.mubr.bf16.gmra.mxu0 %v1527
    %v1862 = vpop.f32.mrf.mxu0
    %v1863 = vadd.f32 %v1594, %v1862
    %v1864 = vpop.f32.mrf.mxu0
    %v1865 = vpop.f32.mrf.mxu0
    %v1866 = vadd.f32 %v1594, %v1865
    %v1867 = vpop.f32.mrf.mxu0
    %1868 = vmatprep.mubr.bf16.mxu0 %v1530
    %1869 = vmatmul.mubr.bf16.gmra.mxu0 %v1529
    %v1870 = vpop.f32.mrf.mxu0
    %v1871 = vadd.f32 %v1594, %v1870
    %v1872 = vpop.f32.mrf.mxu0
    %v1873 = vpop.f32.mrf.mxu0
    %v1874 = vadd.f32 %v1594, %v1873
    %v1875 = vpop.f32.mrf.mxu0
    %1876 = vmatprep.mubr.bf16.mxu0 %v1532
    %1877 = vmatmul.mubr.bf16.gmra.mxu0 %v1531
    %v1878 = vpop.f32.mrf.mxu0
    %v1879 = vadd.f32 %v1594, %v1878
    %v1880 = vpop.f32.mrf.mxu0
    %v1881 = vpop.f32.mrf.mxu0
    %v1882 = vadd.f32 %v1594, %v1881
    %v1883 = vpop.f32.mrf.mxu0
    %1884 = vmatprep.mubr.bf16.mxu0 %v1534
    %1885 = vmatmul.mubr.bf16.gmra.mxu0 %v1533
    %v1886 = vpop.f32.mrf.mxu0
    %v1887 = vadd.f32 %v1594, %v1886
    %v1888 = vpop.f32.mrf.mxu0
    %v1889 = vpop.f32.mrf.mxu0
    %v1890 = vadd.f32 %v1594, %v1889
    %v1891 = vpop.f32.mrf.mxu0
    %1892 = vmatprep.mubr.bf16.mxu0 %v1536
    %1893 = vmatmul.mubr.bf16.gmra.mxu0 %v1535
    %v1894 = vpop.f32.mrf.mxu0
    %v1895 = vadd.f32 %v1594, %v1894
    %v1896 = vpop.f32.mrf.mxu0
    %v1897 = vpop.f32.mrf.mxu0
    %v1898 = vadd.f32 %v1594, %v1897
    %v1899 = vpop.f32.mrf.mxu0
    %1900 = vmatprep.mubr.bf16.mxu0 %v1538
    %1901 = vmatmul.mubr.bf16.gmra.mxu0 %v1537
    %v1902 = vpop.f32.mrf.mxu0
    %v1903 = vadd.f32 %v1594, %v1902
    %v1904 = vpop.f32.mrf.mxu0
    %v1905 = vpop.f32.mrf.mxu0
    %v1906 = vadd.f32 %v1594, %v1905
    %v1907 = vpop.f32.mrf.mxu0
    %1908 = vmatprep.mubr.bf16.mxu0 %v1540
    %1909 = vmatmul.mubr.bf16.gmra.mxu0 %v1539
    %v1910 = vpop.f32.mrf.mxu0
    %v1911 = vadd.f32 %v1594, %v1910
    %v1912 = vpop.f32.mrf.mxu0
    %v1913 = vpop.f32.mrf.mxu0
    %v1914 = vadd.f32 %v1594, %v1913
    %v1915 = vpop.f32.mrf.mxu0
    %1916 = vmatprep.mubr.bf16.mxu0 %v1542
    %1917 = vmatmul.mubr.bf16.gmra.mxu0 %v1541
    %v1918 = vpop.f32.mrf.mxu0
    %v1919 = vadd.f32 %v1594, %v1918
    %v1920 = vpop.f32.mrf.mxu0
    %v1921 = vpop.f32.mrf.mxu0
    %v1922 = vadd.f32 %v1594, %v1921
    %v1923 = vpop.f32.mrf.mxu0
    %1924 = vmatprep.mubr.bf16.mxu0 %v1544
    %1925 = vmatmul.mubr.bf16.gmra.mxu0 %v1543
    %v1926 = vpop.f32.mrf.mxu0
    %v1927 = vadd.f32 %v1594, %v1926
    %v1928 = vpop.f32.mrf.mxu0
    %v1929 = vpop.f32.mrf.mxu0
    %v1930 = vadd.f32 %v1594, %v1929
    %v1931 = vpop.f32.mrf.mxu0
    %1932 = vmatprep.mubr.bf16.mxu0 %v1546
    %1933 = vmatmul.mubr.bf16.gmra.mxu0 %v1545
    %v1934 = vpop.f32.mrf.mxu0
    %v1935 = vadd.f32 %v1594, %v1934
    %v1936 = vpop.f32.mrf.mxu0
    %v1937 = vpop.f32.mrf.mxu0
    %v1938 = vadd.f32 %v1594, %v1937
    %v1939 = vpop.f32.mrf.mxu0
    %1940 = vmatprep.mubr.bf16.mxu0 %v1548
    %1941 = vmatmul.mubr.bf16.gmra.mxu0 %v1547
    %v1942 = vpop.f32.mrf.mxu0
    %v1943 = vadd.f32 %v1594, %v1942
    %v1944 = vpop.f32.mrf.mxu0
    %v1945 = vpop.f32.mrf.mxu0
    %v1946 = vadd.f32 %v1594, %v1945
    %v1947 = vpop.f32.mrf.mxu0
    %1948 = vmatprep.mubr.bf16.mxu0 %v1550
    %1949 = vmatmul.mubr.bf16.gmra.mxu0 %v1549
    %v1950 = vpop.f32.mrf.mxu0
    %v1951 = vadd.f32 %v1594, %v1950
    %v1952 = vpop.f32.mrf.mxu0
    %v1953 = vpop.f32.mrf.mxu0
    %v1954 = vadd.f32 %v1594, %v1953
    %v1955 = vpop.f32.mrf.mxu0
    %1956 = vmatprep.mubr.bf16.mxu0 %v1552
    %1957 = vmatmul.mubr.bf16.gmra.mxu0 %v1551
    %v1958 = vpop.f32.mrf.mxu0
    %v1959 = vadd.f32 %v1594, %v1958
    %v1960 = vpop.f32.mrf.mxu0
    %v1961 = vpop.f32.mrf.mxu0
    %v1962 = vadd.f32 %v1594, %v1961
    %v1963 = vpop.f32.mrf.mxu0
    %1964 = vmatprep.mubr.bf16.mxu0 %v1554
    %1965 = vmatmul.mubr.bf16.gmra.mxu0 %v1553
    %v1966 = vpop.f32.mrf.mxu0
    %v1967 = vadd.f32 %v1594, %v1966
    %v1968 = vpop.f32.mrf.mxu0
    %v1969 = vpop.f32.mrf.mxu0
    %v1970 = vadd.f32 %v1594, %v1969
    %v1971 = vpop.f32.mrf.mxu0
    %1972 = vmatprep.mubr.bf16.mxu0 %v1556
    %1973 = vmatmul.mubr.bf16.gmra.mxu0 %v1555
    %v1974 = vpop.f32.mrf.mxu0
    %v1975 = vadd.f32 %v1594, %v1974
    %v1976 = vpop.f32.mrf.mxu0
    %v1977 = vpop.f32.mrf.mxu0
    %v1978 = vadd.f32 %v1594, %v1977
    %v1979 = vpop.f32.mrf.mxu0
    %1980 = vdwg.mxu0
    %v1981 = vtanh.pop %v1727
    %v1982 = vtanh.pop %v1730
    %v1983 = vtanh.pop %v1735
    %v1984 = vtanh.pop %v1738
    %v1985 = vtanh.pop %v1743
    %v1986 = vtanh.pop %v1746
    %v1987 = vtanh.pop %v1751
    %v1988 = vtanh.pop %v1754
    %v1989 = vtanh.pop %v1759
    %v1990 = vtanh.pop %v1762
    %v1991 = vtanh.pop %v1767
    %v1992 = vtanh.pop %v1770
    %v1993 = vtanh.pop %v1775
    %v1994 = vtanh.pop %v1778
    %v1995 = vtanh.pop %v1783
    %v1996 = vtanh.pop %v1786
    %v1997 = vtanh.pop %v1791
    %v1998 = vtanh.pop %v1794
    %v1999 = vtanh.pop %v1799
    %v2000 = vtanh.pop %v1802
    %v2001 = vtanh.pop %v1807
    %v2002 = vtanh.pop %v1810
    %v2003 = vtanh.pop %v1815
    %v2004 = vtanh.pop %v1818
    %v2005 = vtanh.pop %v1823
    %v2006 = vtanh.pop %v1826
    %v2007 = vtanh.pop %v1831
    %v2008 = vtanh.pop %v1834
    %v2009 = vtanh.pop %v1839
    %v2010 = vtanh.pop %v1842
    %v2011 = vtanh.pop %v1847
    %v2012 = vtanh.pop %v1850
    %v2013 = vtanh.pop %v1855
    %v2014 = vtanh.pop %v1858
    %v2015 = vtanh.pop %v1863
    %v2016 = vtanh.pop %v1866
    %v2017 = vtanh.pop %v1871
    %v2018 = vtanh.pop %v1874
    %v2019 = vtanh.pop %v1879
    %v2020 = vtanh.pop %v1882
    %v2021 = vtanh.pop %v1887
    %v2022 = vtanh.pop %v1890
    %v2023 = vtanh.pop %v1895
    %v2024 = vtanh.pop %v1898
    %v2025 = vtanh.pop %v1903
    %v2026 = vtanh.pop %v1906
    %v2027 = vtanh.pop %v1911
    %v2028 = vtanh.pop %v1914
    %v2029 = vtanh.pop %v1919
    %v2030 = vtanh.pop %v1922
    %v2031 = vtanh.pop %v1927
    %v2032 = vtanh.pop %v1930
    %v2033 = vtanh.pop %v1935
    %v2034 = vtanh.pop %v1938
    %v2035 = vtanh.pop %v1943
    %v2036 = vtanh.pop %v1946
    %v2037 = vtanh.pop %v1951
    %v2038 = vtanh.pop %v1954
    %v2039 = vtanh.pop %v1959
    %v2040 = vtanh.pop %v1962
    %v2041 = vtanh.pop %v1967
    %v2042 = vtanh.pop %v1970
    %v2043 = vtanh.pop %v1975
    %v2044 = vtanh.pop %v1978
    %v2045 = vpack.c.bf16 %v1982, %v1981
    %v2046 = vpack.c.bf16 %v1984, %v1983
    %v2047 = vpack.c.bf16 %v1986, %v1985
    %v2048 = vpack.c.bf16 %v1988, %v1987
    %v2049 = vpack.c.bf16 %v1990, %v1989
    %v2050 = vpack.c.bf16 %v1992, %v1991
    %v2051 = vpack.c.bf16 %v1994, %v1993
    %v2052 = vpack.c.bf16 %v1996, %v1995
    %v2053 = vpack.c.bf16 %v1998, %v1997
    %v2054 = vpack.c.bf16 %v2000, %v1999
    %v2055 = vpack.c.bf16 %v2002, %v2001
    %v2056 = vpack.c.bf16 %v2004, %v2003
    %v2057 = vpack.c.bf16 %v2006, %v2005
    %v2058 = vpack.c.bf16 %v2008, %v2007
    %v2059 = vpack.c.bf16 %v2010, %v2009
    %v2060 = vpack.c.bf16 %v2012, %v2011
    %v2061 = vpack.c.bf16 %v2014, %v2013
    %v2062 = vpack.c.bf16 %v2016, %v2015
    %v2063 = vpack.c.bf16 %v2018, %v2017
    %v2064 = vpack.c.bf16 %v2020, %v2019
    %v2065 = vpack.c.bf16 %v2022, %v2021
    %v2066 = vpack.c.bf16 %v2024, %v2023
    %v2067 = vpack.c.bf16 %v2026, %v2025
    %v2068 = vpack.c.bf16 %v2028, %v2027
    %v2069 = vpack.c.bf16 %v2030, %v2029
    %v2070 = vpack.c.bf16 %v2032, %v2031
    %v2071 = vpack.c.bf16 %v2034, %v2033
    %v2072 = vpack.c.bf16 %v2036, %v2035
    %v2073 = vpack.c.bf16 %v2038, %v2037
    %v2074 = vpack.c.bf16 %v2040, %v2039
    %v2075 = vpack.c.bf16 %v2042, %v2041
    %v2076 = vpack.c.bf16 %v2044, %v2043
    %v2077 = vld [vmem:[%s7] sm:$0xf]
    %v2078 = vld [vmem:[%s7 + $0x4] sm:$0xf]
    %v2079 = vld [vmem:[%s7 + $0x8] sm:$0xf]
    %v2080 = vld [vmem:[%s7 + $0xc] sm:$0xf]
    %v2081 = vld [vmem:[%s7 + $0x10] sm:$0xf]
    %v2082 = vld [vmem:[%s7 + $0x14] sm:$0xf]
    %v2083 = vld [vmem:[%s7 + $0x18] sm:$0xf]
    %v2084 = vld [vmem:[%s7 + $0x1c] sm:$0xf]
    %v2085 = vld [vmem:[%s7 + $0x20] sm:$0xf]
    %v2086 = vld [vmem:[%s7 + $0x24] sm:$0xf]
    %v2087 = vld [vmem:[%s7 + $0x28] sm:$0xf]
    %v2088 = vld [vmem:[%s7 + $0x2c] sm:$0xf]
    %v2089 = vld [vmem:[%s7 + $0x30] sm:$0xf]
    %v2090 = vld [vmem:[%s7 + $0x34] sm:$0xf]
    %v2091 = vld [vmem:[%s7 + $0x38] sm:$0xf]
    %v2092 = vld [vmem:[%s7 + $0x3c] sm:$0xf]
    %v2093 = vld [vmem:[%s8] sm:$0x1]
    %v2095 = vlaneseq
    %v2096 = vshrl.u32 %v2095, 7
    %v2097 = vsub.s32 0, %v2096
    %v2098 = vrot.slane %v2093, %v2097
    %v2116 = vunpack.c.l.b16 %v2077
    %v2117 = vunpack.c.l.b16 %v2078
    %v2118 = vunpack.c.l.b16 %v2079
    %v2119 = vunpack.c.l.b16 %v2080
    %v2120 = vunpack.c.l.b16 %v2081
    %v2121 = vunpack.c.l.b16 %v2082
    %v2122 = vunpack.c.l.b16 %v2083
    %v2123 = vunpack.c.l.b16 %v2084
    %v2124 = vunpack.c.l.b16 %v2085
    %v2125 = vunpack.c.l.b16 %v2086
    %v2126 = vunpack.c.l.b16 %v2087
    %v2127 = vunpack.c.l.b16 %v2088
    %v2128 = vunpack.c.l.b16 %v2089
    %v2129 = vunpack.c.l.b16 %v2090
    %v2130 = vunpack.c.l.b16 %v2091
    %v2131 = vunpack.c.l.b16 %v2092
    %v2132 = vpack.c.b16 %v2117, %v2116
    %v2133 = vpack.c.b16 %v2119, %v2118
    %v2134 = vpack.c.b16 %v2121, %v2120
    %v2135 = vpack.c.b16 %v2123, %v2122
    %v2136 = vpack.c.b16 %v2125, %v2124
    %v2137 = vpack.c.b16 %v2127, %v2126
    %v2138 = vpack.c.b16 %v2129, %v2128
    %v2139 = vpack.c.b16 %v2131, %v2130
    %2148 = vmatprep.subr.bf16.mxu0 0
    %2149 = vmatpush1.bf16.msra.mxu0 %v2139
    %2150 = vmatprep.subr.bf16.mxu0 0
    %2151 = vmatpush1.bf16.msra.mxu0 %v2138
    %2152 = vmatprep.subr.bf16.mxu0 0
    %2153 = vmatpush1.bf16.msra.mxu0 %v2137
    %2154 = vmatprep.subr.bf16.mxu0 0
    %2155 = vmatpush1.bf16.msra.mxu0 %v2136
    %2156 = vmatprep.subr.bf16.mxu0 0
    %2157 = vmatpush1.bf16.msra.mxu0 %v2135
    %2158 = vmatprep.subr.bf16.mxu0 0
    %2159 = vmatpush1.bf16.msra.mxu0 %v2134
    %2160 = vmatprep.subr.bf16.mxu0 0
    %2161 = vmatpush1.bf16.msra.mxu0 %v2133
    %2162 = vmatprep.subr.bf16.mxu0 0
    %2163 = vmatpush1.bf16.msra.mxu0 %v2132
    %2164 = vmatprep.subr.bf16.mxu0 0
    %2165 = vmatpush2.bf16.msra.mxu0 0
    %2166 = vmatprep.subr.bf16.mxu0 0
    %2167 = vmatpush2.bf16.msra.mxu0 0
    %2168 = vmatprep.subr.bf16.mxu0 0
    %2169 = vmatpush2.bf16.msra.mxu0 0
    %2170 = vmatprep.subr.bf16.mxu0 0
    %2171 = vmatpush2.bf16.msra.mxu0 0
    %2172 = vmatprep.subr.bf16.mxu0 0
    %2173 = vmatpush2.bf16.msra.mxu0 0
    %2174 = vmatprep.subr.bf16.mxu0 0
    %2175 = vmatpush2.bf16.msra.mxu0 0
    %2176 = vmatprep.subr.bf16.mxu0 0
    %2177 = vmatpush2.bf16.msra.mxu0 0
    %2178 = vmatprep.subr.bf16.mxu0 0
    %2179 = vmatpush2.bf16.msra.mxu0 0
    %2180 = vmatprep.mubr.bf16.mxu0 0
    %2181 = vmatmul.mubr.bf16.gmra.mxu0 %v2045
    %v2182 = vpop.f32.mrf.mxu0
    %v2183 = vadd.f32 %v2098, %v2182
    %v2184 = vpop.f32.mrf.mxu0
    %v2185 = vpop.f32.mrf.mxu0
    %v2186 = vadd.f32 %v2098, %v2185
    %v2187 = vpop.f32.mrf.mxu0
    %2188 = vmatprep.mubr.bf16.mxu0 0
    %2189 = vmatmul.mubr.bf16.gmra.mxu0 %v2046
    %v2190 = vpop.f32.mrf.mxu0
    %v2191 = vadd.f32 %v2098, %v2190
    %v2192 = vpop.f32.mrf.mxu0
    %v2193 = vpop.f32.mrf.mxu0
    %v2194 = vadd.f32 %v2098, %v2193
    %v2195 = vpop.f32.mrf.mxu0
    %2196 = vmatprep.mubr.bf16.mxu0 0
    %2197 = vmatmul.mubr.bf16.gmra.mxu0 %v2047
    %v2198 = vpop.f32.mrf.mxu0
    %v2199 = vadd.f32 %v2098, %v2198
    %v2200 = vpop.f32.mrf.mxu0
    %v2201 = vpop.f32.mrf.mxu0
    %v2202 = vadd.f32 %v2098, %v2201
    %v2203 = vpop.f32.mrf.mxu0
    %2204 = vmatprep.mubr.bf16.mxu0 0
    %2205 = vmatmul.mubr.bf16.gmra.mxu0 %v2048
    %v2206 = vpop.f32.mrf.mxu0
    %v2207 = vadd.f32 %v2098, %v2206
    %v2208 = vpop.f32.mrf.mxu0
    %v2209 = vpop.f32.mrf.mxu0
    %v2210 = vadd.f32 %v2098, %v2209
    %v2211 = vpop.f32.mrf.mxu0
    %2212 = vmatprep.mubr.bf16.mxu0 0
    %2213 = vmatmul.mubr.bf16.gmra.mxu0 %v2049
    %v2214 = vpop.f32.mrf.mxu0
    %v2215 = vadd.f32 %v2098, %v2214
    %v2216 = vpop.f32.mrf.mxu0
    %v2217 = vpop.f32.mrf.mxu0
    %v2218 = vadd.f32 %v2098, %v2217
    %v2219 = vpop.f32.mrf.mxu0
    %2220 = vmatprep.mubr.bf16.mxu0 0
    %2221 = vmatmul.mubr.bf16.gmra.mxu0 %v2050
    %v2222 = vpop.f32.mrf.mxu0
    %v2223 = vadd.f32 %v2098, %v2222
    %v2224 = vpop.f32.mrf.mxu0
    %v2225 = vpop.f32.mrf.mxu0
    %v2226 = vadd.f32 %v2098, %v2225
    %v2227 = vpop.f32.mrf.mxu0
    %2228 = vmatprep.mubr.bf16.mxu0 0
    %2229 = vmatmul.mubr.bf16.gmra.mxu0 %v2051
    %v2230 = vpop.f32.mrf.mxu0
    %v2231 = vadd.f32 %v2098, %v2230
    %v2232 = vpop.f32.mrf.mxu0
    %v2233 = vpop.f32.mrf.mxu0
    %v2234 = vadd.f32 %v2098, %v2233
    %v2235 = vpop.f32.mrf.mxu0
    %2236 = vmatprep.mubr.bf16.mxu0 0
    %2237 = vmatmul.mubr.bf16.gmra.mxu0 %v2052
    %v2238 = vpop.f32.mrf.mxu0
    %v2239 = vadd.f32 %v2098, %v2238
    %v2240 = vpop.f32.mrf.mxu0
    %v2241 = vpop.f32.mrf.mxu0
    %v2242 = vadd.f32 %v2098, %v2241
    %v2243 = vpop.f32.mrf.mxu0
    %2244 = vmatprep.mubr.bf16.mxu0 0
    %2245 = vmatmul.mubr.bf16.gmra.mxu0 %v2053
    %v2246 = vpop.f32.mrf.mxu0
    %v2247 = vadd.f32 %v2098, %v2246
    %v2248 = vpop.f32.mrf.mxu0
    %v2249 = vpop.f32.mrf.mxu0
    %v2250 = vadd.f32 %v2098, %v2249
    %v2251 = vpop.f32.mrf.mxu0
    %2252 = vmatprep.mubr.bf16.mxu0 0
    %2253 = vmatmul.mubr.bf16.gmra.mxu0 %v2054
    %v2254 = vpop.f32.mrf.mxu0
    %v2255 = vadd.f32 %v2098, %v2254
    %v2256 = vpop.f32.mrf.mxu0
    %v2257 = vpop.f32.mrf.mxu0
    %v2258 = vadd.f32 %v2098, %v2257
    %v2259 = vpop.f32.mrf.mxu0
    %2260 = vmatprep.mubr.bf16.mxu0 0
    %2261 = vmatmul.mubr.bf16.gmra.mxu0 %v2055
    %v2262 = vpop.f32.mrf.mxu0
    %v2263 = vadd.f32 %v2098, %v2262
    %v2264 = vpop.f32.mrf.mxu0
    %v2265 = vpop.f32.mrf.mxu0
    %v2266 = vadd.f32 %v2098, %v2265
    %v2267 = vpop.f32.mrf.mxu0
    %2268 = vmatprep.mubr.bf16.mxu0 0
    %2269 = vmatmul.mubr.bf16.gmra.mxu0 %v2056
    %v2270 = vpop.f32.mrf.mxu0
    %v2271 = vadd.f32 %v2098, %v2270
    %v2272 = vpop.f32.mrf.mxu0
    %v2273 = vpop.f32.mrf.mxu0
    %v2274 = vadd.f32 %v2098, %v2273
    %v2275 = vpop.f32.mrf.mxu0
    %2276 = vmatprep.mubr.bf16.mxu0 0
    %2277 = vmatmul.mubr.bf16.gmra.mxu0 %v2057
    %v2278 = vpop.f32.mrf.mxu0
    %v2279 = vadd.f32 %v2098, %v2278
    %v2280 = vpop.f32.mrf.mxu0
    %v2281 = vpop.f32.mrf.mxu0
    %v2282 = vadd.f32 %v2098, %v2281
    %v2283 = vpop.f32.mrf.mxu0
    %2284 = vmatprep.mubr.bf16.mxu0 0
    %2285 = vmatmul.mubr.bf16.gmra.mxu0 %v2058
    %v2286 = vpop.f32.mrf.mxu0
    %v2287 = vadd.f32 %v2098, %v2286
    %v2288 = vpop.f32.mrf.mxu0
    %v2289 = vpop.f32.mrf.mxu0
    %v2290 = vadd.f32 %v2098, %v2289
    %v2291 = vpop.f32.mrf.mxu0
    %2292 = vmatprep.mubr.bf16.mxu0 0
    %2293 = vmatmul.mubr.bf16.gmra.mxu0 %v2059
    %v2294 = vpop.f32.mrf.mxu0
    %v2295 = vadd.f32 %v2098, %v2294
    %v2296 = vpop.f32.mrf.mxu0
    %v2297 = vpop.f32.mrf.mxu0
    %v2298 = vadd.f32 %v2098, %v2297
    %v2299 = vpop.f32.mrf.mxu0
    %2300 = vmatprep.mubr.bf16.mxu0 0
    %2301 = vmatmul.mubr.bf16.gmra.mxu0 %v2060
    %v2302 = vpop.f32.mrf.mxu0
    %v2303 = vadd.f32 %v2098, %v2302
    %v2304 = vpop.f32.mrf.mxu0
    %v2305 = vpop.f32.mrf.mxu0
    %v2306 = vadd.f32 %v2098, %v2305
    %v2307 = vpop.f32.mrf.mxu0
    %2308 = vmatprep.mubr.bf16.mxu0 0
    %2309 = vmatmul.mubr.bf16.gmra.mxu0 %v2061
    %v2310 = vpop.f32.mrf.mxu0
    %v2311 = vadd.f32 %v2098, %v2310
    %v2312 = vpop.f32.mrf.mxu0
    %v2313 = vpop.f32.mrf.mxu0
    %v2314 = vadd.f32 %v2098, %v2313
    %v2315 = vpop.f32.mrf.mxu0
    %2316 = vmatprep.mubr.bf16.mxu0 0
    %2317 = vmatmul.mubr.bf16.gmra.mxu0 %v2062
    %v2318 = vpop.f32.mrf.mxu0
    %v2319 = vadd.f32 %v2098, %v2318
    %v2320 = vpop.f32.mrf.mxu0
    %v2321 = vpop.f32.mrf.mxu0
    %v2322 = vadd.f32 %v2098, %v2321
    %v2323 = vpop.f32.mrf.mxu0
    %2324 = vmatprep.mubr.bf16.mxu0 0
    %2325 = vmatmul.mubr.bf16.gmra.mxu0 %v2063
    %v2326 = vpop.f32.mrf.mxu0
    %v2327 = vadd.f32 %v2098, %v2326
    %v2328 = vpop.f32.mrf.mxu0
    %v2329 = vpop.f32.mrf.mxu0
    %v2330 = vadd.f32 %v2098, %v2329
    %v2331 = vpop.f32.mrf.mxu0
    %2332 = vmatprep.mubr.bf16.mxu0 0
    %2333 = vmatmul.mubr.bf16.gmra.mxu0 %v2064
    %v2334 = vpop.f32.mrf.mxu0
    %v2335 = vadd.f32 %v2098, %v2334
    %v2336 = vpop.f32.mrf.mxu0
    %v2337 = vpop.f32.mrf.mxu0
    %v2338 = vadd.f32 %v2098, %v2337
    %v2339 = vpop.f32.mrf.mxu0
    %2340 = vmatprep.mubr.bf16.mxu0 0
    %2341 = vmatmul.mubr.bf16.gmra.mxu0 %v2065
    %v2342 = vpop.f32.mrf.mxu0
    %v2343 = vadd.f32 %v2098, %v2342
    %v2344 = vpop.f32.mrf.mxu0
    %v2345 = vpop.f32.mrf.mxu0
    %v2346 = vadd.f32 %v2098, %v2345
    %v2347 = vpop.f32.mrf.mxu0
    %2348 = vmatprep.mubr.bf16.mxu0 0
    %2349 = vmatmul.mubr.bf16.gmra.mxu0 %v2066
    %v2350 = vpop.f32.mrf.mxu0
    %v2351 = vadd.f32 %v2098, %v2350
    %v2352 = vpop.f32.mrf.mxu0
    %v2353 = vpop.f32.mrf.mxu0
    %v2354 = vadd.f32 %v2098, %v2353
    %v2355 = vpop.f32.mrf.mxu0
    %2356 = vmatprep.mubr.bf16.mxu0 0
    %2357 = vmatmul.mubr.bf16.gmra.mxu0 %v2067
    %v2358 = vpop.f32.mrf.mxu0
    %v2359 = vadd.f32 %v2098, %v2358
    %v2360 = vpop.f32.mrf.mxu0
    %v2361 = vpop.f32.mrf.mxu0
    %v2362 = vadd.f32 %v2098, %v2361
    %v2363 = vpop.f32.mrf.mxu0
    %2364 = vmatprep.mubr.bf16.mxu0 0
    %2365 = vmatmul.mubr.bf16.gmra.mxu0 %v2068
    %v2366 = vpop.f32.mrf.mxu0
    %v2367 = vadd.f32 %v2098, %v2366
    %v2368 = vpop.f32.mrf.mxu0
    %v2369 = vpop.f32.mrf.mxu0
    %v2370 = vadd.f32 %v2098, %v2369
    %v2371 = vpop.f32.mrf.mxu0
    %2372 = vmatprep.mubr.bf16.mxu0 0
    %2373 = vmatmul.mubr.bf16.gmra.mxu0 %v2069
    %v2374 = vpop.f32.mrf.mxu0
    %v2375 = vadd.f32 %v2098, %v2374
    %v2376 = vpop.f32.mrf.mxu0
    %v2377 = vpop.f32.mrf.mxu0
    %v2378 = vadd.f32 %v2098, %v2377
    %v2379 = vpop.f32.mrf.mxu0
    %2380 = vmatprep.mubr.bf16.mxu0 0
    %2381 = vmatmul.mubr.bf16.gmra.mxu0 %v2070
    %v2382 = vpop.f32.mrf.mxu0
    %v2383 = vadd.f32 %v2098, %v2382
    %v2384 = vpop.f32.mrf.mxu0
    %v2385 = vpop.f32.mrf.mxu0
    %v2386 = vadd.f32 %v2098, %v2385
    %v2387 = vpop.f32.mrf.mxu0
    %2388 = vmatprep.mubr.bf16.mxu0 0
    %2389 = vmatmul.mubr.bf16.gmra.mxu0 %v2071
    %v2390 = vpop.f32.mrf.mxu0
    %v2391 = vadd.f32 %v2098, %v2390
    %v2392 = vpop.f32.mrf.mxu0
    %v2393 = vpop.f32.mrf.mxu0
    %v2394 = vadd.f32 %v2098, %v2393
    %v2395 = vpop.f32.mrf.mxu0
    %2396 = vmatprep.mubr.bf16.mxu0 0
    %2397 = vmatmul.mubr.bf16.gmra.mxu0 %v2072
    %v2398 = vpop.f32.mrf.mxu0
    %v2399 = vadd.f32 %v2098, %v2398
    %v2400 = vpop.f32.mrf.mxu0
    %v2401 = vpop.f32.mrf.mxu0
    %v2402 = vadd.f32 %v2098, %v2401
    %v2403 = vpop.f32.mrf.mxu0
    %2404 = vmatprep.mubr.bf16.mxu0 0
    %2405 = vmatmul.mubr.bf16.gmra.mxu0 %v2073
    %v2406 = vpop.f32.mrf.mxu0
    %v2407 = vadd.f32 %v2098, %v2406
    %v2408 = vpop.f32.mrf.mxu0
    %v2409 = vpop.f32.mrf.mxu0
    %v2410 = vadd.f32 %v2098, %v2409
    %v2411 = vpop.f32.mrf.mxu0
    %2412 = vmatprep.mubr.bf16.mxu0 0
    %2413 = vmatmul.mubr.bf16.gmra.mxu0 %v2074
    %v2414 = vpop.f32.mrf.mxu0
    %v2415 = vadd.f32 %v2098, %v2414
    %v2416 = vpop.f32.mrf.mxu0
    %v2417 = vpop.f32.mrf.mxu0
    %v2418 = vadd.f32 %v2098, %v2417
    %v2419 = vpop.f32.mrf.mxu0
    %2420 = vmatprep.mubr.bf16.mxu0 0
    %2421 = vmatmul.mubr.bf16.gmra.mxu0 %v2075
    %v2422 = vpop.f32.mrf.mxu0
    %v2423 = vadd.f32 %v2098, %v2422
    %v2424 = vpop.f32.mrf.mxu0
    %v2425 = vpop.f32.mrf.mxu0
    %v2426 = vadd.f32 %v2098, %v2425
    %v2427 = vpop.f32.mrf.mxu0
    %2428 = vmatprep.mubr.bf16.mxu0 0
    %2429 = vmatmul.mubr.bf16.gmra.mxu0 %v2076
    %v2430 = vpop.f32.mrf.mxu0
    %v2431 = vadd.f32 %v2098, %v2430
    %v2432 = vpop.f32.mrf.mxu0
    %v2433 = vpop.f32.mrf.mxu0
    %v2434 = vadd.f32 %v2098, %v2433
    %v2435 = vpop.f32.mrf.mxu0
    %2436 = vdwg.mxu0
    %v2437 = vmax.f32 %v2183, 0.0
    %v2438 = vmax.f32 %v2186, 0.0
    %v2439 = vmax.f32 %v2191, 0.0
    %v2440 = vmax.f32 %v2194, 0.0
    %v2441 = vmax.f32 %v2199, 0.0
    %v2442 = vmax.f32 %v2202, 0.0
    %v2443 = vmax.f32 %v2207, 0.0
    %v2444 = vmax.f32 %v2210, 0.0
    %v2445 = vmax.f32 %v2215, 0.0
    %v2446 = vmax.f32 %v2218, 0.0
    %v2447 = vmax.f32 %v2223, 0.0
    %v2448 = vmax.f32 %v2226, 0.0
    %v2449 = vmax.f32 %v2231, 0.0
    %v2450 = vmax.f32 %v2234, 0.0
    %v2451 = vmax.f32 %v2239, 0.0
    %v2452 = vmax.f32 %v2242, 0.0
    %v2453 = vmax.f32 %v2247, 0.0
    %v2454 = vmax.f32 %v2250, 0.0
    %v2455 = vmax.f32 %v2255, 0.0
    %v2456 = vmax.f32 %v2258, 0.0
    %v2457 = vmax.f32 %v2263, 0.0
    %v2458 = vmax.f32 %v2266, 0.0
    %v2459 = vmax.f32 %v2271, 0.0
    %v2460 = vmax.f32 %v2274, 0.0
    %v2461 = vmax.f32 %v2279, 0.0
    %v2462 = vmax.f32 %v2282, 0.0
    %v2463 = vmax.f32 %v2287, 0.0
    %v2464 = vmax.f32 %v2290, 0.0
    %v2465 = vmax.f32 %v2295, 0.0
    %v2466 = vmax.f32 %v2298, 0.0
    %v2467 = vmax.f32 %v2303, 0.0
    %v2468 = vmax.f32 %v2306, 0.0
    %v2469 = vmax.f32 %v2311, 0.0
    %v2470 = vmax.f32 %v2314, 0.0
    %v2471 = vmax.f32 %v2319, 0.0
    %v2472 = vmax.f32 %v2322, 0.0
    %v2473 = vmax.f32 %v2327, 0.0
    %v2474 = vmax.f32 %v2330, 0.0
    %v2475 = vmax.f32 %v2335, 0.0
    %v2476 = vmax.f32 %v2338, 0.0
    %v2477 = vmax.f32 %v2343, 0.0
    %v2478 = vmax.f32 %v2346, 0.0
    %v2479 = vmax.f32 %v2351, 0.0
    %v2480 = vmax.f32 %v2354, 0.0
    %v2481 = vmax.f32 %v2359, 0.0
    %v2482 = vmax.f32 %v2362, 0.0
    %v2483 = vmax.f32 %v2367, 0.0
    %v2484 = vmax.f32 %v2370, 0.0
    %v2485 = vmax.f32 %v2375, 0.0
    %v2486 = vmax.f32 %v2378, 0.0
    %v2487 = vmax.f32 %v2383, 0.0
    %v2488 = vmax.f32 %v2386, 0.0
    %v2489 = vmax.f32 %v2391, 0.0
    %v2490 = vmax.f32 %v2394, 0.0
    %v2491 = vmax.f32 %v2399, 0.0
    %v2492 = vmax.f32 %v2402, 0.0
    %v2493 = vmax.f32 %v2407, 0.0
    %v2494 = vmax.f32 %v2410, 0.0
    %v2495 = vmax.f32 %v2415, 0.0
    %v2496 = vmax.f32 %v2418, 0.0
    %v2497 = vmax.f32 %v2423, 0.0
    %v2498 = vmax.f32 %v2426, 0.0
    %v2499 = vmax.f32 %v2431, 0.0
    %v2500 = vmax.f32 %v2434, 0.0
    %v2501 = vand.u32 2147483647, %v2183
    %v2502 = vand.u32 2147483647, %v2186
    %v2503 = vand.u32 2147483647, %v2191
    %v2504 = vand.u32 2147483647, %v2194
    %v2505 = vand.u32 2147483647, %v2199
    %v2506 = vand.u32 2147483647, %v2202
    %v2507 = vand.u32 2147483647, %v2207
    %v2508 = vand.u32 2147483647, %v2210
    %v2509 = vand.u32 2147483647, %v2215
    %v2510 = vand.u32 2147483647, %v2218
    %v2511 = vand.u32 2147483647, %v2223
    %v2512 = vand.u32 2147483647, %v2226
    %v2513 = vand.u32 2147483647, %v2231
    %v2514 = vand.u32 2147483647, %v2234
    %v2515 = vand.u32 2147483647, %v2239
    %v2516 = vand.u32 2147483647, %v2242
    %v2517 = vand.u32 2147483647, %v2247
    %v2518 = vand.u32 2147483647, %v2250
    %v2519 = vand.u32 2147483647, %v2255
    %v2520 = vand.u32 2147483647, %v2258
    %v2521 = vand.u32 2147483647, %v2263
    %v2522 = vand.u32 2147483647, %v2266
    %v2523 = vand.u32 2147483647, %v2271
    %v2524 = vand.u32 2147483647, %v2274
    %v2525 = vand.u32 2147483647, %v2279
    %v2526 = vand.u32 2147483647, %v2282
    %v2527 = vand.u32 2147483647, %v2287
    %v2528 = vand.u32 2147483647, %v2290
    %v2529 = vand.u32 2147483647, %v2295
    %v2530 = vand.u32 2147483647, %v2298
    %v2531 = vand.u32 2147483647, %v2303
    %v2532 = vand.u32 2147483647, %v2306
    %v2533 = vand.u32 2147483647, %v2311
    %v2534 = vand.u32 2147483647, %v2314
    %v2535 = vand.u32 2147483647, %v2319
    %v2536 = vand.u32 2147483647, %v2322
    %v2537 = vand.u32 2147483647, %v2327
    %v2538 = vand.u32 2147483647, %v2330
    %v2539 = vand.u32 2147483647, %v2335
    %v2540 = vand.u32 2147483647, %v2338
    %v2541 = vand.u32 2147483647, %v2343
    %v2542 = vand.u32 2147483647, %v2346
    %v2543 = vand.u32 2147483647, %v2351
    %v2544 = vand.u32 2147483647, %v2354
    %v2545 = vand.u32 2147483647, %v2359
    %v2546 = vand.u32 2147483647, %v2362
    %v2547 = vand.u32 2147483647, %v2367
    %v2548 = vand.u32 2147483647, %v2370
    %v2549 = vand.u32 2147483647, %v2375
    %v2550 = vand.u32 2147483647, %v2378
    %v2551 = vand.u32 2147483647, %v2383
    %v2552 = vand.u32 2147483647, %v2386
    %v2553 = vand.u32 2147483647, %v2391
    %v2554 = vand.u32 2147483647, %v2394
    %v2555 = vand.u32 2147483647, %v2399
    %v2556 = vand.u32 2147483647, %v2402
    %v2557 = vand.u32 2147483647, %v2407
    %v2558 = vand.u32 2147483647, %v2410
    %v2559 = vand.u32 2147483647, %v2415
    %v2560 = vand.u32 2147483647, %v2418
    %v2561 = vand.u32 2147483647, %v2423
    %v2562 = vand.u32 2147483647, %v2426
    %v2563 = vand.u32 2147483647, %v2431
    %v2564 = vand.u32 2147483647, %v2434
    %v2565 = vsub.f32 0.0, %v2501
    %v2566 = vsub.f32 0.0, %v2502
    %v2567 = vsub.f32 0.0, %v2503
    %v2568 = vsub.f32 0.0, %v2504
    %v2569 = vsub.f32 0.0, %v2505
    %v2570 = vsub.f32 0.0, %v2506
    %v2571 = vsub.f32 0.0, %v2507
    %v2572 = vsub.f32 0.0, %v2508
    %v2573 = vsub.f32 0.0, %v2509
    %v2574 = vsub.f32 0.0, %v2510
    %v2575 = vsub.f32 0.0, %v2511
    %v2576 = vsub.f32 0.0, %v2512
    %v2577 = vsub.f32 0.0, %v2513
    %v2578 = vsub.f32 0.0, %v2514
    %v2579 = vsub.f32 0.0, %v2515
    %v2580 = vsub.f32 0.0, %v2516
    %v2581 = vsub.f32 0.0, %v2517
    %v2582 = vsub.f32 0.0, %v2518
    %v2583 = vsub.f32 0.0, %v2519
    %v2584 = vsub.f32 0.0, %v2520
    %v2585 = vsub.f32 0.0, %v2521
    %v2586 = vsub.f32 0.0, %v2522
    %v2587 = vsub.f32 0.0, %v2523
    %v2588 = vsub.f32 0.0, %v2524
    %v2589 = vsub.f32 0.0, %v2525
    %v2590 = vsub.f32 0.0, %v2526
    %v2591 = vsub.f32 0.0, %v2527
    %v2592 = vsub.f32 0.0, %v2528
    %v2593 = vsub.f32 0.0, %v2529
    %v2594 = vsub.f32 0.0, %v2530
    %v2595 = vsub.f32 0.0, %v2531
    %v2596 = vsub.f32 0.0, %v2532
    %v2597 = vsub.f32 0.0, %v2533
    %v2598 = vsub.f32 0.0, %v2534
    %v2599 = vsub.f32 0.0, %v2535
    %v2600 = vsub.f32 0.0, %v2536
    %v2601 = vsub.f32 0.0, %v2537
    %v2602 = vsub.f32 0.0, %v2538
    %v2603 = vsub.f32 0.0, %v2539
    %v2604 = vsub.f32 0.0, %v2540
    %v2605 = vsub.f32 0.0, %v2541
    %v2606 = vsub.f32 0.0, %v2542
    %v2607 = vsub.f32 0.0, %v2543
    %v2608 = vsub.f32 0.0, %v2544
    %v2609 = vsub.f32 0.0, %v2545
    %v2610 = vsub.f32 0.0, %v2546
    %v2611 = vsub.f32 0.0, %v2547
    %v2612 = vsub.f32 0.0, %v2548
    %v2613 = vsub.f32 0.0, %v2549
    %v2614 = vsub.f32 0.0, %v2550
    %v2615 = vsub.f32 0.0, %v2551
    %v2616 = vsub.f32 0.0, %v2552
    %v2617 = vsub.f32 0.0, %v2553
    %v2618 = vsub.f32 0.0, %v2554
    %v2619 = vsub.f32 0.0, %v2555
    %v2620 = vsub.f32 0.0, %v2556
    %v2621 = vsub.f32 0.0, %v2557
    %v2622 = vsub.f32 0.0, %v2558
    %v2623 = vsub.f32 0.0, %v2559
    %v2624 = vsub.f32 0.0, %v2560
    %v2625 = vsub.f32 0.0, %v2561
    %v2626 = vsub.f32 0.0, %v2562
    %v2627 = vsub.f32 0.0, %v2563
    %v2628 = vsub.f32 0.0, %v2564
    %v2629 = vmul.f32 %v2565, 1.442695
    %v2630 = vpow.pop %v2629
    %v2631 = vmul.f32 %v2566, 1.442695
    %v2632 = vpow.pop %v2631
    %v2633 = vmul.f32 %v2567, 1.442695
    %v2634 = vpow.pop %v2633
    %v2635 = vmul.f32 %v2568, 1.442695
    %v2636 = vpow.pop %v2635
    %v2637 = vmul.f32 %v2569, 1.442695
    %v2638 = vpow.pop %v2637
    %v2639 = vmul.f32 %v2570, 1.442695
    %v2640 = vpow.pop %v2639
    %v2641 = vmul.f32 %v2571, 1.442695
    %v2642 = vpow.pop %v2641
    %v2643 = vmul.f32 %v2572, 1.442695
    %v2644 = vpow.pop %v2643
    %v2645 = vmul.f32 %v2573, 1.442695
    %v2646 = vpow.pop %v2645
    %v2647 = vmul.f32 %v2574, 1.442695
    %v2648 = vpow.pop %v2647
    %v2649 = vmul.f32 %v2575, 1.442695
    %v2650 = vpow.pop %v2649
    %v2651 = vmul.f32 %v2576, 1.442695
    %v2652 = vpow.pop %v2651
    %v2653 = vmul.f32 %v2577, 1.442695
    %v2654 = vpow.pop %v2653
    %v2655 = vmul.f32 %v2578, 1.442695
    %v2656 = vpow.pop %v2655
    %v2657 = vmul.f32 %v2579, 1.442695
    %v2658 = vpow.pop %v2657
    %v2659 = vmul.f32 %v2580, 1.442695
    %v2660 = vpow.pop %v2659
    %v2661 = vmul.f32 %v2581, 1.442695
    %v2662 = vpow.pop %v2661
    %v2663 = vmul.f32 %v2582, 1.442695
    %v2664 = vpow.pop %v2663
    %v2665 = vmul.f32 %v2583, 1.442695
    %v2666 = vpow.pop %v2665
    %v2667 = vmul.f32 %v2584, 1.442695
    %v2668 = vpow.pop %v2667
    %v2669 = vmul.f32 %v2585, 1.442695
    %v2670 = vpow.pop %v2669
    %v2671 = vmul.f32 %v2586, 1.442695
    %v2672 = vpow.pop %v2671
    %v2673 = vmul.f32 %v2587, 1.442695
    %v2674 = vpow.pop %v2673
    %v2675 = vmul.f32 %v2588, 1.442695
    %v2676 = vpow.pop %v2675
    %v2677 = vmul.f32 %v2589, 1.442695
    %v2678 = vpow.pop %v2677
    %v2679 = vmul.f32 %v2590, 1.442695
    %v2680 = vpow.pop %v2679
    %v2681 = vmul.f32 %v2591, 1.442695
    %v2682 = vpow.pop %v2681
    %v2683 = vmul.f32 %v2592, 1.442695
    %v2684 = vpow.pop %v2683
    %v2685 = vmul.f32 %v2593, 1.442695
    %v2686 = vpow.pop %v2685
    %v2687 = vmul.f32 %v2594, 1.442695
    %v2688 = vpow.pop %v2687
    %v2689 = vmul.f32 %v2595, 1.442695
    %v2690 = vpow.pop %v2689
    %v2691 = vmul.f32 %v2596, 1.442695
    %v2692 = vpow.pop %v2691
    %v2693 = vmul.f32 %v2597, 1.442695
    %v2694 = vpow.pop %v2693
    %v2695 = vmul.f32 %v2598, 1.442695
    %v2696 = vpow.pop %v2695
    %v2697 = vmul.f32 %v2599, 1.442695
    %v2698 = vpow.pop %v2697
    %v2699 = vmul.f32 %v2600, 1.442695
    %v2700 = vpow.pop %v2699
    %v2701 = vmul.f32 %v2601, 1.442695
    %v2702 = vpow.pop %v2701
    %v2703 = vmul.f32 %v2602, 1.442695
    %v2704 = vpow.pop %v2703
    %v2705 = vmul.f32 %v2603, 1.442695
    %v2706 = vpow.pop %v2705
    %v2707 = vmul.f32 %v2604, 1.442695
    %v2708 = vpow.pop %v2707
    %v2709 = vmul.f32 %v2605, 1.442695
    %v2710 = vpow.pop %v2709
    %v2711 = vmul.f32 %v2606, 1.442695
    %v2712 = vpow.pop %v2711
    %v2713 = vmul.f32 %v2607, 1.442695
    %v2714 = vpow.pop %v2713
    %v2715 = vmul.f32 %v2608, 1.442695
    %v2716 = vpow.pop %v2715
    %v2717 = vmul.f32 %v2609, 1.442695
    %v2718 = vpow.pop %v2717
    %v2719 = vmul.f32 %v2610, 1.442695
    %v2720 = vpow.pop %v2719
    %v2721 = vmul.f32 %v2611, 1.442695
    %v2722 = vpow.pop %v2721
    %v2723 = vmul.f32 %v2612, 1.442695
    %v2724 = vpow.pop %v2723
    %v2725 = vmul.f32 %v2613, 1.442695
    %v2726 = vpow.pop %v2725
    %v2727 = vmul.f32 %v2614, 1.442695
    %v2728 = vpow.pop %v2727
    %v2729 = vmul.f32 %v2615, 1.442695
    %v2730 = vpow.pop %v2729
    %v2731 = vmul.f32 %v2616, 1.442695
    %v2732 = vpow.pop %v2731
    %v2733 = vmul.f32 %v2617, 1.442695
    %v2734 = vpow.pop %v2733
    %v2735 = vmul.f32 %v2618, 1.442695
    %v2736 = vpow.pop %v2735
    %v2737 = vmul.f32 %v2619, 1.442695
    %v2738 = vpow.pop %v2737
    %v2739 = vmul.f32 %v2620, 1.442695
    %v2740 = vpow.pop %v2739
    %v2741 = vmul.f32 %v2621, 1.442695
    %v2742 = vpow.pop %v2741
    %v2743 = vmul.f32 %v2622, 1.442695
    %v2744 = vpow.pop %v2743
    %v2745 = vmul.f32 %v2623, 1.442695
    %v2746 = vpow.pop %v2745
    %v2747 = vmul.f32 %v2624, 1.442695
    %v2748 = vpow.pop %v2747
    %v2749 = vmul.f32 %v2625, 1.442695
    %v2750 = vpow.pop %v2749
    %v2751 = vmul.f32 %v2626, 1.442695
    %v2752 = vpow.pop %v2751
    %v2753 = vmul.f32 %v2627, 1.442695
    %v2754 = vpow.pop %v2753
    %v2755 = vmul.f32 %v2628, 1.442695
    %v2756 = vpow.pop %v2755
    %v2757 = vadd.f32 %v2630, 1.0
    %v2758 = vlog2.pop %v2757
    %v2759 = vmul.f32 %v2758, 0.6931472
    %v2760 = vmul.f32 -0.5, %v2630
    %v2761 = vadd.f32 %v2760, 1.0
    %v2762 = vmul.f32 %v2761, %v2630
    %v2763 = vand.u32 2147483647, %v2630
    %vm2764 = vcmp.lt.f32.partialorder %v2763, 0.0004427343
    %v2765 = vsel %vm2764, %v2762, %v2759
    %v2766 = vadd.f32 %v2632, 1.0
    %v2767 = vlog2.pop %v2766
    %v2768 = vmul.f32 %v2767, 0.6931472
    %v2769 = vmul.f32 -0.5, %v2632
    %v2770 = vadd.f32 %v2769, 1.0
    %v2771 = vmul.f32 %v2770, %v2632
    %v2772 = vand.u32 2147483647, %v2632
    %vm2773 = vcmp.lt.f32.partialorder %v2772, 0.0004427343
    %v2774 = vsel %vm2773, %v2771, %v2768
    %v2775 = vadd.f32 %v2634, 1.0
    %v2776 = vlog2.pop %v2775
    %v2777 = vmul.f32 %v2776, 0.6931472
    %v2778 = vmul.f32 -0.5, %v2634
    %v2779 = vadd.f32 %v2778, 1.0
    %v2780 = vmul.f32 %v2779, %v2634
    %v2781 = vand.u32 2147483647, %v2634
    %vm2782 = vcmp.lt.f32.partialorder %v2781, 0.0004427343
    %v2783 = vsel %vm2782, %v2780, %v2777
    %v2784 = vadd.f32 %v2636, 1.0
    %v2785 = vlog2.pop %v2784
    %v2786 = vmul.f32 %v2785, 0.6931472
    %v2787 = vmul.f32 -0.5, %v2636
    %v2788 = vadd.f32 %v2787, 1.0
    %v2789 = vmul.f32 %v2788, %v2636
    %v2790 = vand.u32 2147483647, %v2636
    %vm2791 = vcmp.lt.f32.partialorder %v2790, 0.0004427343
    %v2792 = vsel %vm2791, %v2789, %v2786
    %v2793 = vadd.f32 %v2638, 1.0
    %v2794 = vlog2.pop %v2793
    %v2795 = vmul.f32 %v2794, 0.6931472
    %v2796 = vmul.f32 -0.5, %v2638
    %v2797 = vadd.f32 %v2796, 1.0
    %v2798 = vmul.f32 %v2797, %v2638
    %v2799 = vand.u32 2147483647, %v2638
    %vm2800 = vcmp.lt.f32.partialorder %v2799, 0.0004427343
    %v2801 = vsel %vm2800, %v2798, %v2795
    %v2802 = vadd.f32 %v2640, 1.0
    %v2803 = vlog2.pop %v2802
    %v2804 = vmul.f32 %v2803, 0.6931472
    %v2805 = vmul.f32 -0.5, %v2640
    %v2806 = vadd.f32 %v2805, 1.0
    %v2807 = vmul.f32 %v2806, %v2640
    %v2808 = vand.u32 2147483647, %v2640
    %vm2809 = vcmp.lt.f32.partialorder %v2808, 0.0004427343
    %v2810 = vsel %vm2809, %v2807, %v2804
    %v2811 = vadd.f32 %v2642, 1.0
    %v2812 = vlog2.pop %v2811
    %v2813 = vmul.f32 %v2812, 0.6931472
    %v2814 = vmul.f32 -0.5, %v2642
    %v2815 = vadd.f32 %v2814, 1.0
    %v2816 = vmul.f32 %v2815, %v2642
    %v2817 = vand.u32 2147483647, %v2642
    %vm2818 = vcmp.lt.f32.partialorder %v2817, 0.0004427343
    %v2819 = vsel %vm2818, %v2816, %v2813
    %v2820 = vadd.f32 %v2644, 1.0
    %v2821 = vlog2.pop %v2820
    %v2822 = vmul.f32 %v2821, 0.6931472
    %v2823 = vmul.f32 -0.5, %v2644
    %v2824 = vadd.f32 %v2823, 1.0
    %v2825 = vmul.f32 %v2824, %v2644
    %v2826 = vand.u32 2147483647, %v2644
    %vm2827 = vcmp.lt.f32.partialorder %v2826, 0.0004427343
    %v2828 = vsel %vm2827, %v2825, %v2822
    %v2829 = vadd.f32 %v2646, 1.0
    %v2830 = vlog2.pop %v2829
    %v2831 = vmul.f32 %v2830, 0.6931472
    %v2832 = vmul.f32 -0.5, %v2646
    %v2833 = vadd.f32 %v2832, 1.0
    %v2834 = vmul.f32 %v2833, %v2646
    %v2835 = vand.u32 2147483647, %v2646
    %vm2836 = vcmp.lt.f32.partialorder %v2835, 0.0004427343
    %v2837 = vsel %vm2836, %v2834, %v2831
    %v2838 = vadd.f32 %v2648, 1.0
    %v2839 = vlog2.pop %v2838
    %v2840 = vmul.f32 %v2839, 0.6931472
    %v2841 = vmul.f32 -0.5, %v2648
    %v2842 = vadd.f32 %v2841, 1.0
    %v2843 = vmul.f32 %v2842, %v2648
    %v2844 = vand.u32 2147483647, %v2648
    %vm2845 = vcmp.lt.f32.partialorder %v2844, 0.0004427343
    %v2846 = vsel %vm2845, %v2843, %v2840
    %v2847 = vadd.f32 %v2650, 1.0
    %v2848 = vlog2.pop %v2847
    %v2849 = vmul.f32 %v2848, 0.6931472
    %v2850 = vmul.f32 -0.5, %v2650
    %v2851 = vadd.f32 %v2850, 1.0
    %v2852 = vmul.f32 %v2851, %v2650
    %v2853 = vand.u32 2147483647, %v2650
    %vm2854 = vcmp.lt.f32.partialorder %v2853, 0.0004427343
    %v2855 = vsel %vm2854, %v2852, %v2849
    %v2856 = vadd.f32 %v2652, 1.0
    %v2857 = vlog2.pop %v2856
    %v2858 = vmul.f32 %v2857, 0.6931472
    %v2859 = vmul.f32 -0.5, %v2652
    %v2860 = vadd.f32 %v2859, 1.0
    %v2861 = vmul.f32 %v2860, %v2652
    %v2862 = vand.u32 2147483647, %v2652
    %vm2863 = vcmp.lt.f32.partialorder %v2862, 0.0004427343
    %v2864 = vsel %vm2863, %v2861, %v2858
    %v2865 = vadd.f32 %v2654, 1.0
    %v2866 = vlog2.pop %v2865
    %v2867 = vmul.f32 %v2866, 0.6931472
    %v2868 = vmul.f32 -0.5, %v2654
    %v2869 = vadd.f32 %v2868, 1.0
    %v2870 = vmul.f32 %v2869, %v2654
    %v2871 = vand.u32 2147483647, %v2654
    %vm2872 = vcmp.lt.f32.partialorder %v2871, 0.0004427343
    %v2873 = vsel %vm2872, %v2870, %v2867
    %v2874 = vadd.f32 %v2656, 1.0
    %v2875 = vlog2.pop %v2874
    %v2876 = vmul.f32 %v2875, 0.6931472
    %v2877 = vmul.f32 -0.5, %v2656
    %v2878 = vadd.f32 %v2877, 1.0
    %v2879 = vmul.f32 %v2878, %v2656
    %v2880 = vand.u32 2147483647, %v2656
    %vm2881 = vcmp.lt.f32.partialorder %v2880, 0.0004427343
    %v2882 = vsel %vm2881, %v2879, %v2876
    %v2883 = vadd.f32 %v2658, 1.0
    %v2884 = vlog2.pop %v2883
    %v2885 = vmul.f32 %v2884, 0.6931472
    %v2886 = vmul.f32 -0.5, %v2658
    %v2887 = vadd.f32 %v2886, 1.0
    %v2888 = vmul.f32 %v2887, %v2658
    %v2889 = vand.u32 2147483647, %v2658
    %vm2890 = vcmp.lt.f32.partialorder %v2889, 0.0004427343
    %v2891 = vsel %vm2890, %v2888, %v2885
    %v2892 = vadd.f32 %v2660, 1.0
    %v2893 = vlog2.pop %v2892
    %v2894 = vmul.f32 %v2893, 0.6931472
    %v2895 = vmul.f32 -0.5, %v2660
    %v2896 = vadd.f32 %v2895, 1.0
    %v2897 = vmul.f32 %v2896, %v2660
    %v2898 = vand.u32 2147483647, %v2660
    %vm2899 = vcmp.lt.f32.partialorder %v2898, 0.0004427343
    %v2900 = vsel %vm2899, %v2897, %v2894
    %v2901 = vadd.f32 %v2662, 1.0
    %v2902 = vlog2.pop %v2901
    %v2903 = vmul.f32 %v2902, 0.6931472
    %v2904 = vmul.f32 -0.5, %v2662
    %v2905 = vadd.f32 %v2904, 1.0
    %v2906 = vmul.f32 %v2905, %v2662
    %v2907 = vand.u32 2147483647, %v2662
    %vm2908 = vcmp.lt.f32.partialorder %v2907, 0.0004427343
    %v2909 = vsel %vm2908, %v2906, %v2903
    %v2910 = vadd.f32 %v2664, 1.0
    %v2911 = vlog2.pop %v2910
    %v2912 = vmul.f32 %v2911, 0.6931472
    %v2913 = vmul.f32 -0.5, %v2664
    %v2914 = vadd.f32 %v2913, 1.0
    %v2915 = vmul.f32 %v2914, %v2664
    %v2916 = vand.u32 2147483647, %v2664
    %vm2917 = vcmp.lt.f32.partialorder %v2916, 0.0004427343
    %v2918 = vsel %vm2917, %v2915, %v2912
    %v2919 = vadd.f32 %v2666, 1.0
    %v2920 = vlog2.pop %v2919
    %v2921 = vmul.f32 %v2920, 0.6931472
    %v2922 = vmul.f32 -0.5, %v2666
    %v2923 = vadd.f32 %v2922, 1.0
    %v2924 = vmul.f32 %v2923, %v2666
    %v2925 = vand.u32 2147483647, %v2666
    %vm2926 = vcmp.lt.f32.partialorder %v2925, 0.0004427343
    %v2927 = vsel %vm2926, %v2924, %v2921
    %v2928 = vadd.f32 %v2668, 1.0
    %v2929 = vlog2.pop %v2928
    %v2930 = vmul.f32 %v2929, 0.6931472
    %v2931 = vmul.f32 -0.5, %v2668
    %v2932 = vadd.f32 %v2931, 1.0
    %v2933 = vmul.f32 %v2932, %v2668
    %v2934 = vand.u32 2147483647, %v2668
    %vm2935 = vcmp.lt.f32.partialorder %v2934, 0.0004427343
    %v2936 = vsel %vm2935, %v2933, %v2930
    %v2937 = vadd.f32 %v2670, 1.0
    %v2938 = vlog2.pop %v2937
    %v2939 = vmul.f32 %v2938, 0.6931472
    %v2940 = vmul.f32 -0.5, %v2670
    %v2941 = vadd.f32 %v2940, 1.0
    %v2942 = vmul.f32 %v2941, %v2670
    %v2943 = vand.u32 2147483647, %v2670
    %vm2944 = vcmp.lt.f32.partialorder %v2943, 0.0004427343
    %v2945 = vsel %vm2944, %v2942, %v2939
    %v2946 = vadd.f32 %v2672, 1.0
    %v2947 = vlog2.pop %v2946
    %v2948 = vmul.f32 %v2947, 0.6931472
    %v2949 = vmul.f32 -0.5, %v2672
    %v2950 = vadd.f32 %v2949, 1.0
    %v2951 = vmul.f32 %v2950, %v2672
    %v2952 = vand.u32 2147483647, %v2672
    %vm2953 = vcmp.lt.f32.partialorder %v2952, 0.0004427343
    %v2954 = vsel %vm2953, %v2951, %v2948
    %v2955 = vadd.f32 %v2674, 1.0
    %v2956 = vlog2.pop %v2955
    %v2957 = vmul.f32 %v2956, 0.6931472
    %v2958 = vmul.f32 -0.5, %v2674
    %v2959 = vadd.f32 %v2958, 1.0
    %v2960 = vmul.f32 %v2959, %v2674
    %v2961 = vand.u32 2147483647, %v2674
    %vm2962 = vcmp.lt.f32.partialorder %v2961, 0.0004427343
    %v2963 = vsel %vm2962, %v2960, %v2957
    %v2964 = vadd.f32 %v2676, 1.0
    %v2965 = vlog2.pop %v2964
    %v2966 = vmul.f32 %v2965, 0.6931472
    %v2967 = vmul.f32 -0.5, %v2676
    %v2968 = vadd.f32 %v2967, 1.0
    %v2969 = vmul.f32 %v2968, %v2676
    %v2970 = vand.u32 2147483647, %v2676
    %vm2971 = vcmp.lt.f32.partialorder %v2970, 0.0004427343
    %v2972 = vsel %vm2971, %v2969, %v2966
    %v2973 = vadd.f32 %v2678, 1.0
    %v2974 = vlog2.pop %v2973
    %v2975 = vmul.f32 %v2974, 0.6931472
    %v2976 = vmul.f32 -0.5, %v2678
    %v2977 = vadd.f32 %v2976, 1.0
    %v2978 = vmul.f32 %v2977, %v2678
    %v2979 = vand.u32 2147483647, %v2678
    %vm2980 = vcmp.lt.f32.partialorder %v2979, 0.0004427343
    %v2981 = vsel %vm2980, %v2978, %v2975
    %v2982 = vadd.f32 %v2680, 1.0
    %v2983 = vlog2.pop %v2982
    %v2984 = vmul.f32 %v2983, 0.6931472
    %v2985 = vmul.f32 -0.5, %v2680
    %v2986 = vadd.f32 %v2985, 1.0
    %v2987 = vmul.f32 %v2986, %v2680
    %v2988 = vand.u32 2147483647, %v2680
    %vm2989 = vcmp.lt.f32.partialorder %v2988, 0.0004427343
    %v2990 = vsel %vm2989, %v2987, %v2984
    %v2991 = vadd.f32 %v2682, 1.0
    %v2992 = vlog2.pop %v2991
    %v2993 = vmul.f32 %v2992, 0.6931472
    %v2994 = vmul.f32 -0.5, %v2682
    %v2995 = vadd.f32 %v2994, 1.0
    %v2996 = vmul.f32 %v2995, %v2682
    %v2997 = vand.u32 2147483647, %v2682
    %vm2998 = vcmp.lt.f32.partialorder %v2997, 0.0004427343
    %v2999 = vsel %vm2998, %v2996, %v2993
    %v3000 = vadd.f32 %v2684, 1.0
    %v3001 = vlog2.pop %v3000
    %v3002 = vmul.f32 %v3001, 0.6931472
    %v3003 = vmul.f32 -0.5, %v2684
    %v3004 = vadd.f32 %v3003, 1.0
    %v3005 = vmul.f32 %v3004, %v2684
    %v3006 = vand.u32 2147483647, %v2684
    %vm3007 = vcmp.lt.f32.partialorder %v3006, 0.0004427343
    %v3008 = vsel %vm3007, %v3005, %v3002
    %v3009 = vadd.f32 %v2686, 1.0
    %v3010 = vlog2.pop %v3009
    %v3011 = vmul.f32 %v3010, 0.6931472
    %v3012 = vmul.f32 -0.5, %v2686
    %v3013 = vadd.f32 %v3012, 1.0
    %v3014 = vmul.f32 %v3013, %v2686
    %v3015 = vand.u32 2147483647, %v2686
    %vm3016 = vcmp.lt.f32.partialorder %v3015, 0.0004427343
    %v3017 = vsel %vm3016, %v3014, %v3011
    %v3018 = vadd.f32 %v2688, 1.0
    %v3019 = vlog2.pop %v3018
    %v3020 = vmul.f32 %v3019, 0.6931472
    %v3021 = vmul.f32 -0.5, %v2688
    %v3022 = vadd.f32 %v3021, 1.0
    %v3023 = vmul.f32 %v3022, %v2688
    %v3024 = vand.u32 2147483647, %v2688
    %vm3025 = vcmp.lt.f32.partialorder %v3024, 0.0004427343
    %v3026 = vsel %vm3025, %v3023, %v3020
    %v3027 = vadd.f32 %v2690, 1.0
    %v3028 = vlog2.pop %v3027
    %v3029 = vmul.f32 %v3028, 0.6931472
    %v3030 = vmul.f32 -0.5, %v2690
    %v3031 = vadd.f32 %v3030, 1.0
    %v3032 = vmul.f32 %v3031, %v2690
    %v3033 = vand.u32 2147483647, %v2690
    %vm3034 = vcmp.lt.f32.partialorder %v3033, 0.0004427343
    %v3035 = vsel %vm3034, %v3032, %v3029
    %v3036 = vadd.f32 %v2692, 1.0
    %v3037 = vlog2.pop %v3036
    %v3038 = vmul.f32 %v3037, 0.6931472
    %v3039 = vmul.f32 -0.5, %v2692
    %v3040 = vadd.f32 %v3039, 1.0
    %v3041 = vmul.f32 %v3040, %v2692
    %v3042 = vand.u32 2147483647, %v2692
    %vm3043 = vcmp.lt.f32.partialorder %v3042, 0.0004427343
    %v3044 = vsel %vm3043, %v3041, %v3038
    %v3045 = vadd.f32 %v2694, 1.0
    %v3046 = vlog2.pop %v3045
    %v3047 = vmul.f32 %v3046, 0.6931472
    %v3048 = vmul.f32 -0.5, %v2694
    %v3049 = vadd.f32 %v3048, 1.0
    %v3050 = vmul.f32 %v3049, %v2694
    %v3051 = vand.u32 2147483647, %v2694
    %vm3052 = vcmp.lt.f32.partialorder %v3051, 0.0004427343
    %v3053 = vsel %vm3052, %v3050, %v3047
    %v3054 = vadd.f32 %v2696, 1.0
    %v3055 = vlog2.pop %v3054
    %v3056 = vmul.f32 %v3055, 0.6931472
    %v3057 = vmul.f32 -0.5, %v2696
    %v3058 = vadd.f32 %v3057, 1.0
    %v3059 = vmul.f32 %v3058, %v2696
    %v3060 = vand.u32 2147483647, %v2696
    %vm3061 = vcmp.lt.f32.partialorder %v3060, 0.0004427343
    %v3062 = vsel %vm3061, %v3059, %v3056
    %v3063 = vadd.f32 %v2698, 1.0
    %v3064 = vlog2.pop %v3063
    %v3065 = vmul.f32 %v3064, 0.6931472
    %v3066 = vmul.f32 -0.5, %v2698
    %v3067 = vadd.f32 %v3066, 1.0
    %v3068 = vmul.f32 %v3067, %v2698
    %v3069 = vand.u32 2147483647, %v2698
    %vm3070 = vcmp.lt.f32.partialorder %v3069, 0.0004427343
    %v3071 = vsel %vm3070, %v3068, %v3065
    %v3072 = vadd.f32 %v2700, 1.0
    %v3073 = vlog2.pop %v3072
    %v3074 = vmul.f32 %v3073, 0.6931472
    %v3075 = vmul.f32 -0.5, %v2700
    %v3076 = vadd.f32 %v3075, 1.0
    %v3077 = vmul.f32 %v3076, %v2700
    %v3078 = vand.u32 2147483647, %v2700
    %vm3079 = vcmp.lt.f32.partialorder %v3078, 0.0004427343
    %v3080 = vsel %vm3079, %v3077, %v3074
    %v3081 = vadd.f32 %v2702, 1.0
    %v3082 = vlog2.pop %v3081
    %v3083 = vmul.f32 %v3082, 0.6931472
    %v3084 = vmul.f32 -0.5, %v2702
    %v3085 = vadd.f32 %v3084, 1.0
    %v3086 = vmul.f32 %v3085, %v2702
    %v3087 = vand.u32 2147483647, %v2702
    %vm3088 = vcmp.lt.f32.partialorder %v3087, 0.0004427343
    %v3089 = vsel %vm3088, %v3086, %v3083
    %v3090 = vadd.f32 %v2704, 1.0
    %v3091 = vlog2.pop %v3090
    %v3092 = vmul.f32 %v3091, 0.6931472
    %v3093 = vmul.f32 -0.5, %v2704
    %v3094 = vadd.f32 %v3093, 1.0
    %v3095 = vmul.f32 %v3094, %v2704
    %v3096 = vand.u32 2147483647, %v2704
    %vm3097 = vcmp.lt.f32.partialorder %v3096, 0.0004427343
    %v3098 = vsel %vm3097, %v3095, %v3092
    %v3099 = vadd.f32 %v2706, 1.0
    %v3100 = vlog2.pop %v3099
    %v3101 = vmul.f32 %v3100, 0.6931472
    %v3102 = vmul.f32 -0.5, %v2706
    %v3103 = vadd.f32 %v3102, 1.0
    %v3104 = vmul.f32 %v3103, %v2706
    %v3105 = vand.u32 2147483647, %v2706
    %vm3106 = vcmp.lt.f32.partialorder %v3105, 0.0004427343
    %v3107 = vsel %vm3106, %v3104, %v3101
    %v3108 = vadd.f32 %v2708, 1.0
    %v3109 = vlog2.pop %v3108
    %v3110 = vmul.f32 %v3109, 0.6931472
    %v3111 = vmul.f32 -0.5, %v2708
    %v3112 = vadd.f32 %v3111, 1.0
    %v3113 = vmul.f32 %v3112, %v2708
    %v3114 = vand.u32 2147483647, %v2708
    %vm3115 = vcmp.lt.f32.partialorder %v3114, 0.0004427343
    %v3116 = vsel %vm3115, %v3113, %v3110
    %v3117 = vadd.f32 %v2710, 1.0
    %v3118 = vlog2.pop %v3117
    %v3119 = vmul.f32 %v3118, 0.6931472
    %v3120 = vmul.f32 -0.5, %v2710
    %v3121 = vadd.f32 %v3120, 1.0
    %v3122 = vmul.f32 %v3121, %v2710
    %v3123 = vand.u32 2147483647, %v2710
    %vm3124 = vcmp.lt.f32.partialorder %v3123, 0.0004427343
    %v3125 = vsel %vm3124, %v3122, %v3119
    %v3126 = vadd.f32 %v2712, 1.0
    %v3127 = vlog2.pop %v3126
    %v3128 = vmul.f32 %v3127, 0.6931472
    %v3129 = vmul.f32 -0.5, %v2712
    %v3130 = vadd.f32 %v3129, 1.0
    %v3131 = vmul.f32 %v3130, %v2712
    %v3132 = vand.u32 2147483647, %v2712
    %vm3133 = vcmp.lt.f32.partialorder %v3132, 0.0004427343
    %v3134 = vsel %vm3133, %v3131, %v3128
    %v3135 = vadd.f32 %v2714, 1.0
    %v3136 = vlog2.pop %v3135
    %v3137 = vmul.f32 %v3136, 0.6931472
    %v3138 = vmul.f32 -0.5, %v2714
    %v3139 = vadd.f32 %v3138, 1.0
    %v3140 = vmul.f32 %v3139, %v2714
    %v3141 = vand.u32 2147483647, %v2714
    %vm3142 = vcmp.lt.f32.partialorder %v3141, 0.0004427343
    %v3143 = vsel %vm3142, %v3140, %v3137
    %v3144 = vadd.f32 %v2716, 1.0
    %v3145 = vlog2.pop %v3144
    %v3146 = vmul.f32 %v3145, 0.6931472
    %v3147 = vmul.f32 -0.5, %v2716
    %v3148 = vadd.f32 %v3147, 1.0
    %v3149 = vmul.f32 %v3148, %v2716
    %v3150 = vand.u32 2147483647, %v2716
    %vm3151 = vcmp.lt.f32.partialorder %v3150, 0.0004427343
    %v3152 = vsel %vm3151, %v3149, %v3146
    %v3153 = vadd.f32 %v2718, 1.0
    %v3154 = vlog2.pop %v3153
    %v3155 = vmul.f32 %v3154, 0.6931472
    %v3156 = vmul.f32 -0.5, %v2718
    %v3157 = vadd.f32 %v3156, 1.0
    %v3158 = vmul.f32 %v3157, %v2718
    %v3159 = vand.u32 2147483647, %v2718
    %vm3160 = vcmp.lt.f32.partialorder %v3159, 0.0004427343
    %v3161 = vsel %vm3160, %v3158, %v3155
    %v3162 = vadd.f32 %v2720, 1.0
    %v3163 = vlog2.pop %v3162
    %v3164 = vmul.f32 %v3163, 0.6931472
    %v3165 = vmul.f32 -0.5, %v2720
    %v3166 = vadd.f32 %v3165, 1.0
    %v3167 = vmul.f32 %v3166, %v2720
    %v3168 = vand.u32 2147483647, %v2720
    %vm3169 = vcmp.lt.f32.partialorder %v3168, 0.0004427343
    %v3170 = vsel %vm3169, %v3167, %v3164
    %v3171 = vadd.f32 %v2722, 1.0
    %v3172 = vlog2.pop %v3171
    %v3173 = vmul.f32 %v3172, 0.6931472
    %v3174 = vmul.f32 -0.5, %v2722
    %v3175 = vadd.f32 %v3174, 1.0
    %v3176 = vmul.f32 %v3175, %v2722
    %v3177 = vand.u32 2147483647, %v2722
    %vm3178 = vcmp.lt.f32.partialorder %v3177, 0.0004427343
    %v3179 = vsel %vm3178, %v3176, %v3173
    %v3180 = vadd.f32 %v2724, 1.0
    %v3181 = vlog2.pop %v3180
    %v3182 = vmul.f32 %v3181, 0.6931472
    %v3183 = vmul.f32 -0.5, %v2724
    %v3184 = vadd.f32 %v3183, 1.0
    %v3185 = vmul.f32 %v3184, %v2724
    %v3186 = vand.u32 2147483647, %v2724
    %vm3187 = vcmp.lt.f32.partialorder %v3186, 0.0004427343
    %v3188 = vsel %vm3187, %v3185, %v3182
    %v3189 = vadd.f32 %v2726, 1.0
    %v3190 = vlog2.pop %v3189
    %v3191 = vmul.f32 %v3190, 0.6931472
    %v3192 = vmul.f32 -0.5, %v2726
    %v3193 = vadd.f32 %v3192, 1.0
    %v3194 = vmul.f32 %v3193, %v2726
    %v3195 = vand.u32 2147483647, %v2726
    %vm3196 = vcmp.lt.f32.partialorder %v3195, 0.0004427343
    %v3197 = vsel %vm3196, %v3194, %v3191
    %v3198 = vadd.f32 %v2728, 1.0
    %v3199 = vlog2.pop %v3198
    %v3200 = vmul.f32 %v3199, 0.6931472
    %v3201 = vmul.f32 -0.5, %v2728
    %v3202 = vadd.f32 %v3201, 1.0
    %v3203 = vmul.f32 %v3202, %v2728
    %v3204 = vand.u32 2147483647, %v2728
    %vm3205 = vcmp.lt.f32.partialorder %v3204, 0.0004427343
    %v3206 = vsel %vm3205, %v3203, %v3200
    %v3207 = vadd.f32 %v2730, 1.0
    %v3208 = vlog2.pop %v3207
    %v3209 = vmul.f32 %v3208, 0.6931472
    %v3210 = vmul.f32 -0.5, %v2730
    %v3211 = vadd.f32 %v3210, 1.0
    %v3212 = vmul.f32 %v3211, %v2730
    %v3213 = vand.u32 2147483647, %v2730
    %vm3214 = vcmp.lt.f32.partialorder %v3213, 0.0004427343
    %v3215 = vsel %vm3214, %v3212, %v3209
    %v3216 = vadd.f32 %v2732, 1.0
    %v3217 = vlog2.pop %v3216
    %v3218 = vmul.f32 %v3217, 0.6931472
    %v3219 = vmul.f32 -0.5, %v2732
    %v3220 = vadd.f32 %v3219, 1.0
    %v3221 = vmul.f32 %v3220, %v2732
    %v3222 = vand.u32 2147483647, %v2732
    %vm3223 = vcmp.lt.f32.partialorder %v3222, 0.0004427343
    %v3224 = vsel %vm3223, %v3221, %v3218
    %v3225 = vadd.f32 %v2734, 1.0
    %v3226 = vlog2.pop %v3225
    %v3227 = vmul.f32 %v3226, 0.6931472
    %v3228 = vmul.f32 -0.5, %v2734
    %v3229 = vadd.f32 %v3228, 1.0
    %v3230 = vmul.f32 %v3229, %v2734
    %v3231 = vand.u32 2147483647, %v2734
    %vm3232 = vcmp.lt.f32.partialorder %v3231, 0.0004427343
    %v3233 = vsel %vm3232, %v3230, %v3227
    %v3234 = vadd.f32 %v2736, 1.0
    %v3235 = vlog2.pop %v3234
    %v3236 = vmul.f32 %v3235, 0.6931472
    %v3237 = vmul.f32 -0.5, %v2736
    %v3238 = vadd.f32 %v3237, 1.0
    %v3239 = vmul.f32 %v3238, %v2736
    %v3240 = vand.u32 2147483647, %v2736
    %vm3241 = vcmp.lt.f32.partialorder %v3240, 0.0004427343
    %v3242 = vsel %vm3241, %v3239, %v3236
    %v3243 = vadd.f32 %v2738, 1.0
    %v3244 = vlog2.pop %v3243
    %v3245 = vmul.f32 %v3244, 0.6931472
    %v3246 = vmul.f32 -0.5, %v2738
    %v3247 = vadd.f32 %v3246, 1.0
    %v3248 = vmul.f32 %v3247, %v2738
    %v3249 = vand.u32 2147483647, %v2738
    %vm3250 = vcmp.lt.f32.partialorder %v3249, 0.0004427343
    %v3251 = vsel %vm3250, %v3248, %v3245
    %v3252 = vadd.f32 %v2740, 1.0
    %v3253 = vlog2.pop %v3252
    %v3254 = vmul.f32 %v3253, 0.6931472
    %v3255 = vmul.f32 -0.5, %v2740
    %v3256 = vadd.f32 %v3255, 1.0
    %v3257 = vmul.f32 %v3256, %v2740
    %v3258 = vand.u32 2147483647, %v2740
    %vm3259 = vcmp.lt.f32.partialorder %v3258, 0.0004427343
    %v3260 = vsel %vm3259, %v3257, %v3254
    %v3261 = vadd.f32 %v2742, 1.0
    %v3262 = vlog2.pop %v3261
    %v3263 = vmul.f32 %v3262, 0.6931472
    %v3264 = vmul.f32 -0.5, %v2742
    %v3265 = vadd.f32 %v3264, 1.0
    %v3266 = vmul.f32 %v3265, %v2742
    %v3267 = vand.u32 2147483647, %v2742
    %vm3268 = vcmp.lt.f32.partialorder %v3267, 0.0004427343
    %v3269 = vsel %vm3268, %v3266, %v3263
    %v3270 = vadd.f32 %v2744, 1.0
    %v3271 = vlog2.pop %v3270
    %v3272 = vmul.f32 %v3271, 0.6931472
    %v3273 = vmul.f32 -0.5, %v2744
    %v3274 = vadd.f32 %v3273, 1.0
    %v3275 = vmul.f32 %v3274, %v2744
    %v3276 = vand.u32 2147483647, %v2744
    %vm3277 = vcmp.lt.f32.partialorder %v3276, 0.0004427343
    %v3278 = vsel %vm3277, %v3275, %v3272
    %v3279 = vadd.f32 %v2746, 1.0
    %v3280 = vlog2.pop %v3279
    %v3281 = vmul.f32 %v3280, 0.6931472
    %v3282 = vmul.f32 -0.5, %v2746
    %v3283 = vadd.f32 %v3282, 1.0
    %v3284 = vmul.f32 %v3283, %v2746
    %v3285 = vand.u32 2147483647, %v2746
    %vm3286 = vcmp.lt.f32.partialorder %v3285, 0.0004427343
    %v3287 = vsel %vm3286, %v3284, %v3281
    %v3288 = vadd.f32 %v2748, 1.0
    %v3289 = vlog2.pop %v3288
    %v3290 = vmul.f32 %v3289, 0.6931472
    %v3291 = vmul.f32 -0.5, %v2748
    %v3292 = vadd.f32 %v3291, 1.0
    %v3293 = vmul.f32 %v3292, %v2748
    %v3294 = vand.u32 2147483647, %v2748
    %vm3295 = vcmp.lt.f32.partialorder %v3294, 0.0004427343
    %v3296 = vsel %vm3295, %v3293, %v3290
    %v3297 = vadd.f32 %v2750, 1.0
    %v3298 = vlog2.pop %v3297
    %v3299 = vmul.f32 %v3298, 0.6931472
    %v3300 = vmul.f32 -0.5, %v2750
    %v3301 = vadd.f32 %v3300, 1.0
    %v3302 = vmul.f32 %v3301, %v2750
    %v3303 = vand.u32 2147483647, %v2750
    %vm3304 = vcmp.lt.f32.partialorder %v3303, 0.0004427343
    %v3305 = vsel %vm3304, %v3302, %v3299
    %v3306 = vadd.f32 %v2752, 1.0
    %v3307 = vlog2.pop %v3306
    %v3308 = vmul.f32 %v3307, 0.6931472
    %v3309 = vmul.f32 -0.5, %v2752
    %v3310 = vadd.f32 %v3309, 1.0
    %v3311 = vmul.f32 %v3310, %v2752
    %v3312 = vand.u32 2147483647, %v2752
    %vm3313 = vcmp.lt.f32.partialorder %v3312, 0.0004427343
    %v3314 = vsel %vm3313, %v3311, %v3308
    %v3315 = vadd.f32 %v2754, 1.0
    %v3316 = vlog2.pop %v3315
    %v3317 = vmul.f32 %v3316, 0.6931472
    %v3318 = vmul.f32 -0.5, %v2754
    %v3319 = vadd.f32 %v3318, 1.0
    %v3320 = vmul.f32 %v3319, %v2754
    %v3321 = vand.u32 2147483647, %v2754
    %vm3322 = vcmp.lt.f32.partialorder %v3321, 0.0004427343
    %v3323 = vsel %vm3322, %v3320, %v3317
    %v3324 = vadd.f32 %v2756, 1.0
    %v3325 = vlog2.pop %v3324
    %v3326 = vmul.f32 %v3325, 0.6931472
    %v3327 = vmul.f32 -0.5, %v2756
    %v3328 = vadd.f32 %v3327, 1.0
    %v3329 = vmul.f32 %v3328, %v2756
    %v3330 = vand.u32 2147483647, %v2756
    %vm3331 = vcmp.lt.f32.partialorder %v3330, 0.0004427343
    %v3332 = vsel %vm3331, %v3329, %v3326
    %v3333 = vadd.f32 %v2437, %v2765
    %v3334 = vadd.f32 %v2438, %v2774
    %v3335 = vadd.f32 %v2439, %v2783
    %v3336 = vadd.f32 %v2440, %v2792
    %v3337 = vadd.f32 %v2441, %v2801
    %v3338 = vadd.f32 %v2442, %v2810
    %v3339 = vadd.f32 %v2443, %v2819
    %v3340 = vadd.f32 %v2444, %v2828
    %v3341 = vadd.f32 %v2445, %v2837
    %v3342 = vadd.f32 %v2446, %v2846
    %v3343 = vadd.f32 %v2447, %v2855
    %v3344 = vadd.f32 %v2448, %v2864
    %v3345 = vadd.f32 %v2449, %v2873
    %v3346 = vadd.f32 %v2450, %v2882
    %v3347 = vadd.f32 %v2451, %v2891
    %v3348 = vadd.f32 %v2452, %v2900
    %v3349 = vadd.f32 %v2453, %v2909
    %v3350 = vadd.f32 %v2454, %v2918
    %v3351 = vadd.f32 %v2455, %v2927
    %v3352 = vadd.f32 %v2456, %v2936
    %v3353 = vadd.f32 %v2457, %v2945
    %v3354 = vadd.f32 %v2458, %v2954
    %v3355 = vadd.f32 %v2459, %v2963
    %v3356 = vadd.f32 %v2460, %v2972
    %v3357 = vadd.f32 %v2461, %v2981
    %v3358 = vadd.f32 %v2462, %v2990
    %v3359 = vadd.f32 %v2463, %v2999
    %v3360 = vadd.f32 %v2464, %v3008
    %v3361 = vadd.f32 %v2465, %v3017
    %v3362 = vadd.f32 %v2466, %v3026
    %v3363 = vadd.f32 %v2467, %v3035
    %v3364 = vadd.f32 %v2468, %v3044
    %v3365 = vadd.f32 %v2469, %v3053
    %v3366 = vadd.f32 %v2470, %v3062
    %v3367 = vadd.f32 %v2471, %v3071
    %v3368 = vadd.f32 %v2472, %v3080
    %v3369 = vadd.f32 %v2473, %v3089
    %v3370 = vadd.f32 %v2474, %v3098
    %v3371 = vadd.f32 %v2475, %v3107
    %v3372 = vadd.f32 %v2476, %v3116
    %v3373 = vadd.f32 %v2477, %v3125
    %v3374 = vadd.f32 %v2478, %v3134
    %v3375 = vadd.f32 %v2479, %v3143
    %v3376 = vadd.f32 %v2480, %v3152
    %v3377 = vadd.f32 %v2481, %v3161
    %v3378 = vadd.f32 %v2482, %v3170
    %v3379 = vadd.f32 %v2483, %v3179
    %v3380 = vadd.f32 %v2484, %v3188
    %v3381 = vadd.f32 %v2485, %v3197
    %v3382 = vadd.f32 %v2486, %v3206
    %v3383 = vadd.f32 %v2487, %v3215
    %v3384 = vadd.f32 %v2488, %v3224
    %v3385 = vadd.f32 %v2489, %v3233
    %v3386 = vadd.f32 %v2490, %v3242
    %v3387 = vadd.f32 %v2491, %v3251
    %v3388 = vadd.f32 %v2492, %v3260
    %v3389 = vadd.f32 %v2493, %v3269
    %v3390 = vadd.f32 %v2494, %v3278
    %v3391 = vadd.f32 %v2495, %v3287
    %v3392 = vadd.f32 %v2496, %v3296
    %v3393 = vadd.f32 %v2497, %v3305
    %v3394 = vadd.f32 %v2498, %v3314
    %v3395 = vadd.f32 %v2499, %v3323
    %v3396 = vadd.f32 %v2500, %v3332
    %v3397 = vlaneseq
    %v3398 = vand.u32 %v3397, 127
    %vm3399 = vcmp.ge.s32.totalorder %v3398, 4
    %vm3400 = vcmp.lt.s32.totalorder %v3398, 8
    %vm3401 = vmand %vm3399, %vm3400
    %v3402 = vsel %vm3401, %v3333, %v2183
    %v3403 = vsel %vm3401, %v3334, %v2186
    %v3404 = vsel %vm3401, %v3335, %v2191
    %v3405 = vsel %vm3401, %v3336, %v2194
    %v3406 = vsel %vm3401, %v3337, %v2199
    %v3407 = vsel %vm3401, %v3338, %v2202
    %v3408 = vsel %vm3401, %v3339, %v2207
    %v3409 = vsel %vm3401, %v3340, %v2210
    %v3410 = vsel %vm3401, %v3341, %v2215
    %v3411 = vsel %vm3401, %v3342, %v2218
    %v3412 = vsel %vm3401, %v3343, %v2223
    %v3413 = vsel %vm3401, %v3344, %v2226
    %v3414 = vsel %vm3401, %v3345, %v2231
    %v3415 = vsel %vm3401, %v3346, %v2234
    %v3416 = vsel %vm3401, %v3347, %v2239
    %v3417 = vsel %vm3401, %v3348, %v2242
    %v3418 = vsel %vm3401, %v3349, %v2247
    %v3419 = vsel %vm3401, %v3350, %v2250
    %v3420 = vsel %vm3401, %v3351, %v2255
    %v3421 = vsel %vm3401, %v3352, %v2258
    %v3422 = vsel %vm3401, %v3353, %v2263
    %v3423 = vsel %vm3401, %v3354, %v2266
    %v3424 = vsel %vm3401, %v3355, %v2271
    %v3425 = vsel %vm3401, %v3356, %v2274
    %v3426 = vsel %vm3401, %v3357, %v2279
    %v3427 = vsel %vm3401, %v3358, %v2282
    %v3428 = vsel %vm3401, %v3359, %v2287
    %v3429 = vsel %vm3401, %v3360, %v2290
    %v3430 = vsel %vm3401, %v3361, %v2295
    %v3431 = vsel %vm3401, %v3362, %v2298
    %v3432 = vsel %vm3401, %v3363, %v2303
    %v3433 = vsel %vm3401, %v3364, %v2306
    %v3434 = vsel %vm3401, %v3365, %v2311
    %v3435 = vsel %vm3401, %v3366, %v2314
    %v3436 = vsel %vm3401, %v3367, %v2319
    %v3437 = vsel %vm3401, %v3368, %v2322
    %v3438 = vsel %vm3401, %v3369, %v2327
    %v3439 = vsel %vm3401, %v3370, %v2330
    %v3440 = vsel %vm3401, %v3371, %v2335
    %v3441 = vsel %vm3401, %v3372, %v2338
    %v3442 = vsel %vm3401, %v3373, %v2343
    %v3443 = vsel %vm3401, %v3374, %v2346
    %v3444 = vsel %vm3401, %v3375, %v2351
    %v3445 = vsel %vm3401, %v3376, %v2354
    %v3446 = vsel %vm3401, %v3377, %v2359
    %v3447 = vsel %vm3401, %v3378, %v2362
    %v3448 = vsel %vm3401, %v3379, %v2367
    %v3449 = vsel %vm3401, %v3380, %v2370
    %v3450 = vsel %vm3401, %v3381, %v2375
    %v3451 = vsel %vm3401, %v3382, %v2378
    %v3452 = vsel %vm3401, %v3383, %v2383
    %v3453 = vsel %vm3401, %v3384, %v2386
    %v3454 = vsel %vm3401, %v3385, %v2391
    %v3455 = vsel %vm3401, %v3386, %v2394
    %v3456 = vsel %vm3401, %v3387, %v2399
    %v3457 = vsel %vm3401, %v3388, %v2402
    %v3458 = vsel %vm3401, %v3389, %v2407
    %v3459 = vsel %vm3401, %v3390, %v2410
    %v3460 = vsel %vm3401, %v3391, %v2415
    %v3461 = vsel %vm3401, %v3392, %v2418
    %v3462 = vsel %vm3401, %v3393, %v2423
    %v3463 = vsel %vm3401, %v3394, %v2426
    %v3464 = vsel %vm3401, %v3395, %v2431
    %v3465 = vsel %vm3401, %v3396, %v2434
    %v3466 = vpack.c.bf16 %v3403, %v3402
    %v3467 = vpack.c.bf16 %v3405, %v3404
    %v3468 = vpack.c.bf16 %v3407, %v3406
    %v3469 = vpack.c.bf16 %v3409, %v3408
    %v3470 = vpack.c.bf16 %v3411, %v3410
    %v3471 = vpack.c.bf16 %v3413, %v3412
    %v3472 = vpack.c.bf16 %v3415, %v3414
    %v3473 = vpack.c.bf16 %v3417, %v3416
    %v3474 = vpack.c.bf16 %v3419, %v3418
    %v3475 = vpack.c.bf16 %v3421, %v3420
    %v3476 = vpack.c.bf16 %v3423, %v3422
    %v3477 = vpack.c.bf16 %v3425, %v3424
    %v3478 = vpack.c.bf16 %v3427, %v3426
    %v3479 = vpack.c.bf16 %v3429, %v3428
    %v3480 = vpack.c.bf16 %v3431, %v3430
    %v3481 = vpack.c.bf16 %v3433, %v3432
    %v3482 = vpack.c.bf16 %v3435, %v3434
    %v3483 = vpack.c.bf16 %v3437, %v3436
    %v3484 = vpack.c.bf16 %v3439, %v3438
    %v3485 = vpack.c.bf16 %v3441, %v3440
    %v3486 = vpack.c.bf16 %v3443, %v3442
    %v3487 = vpack.c.bf16 %v3445, %v3444
    %v3488 = vpack.c.bf16 %v3447, %v3446
    %v3489 = vpack.c.bf16 %v3449, %v3448
    %v3490 = vpack.c.bf16 %v3451, %v3450
    %v3491 = vpack.c.bf16 %v3453, %v3452
    %v3492 = vpack.c.bf16 %v3455, %v3454
    %v3493 = vpack.c.bf16 %v3457, %v3456
    %v3494 = vpack.c.bf16 %v3459, %v3458
    %v3495 = vpack.c.bf16 %v3461, %v3460
    %v3496 = vpack.c.bf16 %v3463, %v3462
    %v3497 = vpack.c.bf16 %v3465, %v3464
    %v3530 = vunpack.c.l.b16 %v3466
    %v3531 = vunpack.c.h.b16 %v3466
    %v3532 = vunpack.c.l.b16 %v3467
    %v3533 = vunpack.c.h.b16 %v3467
    %v3534 = vunpack.c.l.b16 %v3468
    %v3535 = vunpack.c.h.b16 %v3468
    %v3536 = vunpack.c.l.b16 %v3469
    %v3537 = vunpack.c.h.b16 %v3469
    %v3538 = vunpack.c.l.b16 %v3470
    %v3539 = vunpack.c.h.b16 %v3470
    %v3540 = vunpack.c.l.b16 %v3471
    %v3541 = vunpack.c.h.b16 %v3471
    %v3542 = vunpack.c.l.b16 %v3472
    %v3543 = vunpack.c.h.b16 %v3472
    %v3544 = vunpack.c.l.b16 %v3473
    %v3545 = vunpack.c.h.b16 %v3473
    %v3546 = vunpack.c.l.b16 %v3474
    %v3547 = vunpack.c.h.b16 %v3474
    %v3548 = vunpack.c.l.b16 %v3475
    %v3549 = vunpack.c.h.b16 %v3475
    %v3550 = vunpack.c.l.b16 %v3476
    %v3551 = vunpack.c.h.b16 %v3476
    %v3552 = vunpack.c.l.b16 %v3477
    %v3553 = vunpack.c.h.b16 %v3477
    %v3554 = vunpack.c.l.b16 %v3478
    %v3555 = vunpack.c.h.b16 %v3478
    %v3556 = vunpack.c.l.b16 %v3479
    %v3557 = vunpack.c.h.b16 %v3479
    %v3558 = vunpack.c.l.b16 %v3480
    %v3559 = vunpack.c.h.b16 %v3480
    %v3560 = vunpack.c.l.b16 %v3481
    %v3561 = vunpack.c.h.b16 %v3481
    %v3562 = vunpack.c.l.b16 %v3482
    %v3563 = vunpack.c.h.b16 %v3482
    %v3564 = vunpack.c.l.b16 %v3483
    %v3565 = vunpack.c.h.b16 %v3483
    %v3566 = vunpack.c.l.b16 %v3484
    %v3567 = vunpack.c.h.b16 %v3484
    %v3568 = vunpack.c.l.b16 %v3485
    %v3569 = vunpack.c.h.b16 %v3485
    %v3570 = vunpack.c.l.b16 %v3486
    %v3571 = vunpack.c.h.b16 %v3486
    %v3572 = vunpack.c.l.b16 %v3487
    %v3573 = vunpack.c.h.b16 %v3487
    %v3574 = vunpack.c.l.b16 %v3488
    %v3575 = vunpack.c.h.b16 %v3488
    %v3576 = vunpack.c.l.b16 %v3489
    %v3577 = vunpack.c.h.b16 %v3489
    %v3578 = vunpack.c.l.b16 %v3490
    %v3579 = vunpack.c.h.b16 %v3490
    %v3580 = vunpack.c.l.b16 %v3491
    %v3581 = vunpack.c.h.b16 %v3491
    %v3582 = vunpack.c.l.b16 %v3492
    %v3583 = vunpack.c.h.b16 %v3492
    %v3584 = vunpack.c.l.b16 %v3493
    %v3585 = vunpack.c.h.b16 %v3493
    %v3586 = vunpack.c.l.b16 %v3494
    %v3587 = vunpack.c.h.b16 %v3494
    %v3588 = vunpack.c.l.b16 %v3495
    %v3589 = vunpack.c.h.b16 %v3495
    %v3590 = vunpack.c.l.b16 %v3496
    %v3591 = vunpack.c.h.b16 %v3496
    %v3592 = vunpack.c.l.b16 %v3497
    %v3593 = vunpack.c.h.b16 %v3497
    %v3594 = vpack.c.b16 %v3530, %v3530
    %v3595 = vpack.c.b16 %v3531, %v3531
    %v3596 = vpack.c.b16 %v3532, %v3532
    %v3597 = vpack.c.b16 %v3533, %v3533
    %v3598 = vpack.c.b16 %v3534, %v3534
    %v3599 = vpack.c.b16 %v3535, %v3535
    %v3600 = vpack.c.b16 %v3536, %v3536
    %v3601 = vpack.c.b16 %v3537, %v3537
    %v3602 = vpack.c.b16 %v3538, %v3538
    %v3603 = vpack.c.b16 %v3539, %v3539
    %v3604 = vpack.c.b16 %v3540, %v3540
    %v3605 = vpack.c.b16 %v3541, %v3541
    %v3606 = vpack.c.b16 %v3542, %v3542
    %v3607 = vpack.c.b16 %v3543, %v3543
    %v3608 = vpack.c.b16 %v3544, %v3544
    %v3609 = vpack.c.b16 %v3545, %v3545
    %v3610 = vpack.c.b16 %v3546, %v3546
    %v3611 = vpack.c.b16 %v3547, %v3547
    %v3612 = vpack.c.b16 %v3548, %v3548
    %v3613 = vpack.c.b16 %v3549, %v3549
    %v3614 = vpack.c.b16 %v3550, %v3550
    %v3615 = vpack.c.b16 %v3551, %v3551
    %v3616 = vpack.c.b16 %v3552, %v3552
    %v3617 = vpack.c.b16 %v3553, %v3553
    %v3618 = vpack.c.b16 %v3554, %v3554
    %v3619 = vpack.c.b16 %v3555, %v3555
    %v3620 = vpack.c.b16 %v3556, %v3556
    %v3621 = vpack.c.b16 %v3557, %v3557
    %v3622 = vpack.c.b16 %v3558, %v3558
    %v3623 = vpack.c.b16 %v3559, %v3559
    %v3624 = vpack.c.b16 %v3560, %v3560
    %v3625 = vpack.c.b16 %v3561, %v3561
    %v3626 = vpack.c.b16 %v3562, %v3562
    %v3627 = vpack.c.b16 %v3563, %v3563
    %v3628 = vpack.c.b16 %v3564, %v3564
    %v3629 = vpack.c.b16 %v3565, %v3565
    %v3630 = vpack.c.b16 %v3566, %v3566
    %v3631 = vpack.c.b16 %v3567, %v3567
    %v3632 = vpack.c.b16 %v3568, %v3568
    %v3633 = vpack.c.b16 %v3569, %v3569
    %v3634 = vpack.c.b16 %v3570, %v3570
    %v3635 = vpack.c.b16 %v3571, %v3571
    %v3636 = vpack.c.b16 %v3572, %v3572
    %v3637 = vpack.c.b16 %v3573, %v3573
    %v3638 = vpack.c.b16 %v3574, %v3574
    %v3639 = vpack.c.b16 %v3575, %v3575
    %v3640 = vpack.c.b16 %v3576, %v3576
    %v3641 = vpack.c.b16 %v3577, %v3577
    %v3642 = vpack.c.b16 %v3578, %v3578
    %v3643 = vpack.c.b16 %v3579, %v3579
    %v3644 = vpack.c.b16 %v3580, %v3580
    %v3645 = vpack.c.b16 %v3581, %v3581
    %v3646 = vpack.c.b16 %v3582, %v3582
    %v3647 = vpack.c.b16 %v3583, %v3583
    %v3648 = vpack.c.b16 %v3584, %v3584
    %v3649 = vpack.c.b16 %v3585, %v3585
    %v3650 = vpack.c.b16 %v3586, %v3586
    %v3651 = vpack.c.b16 %v3587, %v3587
    %v3652 = vpack.c.b16 %v3588, %v3588
    %v3653 = vpack.c.b16 %v3589, %v3589
    %v3654 = vpack.c.b16 %v3590, %v3590
    %v3655 = vpack.c.b16 %v3591, %v3591
    %v3656 = vpack.c.b16 %v3592, %v3592
    %v3657 = vpack.c.b16 %v3593, %v3593
    %3722 = vst [vmem:[#allocation2] sm:$0xf] %v3594
    %3723 = vst [vmem:[#allocation2 + $0x4] sm:$0xf] %v3595
    %3724 = vst [vmem:[#allocation2 + $0x8] sm:$0xf] %v3596
    %3725 = vst [vmem:[#allocation2 + $0xc] sm:$0xf] %v3597
    %3726 = vst [vmem:[#allocation2 + $0x10] sm:$0xf] %v3598
    %3727 = vst [vmem:[#allocation2 + $0x14] sm:$0xf] %v3599
    %3728 = vst [vmem:[#allocation2 + $0x18] sm:$0xf] %v3600
    %3729 = vst [vmem:[#allocation2 + $0x1c] sm:$0xf] %v3601
    %3730 = vst [vmem:[#allocation2 + $0x20] sm:$0xf] %v3602
    %3731 = vst [vmem:[#allocation2 + $0x24] sm:$0xf] %v3603
    %3732 = vst [vmem:[#allocation2 + $0x28] sm:$0xf] %v3604
    %3733 = vst [vmem:[#allocation2 + $0x2c] sm:$0xf] %v3605
    %3734 = vst [vmem:[#allocation2 + $0x30] sm:$0xf] %v3606
    %3735 = vst [vmem:[#allocation2 + $0x34] sm:$0xf] %v3607
    %3736 = vst [vmem:[#allocation2 + $0x38] sm:$0xf] %v3608
    %3737 = vst [vmem:[#allocation2 + $0x3c] sm:$0xf] %v3609
    %3738 = vst [vmem:[#allocation2 + $0x40] sm:$0xf] %v3610
    %3739 = vst [vmem:[#allocation2 + $0x44] sm:$0xf] %v3611
    %3740 = vst [vmem:[#allocation2 + $0x48] sm:$0xf] %v3612
    %3741 = vst [vmem:[#allocation2 + $0x4c] sm:$0xf] %v3613
    %3742 = vst [vmem:[#allocation2 + $0x50] sm:$0xf] %v3614
    %3743 = vst [vmem:[#allocation2 + $0x54] sm:$0xf] %v3615
    %3744 = vst [vmem:[#allocation2 + $0x58] sm:$0xf] %v3616
    %3745 = vst [vmem:[#allocation2 + $0x5c] sm:$0xf] %v3617
    %3746 = vst [vmem:[#allocation2 + $0x60] sm:$0xf] %v3618
    %3747 = vst [vmem:[#allocation2 + $0x64] sm:$0xf] %v3619
    %3748 = vst [vmem:[#allocation2 + $0x68] sm:$0xf] %v3620
    %3749 = vst [vmem:[#allocation2 + $0x6c] sm:$0xf] %v3621
    %3750 = vst [vmem:[#allocation2 + $0x70] sm:$0xf] %v3622
    %3751 = vst [vmem:[#allocation2 + $0x74] sm:$0xf] %v3623
    %3752 = vst [vmem:[#allocation2 + $0x78] sm:$0xf] %v3624
    %3753 = vst [vmem:[#allocation2 + $0x7c] sm:$0xf] %v3625
    %3754 = vst [vmem:[#allocation2 + $0x80] sm:$0xf] %v3626
    %3755 = vst [vmem:[#allocation2 + $0x84] sm:$0xf] %v3627
    %3756 = vst [vmem:[#allocation2 + $0x88] sm:$0xf] %v3628
    %3757 = vst [vmem:[#allocation2 + $0x8c] sm:$0xf] %v3629
    %3758 = vst [vmem:[#allocation2 + $0x90] sm:$0xf] %v3630
    %3759 = vst [vmem:[#allocation2 + $0x94] sm:$0xf] %v3631
    %3760 = vst [vmem:[#allocation2 + $0x98] sm:$0xf] %v3632
    %3761 = vst [vmem:[#allocation2 + $0x9c] sm:$0xf] %v3633
    %3762 = vst [vmem:[#allocation2 + $0xa0] sm:$0xf] %v3634
    %3763 = vst [vmem:[#allocation2 + $0xa4] sm:$0xf] %v3635
    %3764 = vst [vmem:[#allocation2 + $0xa8] sm:$0xf] %v3636
    %3765 = vst [vmem:[#allocation2 + $0xac] sm:$0xf] %v3637
    %3766 = vst [vmem:[#allocation2 + $0xb0] sm:$0xf] %v3638
    %3767 = vst [vmem:[#allocation2 + $0xb4] sm:$0xf] %v3639
    %3768 = vst [vmem:[#allocation2 + $0xb8] sm:$0xf] %v3640
    %3769 = vst [vmem:[#allocation2 + $0xbc] sm:$0xf] %v3641
    %3770 = vst [vmem:[#allocation2 + $0xc0] sm:$0xf] %v3642
    %3771 = vst [vmem:[#allocation2 + $0xc4] sm:$0xf] %v3643
    %3772 = vst [vmem:[#allocation2 + $0xc8] sm:$0xf] %v3644
    %3773 = vst [vmem:[#allocation2 + $0xcc] sm:$0xf] %v3645
    %3774 = vst [vmem:[#allocation2 + $0xd0] sm:$0xf] %v3646
    %3775 = vst [vmem:[#allocation2 + $0xd4] sm:$0xf] %v3647
    %3776 = vst [vmem:[#allocation2 + $0xd8] sm:$0xf] %v3648
    %3777 = vst [vmem:[#allocation2 + $0xdc] sm:$0xf] %v3649
    %3778 = vst [vmem:[#allocation2 + $0xe0] sm:$0xf] %v3650
    %3779 = vst [vmem:[#allocation2 + $0xe4] sm:$0xf] %v3651
    %3780 = vst [vmem:[#allocation2 + $0xe8] sm:$0xf] %v3652
    %3781 = vst [vmem:[#allocation2 + $0xec] sm:$0xf] %v3653
    %3782 = vst [vmem:[#allocation2 + $0xf0] sm:$0xf] %v3654
    %3783 = vst [vmem:[#allocation2 + $0xf4] sm:$0xf] %v3655
    %3784 = vst [vmem:[#allocation2 + $0xf8] sm:$0xf] %v3656
    %3785 = vst [vmem:[#allocation2 + $0xfc] sm:$0xf] %v3657
    // Predicated region
    $region38: #{tpu_custom_call.1} parent=1 // pred_check
      _
    $region39: #{tpu_custom_call.1} parent=1 // pred_check_branch
      %3787 = sbr.rel (0) target = $region41
    $region40: #{tpu_custom_call.1} parent=1 // pred_region
      %s3789 = ssub.s32 4096, 4096
      %3790 = vsyncadd [#allocation3], %s3789
      %s3791 = sshll.u32 [#allocation2], 4
      %s3792 = int_to_ptr.vmem [resolvable:$true] %s3791
      %3797 = dma.vmem_to_hbm [thread:$0]  %s3792, 4096, %s9, [#allocation3], 64, 64, 4
    $region41: #{tpu_custom_call.1} parent=1 // pred_fallthru
      _
    // Predicated region
    $region42: #{tpu_custom_call.1} parent=1 // pred_check
      _
    $region43: #{tpu_custom_call.1} parent=1 // pred_check_branch
      %3799 = sbr.rel (0) target = $region45
    $region44: #{tpu_custom_call.1} parent=1 // pred_region
      %3800 = dma.done [#allocation3], 4096
    $region45: #{tpu_custom_call.1} parent=1 // pred_fallthru
      _
    %3801 = vsyncpa [#allocation3], 1

</llo_original>
